<compile_context>
chip_gen: v7x
topology: tpu7x:2x2x1
jax: 0.10.0
libtpu: 0.0.40
codegen_flags: <defaults>
</compile_context>

<pallas_src>
import functools
import math

import jax
import jax.numpy as jnp
from jax import lax
from jax.experimental import pallas as pl
from jax.experimental.pallas import tpu as pltpu

VMEM_LIMIT = 48 * 1024 * 1024  # headroom below v7x's 64 MiB physical VMEM

# target tile sizes (re-derived for v7x 64 MiB VMEM; multiples of 256 for v6e/v7x MXU)
TM_TGT = 256
TN_TGT = 256
TK_TGT = 512
TF_TGT = 512


def _pick_tile(dim, target, align):
    """Largest tile <= target that divides dim and is a multiple of align; else full dim."""
    if dim <= target:
        return dim
    t = (target // align) * align
    while t >= align:
        if dim % t == 0:
            return t
        t -= align
    return dim


def _cparams(sems):
    return pltpu.CompilerParams(dimension_semantics=sems, vmem_limit_bytes=VMEM_LIMIT)


# ---------------------------------------------------------------------------
# Kernel bodies
# ---------------------------------------------------------------------------

def _linear_kernel(x_ref, w_ref, b_ref, o_ref, acc_ref, *, activation):
    # Tiled y = x @ w + b with f32 accumulation over the K grid axis.
    k = pl.program_id(2)

    @pl.when(k == 0)
    def _():
        acc_ref[...] = jnp.zeros_like(acc_ref)

    acc_ref[...] += jnp.dot(x_ref[...].astype(jnp.bfloat16), w_ref[...],
                            preferred_element_type=jnp.float32)

    @pl.when(k == pl.num_programs(2) - 1)
    def _():
        y = acc_ref[...] + b_ref[...]
        if activation == "relu":
            y = jnp.maximum(y, 0.0)
        o_ref[...] = y.astype(o_ref.dtype)


def _ln_rows(y, g, b, eps):
    # Single-pass LayerNorm statistics (sum + sum-of-squares), f32 math.
    d = y.shape[-1]
    inv_d = 1.0 / d
    s1 = jnp.sum(y, axis=-1, keepdims=True)
    s2 = jnp.sum(y * y, axis=-1, keepdims=True)
    mean = s1 * inv_d
    var = s2 * inv_d - mean * mean
    inv = lax.rsqrt(var + eps)
    return (y - mean) * inv * g + b


def _linear_res_ln_kernel(x_ref, w_ref, b_ref, r_ref, g_ref, bt_ref, o_ref, *, eps):
    # Fused: LN((x @ w + b) + residual)
    y = jnp.dot(x_ref[...].astype(jnp.bfloat16), w_ref[...],
                preferred_element_type=jnp.float32)
    y = y + b_ref[...] + r_ref[...]
    o_ref[...] = _ln_rows(y, g_ref[...], bt_ref[...], eps).astype(o_ref.dtype)


def _ffn_res_ln_kernel(x_ref, w1_ref, b1_ref, w2_ref, b2_ref, g_ref, bt_ref,
                       o_ref, acc_ref, *, eps):
    # Fused FFN: accumulate relu(x @ w1_f + b1_f) @ w2_f over d_ff tiles, then
    # add bias + residual(x) and LayerNorm. The (M, d_ff) intermediate never hits HBM.
    f = pl.program_id(1)

    @pl.when(f == 0)
    def _():
        acc_ref[...] = jnp.zeros_like(acc_ref)

    xb = x_ref[...].astype(jnp.bfloat16)
    h = jnp.dot(xb, w1_ref[...], preferred_element_type=jnp.float32) + b1_ref[...]
    h = jnp.maximum(h, 0.0)
    acc_ref[...] += jnp.dot(h.astype(jnp.bfloat16), w2_ref[...],
                            preferred_element_type=jnp.float32)

    @pl.when(f == pl.num_programs(1) - 1)
    def _():
        y = acc_ref[...] + b2_ref[...] + x_ref[...]
        o_ref[...] = _ln_rows(y, g_ref[...], bt_ref[...], eps).astype(o_ref.dtype)


def _attn_heads(q, k, v, num_heads, scale):
    # q: (Sq, D), k/v: (Sk, D) in VMEM (f32). Per-head loop on-chip; single
    # lane-dense (Sq, D) result. Softmax kept in f32; MXU ops in bf16.
    d_model = q.shape[-1]
    dh = d_model // num_heads
    outs = []
    for h in range(num_heads):
        sl = slice(h * dh, (h + 1) * dh)
        qh = q[:, sl].astype(jnp.bfloat16)
        kh = k[:, sl].astype(jnp.bfloat16)
        vh = v[:, sl].astype(jnp.bfloat16)
        s = lax.dot_general(qh, kh, (((1,), (1,)), ((), ())),
                            preferred_element_type=jnp.float32) * scale
        m = jnp.max(s, axis=-1, keepdims=True)
        p = jnp.exp(s - m)
        l = jnp.sum(p, axis=-1, keepdims=True)
        p = p * pl.reciprocal(l, approx=True)
        outs.append(jnp.dot(p.astype(jnp.bfloat16), vh,
                            preferred_element_type=jnp.float32))
    return jnp.concatenate(outs, axis=-1)


def _self_attn_kernel(qkv_ref, o_ref, *, num_heads, d_model, scale):
    qkv = qkv_ref[0]                       # (S, 3D)
    q = qkv[:, :d_model]
    k = qkv[:, d_model:2 * d_model]
    v = qkv[:, 2 * d_model:]
    o_ref[0] = _attn_heads(q, k, v, num_heads, scale).astype(o_ref.dtype)


def _cross_attn_kernel(q_ref, kv_ref, o_ref, *, num_heads, d_model, scale):
    q = q_ref[0]                           # (Sq, D)
    kv = kv_ref[0]                         # (Sk, 2D)
    k = kv[:, :d_model]
    v = kv[:, d_model:]
    o_ref[0] = _attn_heads(q, k, v, num_heads, scale).astype(o_ref.dtype)


def _embed_pe_kernel(x_ref, w_ref, b_ref, pe_ref, o_ref):
    # Fused input embedding + bias + positional encoding.
    x = x_ref[0].astype(jnp.bfloat16)      # (ts, C)
    y = jnp.dot(x, w_ref[...], preferred_element_type=jnp.float32)
    o_ref[0] = (y + b_ref[...] + pe_ref[...]).astype(o_ref.dtype)


# ---------------------------------------------------------------------------
# pallas_call wrappers
# ---------------------------------------------------------------------------

def linear_tiled(x, w, b, activation=None):
    """x: (M, K) f32, w: (K, N) f32, b: (N,) -> (M, N) f32. Tiled & pipelined."""
    M, K = x.shape
    N = w.shape[1]
    tm = _pick_tile(M, TM_TGT, 8)
    tn = _pick_tile(N, TN_TGT, 128)
    tk = _pick_tile(K, TK_TGT, 128)
    return pl.pallas_call(
        functools.partial(_linear_kernel, activation=activation),
        grid=(M // tm, N // tn, K // tk),
        in_specs=[
            pl.BlockSpec((tm, tk), lambda i, j, k: (i, k)),
            pl.BlockSpec((tk, tn), lambda i, j, k: (k, j)),
            pl.BlockSpec((1, tn), lambda i, j, k: (0, j)),
        ],
        out_specs=pl.BlockSpec((tm, tn), lambda i, j, k: (i, j)),
        out_shape=jax.ShapeDtypeStruct((M, N), jnp.float32),
        scratch_shapes=[pltpu.VMEM((tm, tn), jnp.float32)],
        compiler_params=_cparams(("parallel", "parallel", "arbitrary")),
    )(x, w.astype(jnp.bfloat16), b.reshape(1, N))


def linear_residual_ln(x, w, b, res, gamma, beta, eps=1e-5):
    """LN((x @ w + b) + res); x/res: (M, D), w: (D, D)."""
    M, K = x.shape
    N = w.shape[1]
    tm = _pick_tile(M, TM_TGT, 8)
    return pl.pallas_call(
        functools.partial(_linear_res_ln_kernel, eps=eps),
        grid=(M // tm,),
        in_specs=[
            pl.BlockSpec((tm, K), lambda i: (i, 0)),
            pl.BlockSpec((K, N), lambda i: (0, 0)),
            pl.BlockSpec((1, N), lambda i: (0, 0)),
            pl.BlockSpec((tm, N), lambda i: (i, 0)),
            pl.BlockSpec((1, N), lambda i: (0, 0)),
            pl.BlockSpec((1, N), lambda i: (0, 0)),
        ],
        out_specs=pl.BlockSpec((tm, N), lambda i: (i, 0)),
        out_shape=jax.ShapeDtypeStruct((M, N), jnp.float32),
        compiler_params=_cparams(("parallel",)),
    )(x, w.astype(jnp.bfloat16), b.reshape(1, N), res,
      gamma.reshape(1, N), beta.reshape(1, N))


def ffn_residual_ln(x, w1, b1, w2, b2, gamma, beta, eps=1e-5):
    """LN(relu(x@w1+b1)@w2 + b2 + x), with d_ff as an on-chip reduction axis."""
    M, D = x.shape
    F = w1.shape[1]
    tm = _pick_tile(M, TM_TGT, 8)
    tf = _pick_tile(F, TF_TGT, 128)
    return pl.pallas_call(
        functools.partial(_ffn_res_ln_kernel, eps=eps),
        grid=(M // tm, F // tf),
        in_specs=[
            pl.BlockSpec((tm, D), lambda i, f: (i, 0)),
            pl.BlockSpec((D, tf), lambda i, f: (0, f)),
            pl.BlockSpec((1, tf), lambda i, f: (0, f)),
            pl.BlockSpec((tf, D), lambda i, f: (f, 0)),
            pl.BlockSpec((1, D), lambda i, f: (0, 0)),
            pl.BlockSpec((1, D), lambda i, f: (0, 0)),
            pl.BlockSpec((1, D), lambda i, f: (0, 0)),
        ],
        out_specs=pl.BlockSpec((tm, D), lambda i, f: (i, 0)),
        out_shape=jax.ShapeDtypeStruct((M, D), jnp.float32),
        scratch_shapes=[pltpu.VMEM((tm, D), jnp.float32)],
        compiler_params=_cparams(("parallel", "arbitrary")),
    )(x, w1.astype(jnp.bfloat16), b1.reshape(1, F), w2.astype(jnp.bfloat16),
      b2.reshape(1, D), gamma.reshape(1, D), beta.reshape(1, D))


def self_attention(qkv, num_heads):
    """qkv: (B, S, 3D) -> (B, S, D). One batch (all heads) per grid step."""
    B, S, D3 = qkv.shape
    D = D3 // 3
    scale = 1.0 / math.sqrt(D // num_heads)
    return pl.pallas_call(
        functools.partial(_self_attn_kernel, num_heads=num_heads, d_model=D, scale=scale),
        grid=(B,),
        in_specs=[pl.BlockSpec((1, S, D3), lambda b: (b, 0, 0))],
        out_specs=pl.BlockSpec((1, S, D), lambda b: (b, 0, 0)),
        out_shape=jax.ShapeDtypeStruct((B, S, D), jnp.float32),
        compiler_params=_cparams(("parallel",)),
    )(qkv)


def cross_attention(q, kv, num_heads):
    """q: (B, Sq, D), kv: (B, Sk, 2D) -> (B, Sq, D)."""
    B, Sq, D = q.shape
    Sk = kv.shape[1]
    scale = 1.0 / math.sqrt(D // num_heads)
    return pl.pallas_call(
        functools.partial(_cross_attn_kernel, num_heads=num_heads, d_model=D, scale=scale),
        grid=(B,),
        in_specs=[
            pl.BlockSpec((1, Sq, D), lambda b: (b, 0, 0)),
            pl.BlockSpec((1, Sk, 2 * D), lambda b: (b, 0, 0)),
        ],
        out_specs=pl.BlockSpec((1, Sq, D), lambda b: (b, 0, 0)),
        out_shape=jax.ShapeDtypeStruct((B, Sq, D), jnp.float32),
        compiler_params=_cparams(("parallel",)),
    )(q, kv)


def embed_with_pe(x, w, b, pe):
    """x: (B, S, C), w: (C, D), pe: (S, D) -> (B, S, D). Embed + bias + PE fused."""
    B, S, C = x.shape
    D = w.shape[1]
    ts = _pick_tile(S, TM_TGT, 8)
    return pl.pallas_call(
        _embed_pe_kernel,
        grid=(B, S // ts),
        in_specs=[
            pl.BlockSpec((1, ts, C), lambda bi, si: (bi, si, 0)),
            pl.BlockSpec((C, D), lambda bi, si: (0, 0)),
            pl.BlockSpec((1, D), lambda bi, si: (0, 0)),
            pl.BlockSpec((ts, D), lambda bi, si: (si, 0)),
        ],
        out_specs=pl.BlockSpec((1, ts, D), lambda bi, si: (bi, si, 0)),
        out_shape=jax.ShapeDtypeStruct((B, S, D), jnp.float32),
        compiler_params=_cparams(("parallel", "parallel")),
    )(x, w.astype(jnp.bfloat16), b.reshape(1, D), pe)


# ---------------------------------------------------------------------------
# Model blocks (glue reshapes only in plain JAX)
# ---------------------------------------------------------------------------

def self_attention_block(x, p, ln_g, ln_b):
    B, S, D = x.shape
    M = B * S
    qkv = linear_tiled(x.reshape(M, D), p["w_qkv"], p["b_qkv"])       # fused QKV
    attn = self_attention(qkv.reshape(B, S, 3 * D), p["num_heads"])   # (B, S, D)
    out = linear_residual_ln(attn.reshape(M, D), p["wo"], p["bo"],
                             x.reshape(M, D), ln_g, ln_b)             # out-proj + res + LN
    return out.reshape(B, S, D)


def cross_attention_block(x_q, x_kv, p, ln_g, ln_b):
    B, Sq, D = x_q.shape
    Sk = x_kv.shape[1]
    q = linear_tiled(x_q.reshape(B * Sq, D), p["w_qkv"][:, :D], p["b_qkv"][:D])
    kv = linear_tiled(x_kv.reshape(B * Sk, D), p["w_qkv"][:, D:], p["b_qkv"][D:])  # fused KV
    attn = cross_attention(q.reshape(B, Sq, D), kv.reshape(B, Sk, 2 * D), p["num_heads"])
    out = linear_residual_ln(attn.reshape(B * Sq, D), p["wo"], p["bo"],
                             x_q.reshape(B * Sq, D), ln_g, ln_b)
    return out.reshape(B, Sq, D)


def ffn_block(x, p, ln_g, ln_b):
    B, S, D = x.shape
    out = ffn_residual_ln(x.reshape(B * S, D), p["w1"], p["b1"], p["w2"], p["b2"],
                          ln_g, ln_b)
    return out.reshape(B, S, D)


def encoder_layer(x, p):
    x = self_attention_block(x, p["attn"], p["ln1_g"], p["ln1_b"])
    x = ffn_block(x, p["ffn"], p["ln2_g"], p["ln2_b"])
    return x


def decoder_layer(x, enc, p):
    x = self_attention_block(x, p["self_attn"], p["ln1_g"], p["ln1_b"])
    x = cross_attention_block(x, enc, p["cross_attn"], p["ln2_g"], p["ln2_b"])
    x = ffn_block(x, p["ffn"], p["ln3_g"], p["ln3_b"])
    return x


def encoder(x, params):
    h = embed_with_pe(x, params["embed_w"], params["embed_b"], params["pe"])
    for lyr in params["layers"]:
        h = encoder_layer(h, lyr)
    return h


def query_generation_block(encout, params):
    B, S, D = encout.shape
    Lq = params["queries"].shape[0]
    q = jnp.broadcast_to(params["queries"][None], (B, Lq, D))
    dq = cross_attention_block(q, encout, params["attn"], params["ln_g"], params["ln_b"])
    return dq, encout


def decoder(queries, encout, params):
    h = queries
    for lyr in params["layers"]:
        h = decoder_layer(h, encout, lyr)
    return h


def nast_forward(input_sequences, params):
    """Mirrors NastTransformerBase.forward."""
    encout = encoder(input_sequences, params["encoder"])
    decoder_queries, encout = query_generation_block(encout, params["qgb"])
    hidden_states = decoder(decoder_queries, encout, params["decoder"])
    return hidden_states


# ---------------------------------------------------------------------------
# Deterministic parameter initialization
# ---------------------------------------------------------------------------

def sinusoidal_pe(seq_len, d_model):
    pos = jnp.arange(seq_len, dtype=jnp.float32)[:, None]
    i = jnp.arange(d_model // 2, dtype=jnp.float32)[None, :]
    angle = pos / jnp.power(10000.0, 2.0 * i / d_model)
    # interleave sin/cos -> [sin0, cos0, sin1, cos1, ...]
    return jnp.stack([jnp.sin(angle), jnp.cos(angle)], axis=-1).reshape(seq_len, d_model)


def _lin_init(key, din, dout, scale=0.02):
    return (scale * jax.random.normal(key, (din, dout), jnp.float32),
            jnp.zeros((dout,), jnp.float32))


def _attn_init(key, d_model, num_heads):
    kqkv, ko = jax.random.split(key)
    w_qkv, b_qkv = _lin_init(kqkv, d_model, 3 * d_model)
    wo, bo = _lin_init(ko, d_model, d_model)
    return dict(num_heads=num_heads, w_qkv=w_qkv, b_qkv=b_qkv, wo=wo, bo=bo)


def _ffn_init(key, d_model, d_ff):
    k1, k2 = jax.random.split(key)
    w1, b1 = _lin_init(k1, d_model, d_ff)
    w2, b2 = _lin_init(k2, d_ff, d_model)
    return dict(w1=w1, b1=b1, w2=w2, b2=b2)


def init_params(key, *, channels, d_model, num_heads, d_ff,
                num_enc_layers, num_dec_layers, pred_len, context_len):
    keys = jax.random.split(key, 8)
    embed_w, embed_b = _lin_init(keys[0], channels, d_model)
    enc_layers = []
    for k in jax.random.split(keys[1], num_enc_layers):
        ka, kf = jax.random.split(k)
        enc_layers.append(dict(
            attn=_attn_init(ka, d_model, num_heads),
            ffn=_ffn_init(kf, d_model, d_ff),
            ln1_g=jnp.ones((d_model,), jnp.float32), ln1_b=jnp.zeros((d_model,), jnp.float32),
            ln2_g=jnp.ones((d_model,), jnp.float32), ln2_b=jnp.zeros((d_model,), jnp.float32),
        ))
    qgb = dict(
        queries=0.02 * jax.random.normal(keys[2], (pred_len, d_model), jnp.float32),
        attn=_attn_init(keys[3], d_model, num_heads),
        ln_g=jnp.ones((d_model,), jnp.float32), ln_b=jnp.zeros((d_model,), jnp.float32),
    )
    dec_layers = []
    for k in jax.random.split(keys[4], num_dec_layers):
        ks, kc, kf = jax.random.split(k, 3)
        dec_layers.append(dict(
            self_attn=_attn_init(ks, d_model, num_heads),
            cross_attn=_attn_init(kc, d_model, num_heads),
            ffn=_ffn_init(kf, d_model, d_ff),
            ln1_g=jnp.ones((d_model,), jnp.float32), ln1_b=jnp.zeros((d_model,), jnp.float32),
            ln2_g=jnp.ones((d_model,), jnp.float32), ln2_b=jnp.zeros((d_model,), jnp.float32),
            ln3_g=jnp.ones((d_model,), jnp.float32), ln3_b=jnp.zeros((d_model,), jnp.float32),
        ))
    return dict(
        encoder=dict(embed_w=embed_w, embed_b=embed_b,
                     pe=sinusoidal_pe(context_len, d_model),   # precomputed once
                     layers=enc_layers),
        qgb=qgb,
        decoder=dict(layers=dec_layers),
    )


# ---------------------------------------------------------------------------
# Demo
# ---------------------------------------------------------------------------

if __name__ == "__main__":
    B, C, S_CTX, S_PRED = 2, 4, 16, 8
    D_MODEL, N_HEADS, D_FF = 32, 4, 64
    N_ENC, N_DEC = 2, 2
    # NOTE: demo D_MODEL=32 (< 128 lanes) under-fills vregs; pad d_model / head_dim
    # to lane-friendly sizes (>=128) for any real run.

    key = jax.random.PRNGKey(0)
    k_in, k_par = jax.random.split(key)
    x = jax.random.normal(k_in, (B, S_CTX, C), jnp.float32)  # (B, S, C) channels-last

    params = init_params(
        k_par, channels=C, d_model=D_MODEL, num_heads=N_HEADS, d_ff=D_FF,
        num_enc_layers=N_ENC, num_dec_layers=N_DEC, pred_len=S_PRED, context_len=S_CTX,
    )

    fwd = jax.jit(lambda inp: nast_forward(inp, params))
    out = jax.block_until_ready(fwd(x))

    assert out.shape == (B, S_PRED, D_MODEL), out.shape
    assert out.dtype == jnp.float32
    assert bool(jnp.all(jnp.isfinite(out)))
    print("KERNEL_OK")
</pallas_src>

<mosaic_0001>
module attributes {stable_mosaic.version = 11 : i64} {
  func.func @_embed_pe_kernel(%arg0: i32, %arg1: i32, %arg2: memref<1x16x4xf32, #tpu.memory_space<vmem>>, %arg3: memref<4x32xbf16, #tpu.memory_space<vmem>>, %arg4: memref<1x32xf32, #tpu.memory_space<vmem>>, %arg5: memref<16x32xf32, #tpu.memory_space<vmem>>, %arg6: memref<1x16x32xf32, #tpu.memory_space<vmem>>) attributes {dimension_semantics = [#tpu.dimension_semantics<parallel>, #tpu.dimension_semantics<parallel>], iteration_bounds = array<i64: 2, 1>, scalar_prefetch = 0 : i64, scratch_operands = 0 : i64, tpu.core_type = #tpu.core_type<tc>, window_params = [{transform_indices = @transform_0, window_bounds = array<i64: 1, 16, 4>}, {pipeline_mode = #tpu.pipeline_mode<synchronous>, transform_indices = @transform_1, window_bounds = array<i64: 4, 32>}, {pipeline_mode = #tpu.pipeline_mode<synchronous>, transform_indices = @transform_2, window_bounds = array<i64: 1, 32>}, {transform_indices = @transform_3, window_bounds = array<i64: 16, 32>}, {transform_indices = @transform_4, window_bounds = array<i64: 1, 16, 32>}]} {
    %c0 = arith.constant 0 : index
    %c0_0 = arith.constant 0 : index
    %c0_1 = arith.constant 0 : index
    %0 = vector.load %arg2[%c0, %c0_0, %c0_1] : memref<1x16x4xf32, #tpu.memory_space<vmem>>, vector<1x16x4xf32>
    %1 = vector.shape_cast %0 : vector<1x16x4xf32> to vector<16x4xf32>
    %2 = arith.truncf %1 : vector<16x4xf32> to vector<16x4xbf16>
    %c0_2 = arith.constant 0 : index
    %c0_3 = arith.constant 0 : index
    %3 = vector.load %arg3[%c0_2, %c0_3] : memref<4x32xbf16, #tpu.memory_space<vmem>>, vector<4x32xbf16>
    %cst = arith.constant dense<0.000000e+00> : vector<16x32xf32>
    %4 = tpu.matmul %2, %3, %cst {dimension_numbers = #tpu.dot_dimension_numbers<[1], [0], [0], [1], [0, 0, 1, 1], [], []>} : vector<16x4xbf16>, vector<4x32xbf16>, vector<16x32xf32> -> vector<16x32xf32>
    %c0_4 = arith.constant 0 : index
    %c0_5 = arith.constant 0 : index
    %5 = vector.load %arg4[%c0_4, %c0_5] : memref<1x32xf32, #tpu.memory_space<vmem>>, vector<1x32xf32>
    %6 = vector.broadcast %5 : vector<1x32xf32> to vector<16x32xf32>
    %7 = arith.addf %4, %6 : vector<16x32xf32>
    %c0_6 = arith.constant 0 : index
    %c0_7 = arith.constant 0 : index
    %8 = vector.load %arg5[%c0_6, %c0_7] : memref<16x32xf32, #tpu.memory_space<vmem>>, vector<16x32xf32>
    %9 = arith.addf %7, %8 : vector<16x32xf32>
    %c0_8 = arith.constant 0 : index
    %c0_9 = arith.constant 0 : index
    %c0_10 = arith.constant 0 : index
    %10 = vector.load %arg6[%c0_8, %c0_9, %c0_10] : memref<1x16x32xf32, #tpu.memory_space<vmem>>, vector<1x16x32xf32>
    %11 = vector.shape_cast %10 : vector<1x16x32xf32> to vector<16x32xf32>
    %12 = vector.shape_cast %9 : vector<16x32xf32> to vector<1x16x32xf32>
    tpu.vector_store %arg6[%c0_8, %c0_9, %c0_10], %12 {strides = array<i32>} : memref<1x16x32xf32, #tpu.memory_space<vmem>>, vector<1x16x32xf32>,
    return
  }
  func.func @transform_0(%arg0: i32, %arg1: i32) -> (i32, i32, i32) {
    %c0_i32 = arith.constant 0 : i32
    %c0_i32_0 = arith.constant 0 : i32
    return %arg0, %arg1, %c0_i32 : i32, i32, i32
  }
  func.func @transform_1(%arg0: i32, %arg1: i32) -> (i32, i32) {
    %c0_i32 = arith.constant 0 : i32
    %c0_i32_0 = arith.constant 0 : i32
    %c0_i32_1 = arith.constant 0 : i32
    return %c0_i32, %c0_i32_0 : i32, i32
  }
  func.func @transform_2(%arg0: i32, %arg1: i32) -> (i32, i32) {
    %c0_i32 = arith.constant 0 : i32
    %c0_i32_0 = arith.constant 0 : i32
    %c0_i32_1 = arith.constant 0 : i32
    return %c0_i32, %c0_i32_0 : i32, i32
  }
  func.func @transform_3(%arg0: i32, %arg1: i32) -> (i32, i32) {
    %c0_i32 = arith.constant 0 : i32
    %c0_i32_0 = arith.constant 0 : i32
    return %arg1, %c0_i32 : i32, i32
  }
  func.func @transform_4(%arg0: i32, %arg1: i32) -> (i32, i32, i32) {
    %c0_i32 = arith.constant 0 : i32
    %c0_i32_0 = arith.constant 0 : i32
    return %arg0, %arg1, %c0_i32 : i32, i32, i32
  }
}

module attributes {stable_mosaic.version = 11 : i64} {
  func.func @_linear_res_ln_kernel(%arg0: i32, %arg1: memref<32x32xf32, #tpu.memory_space<vmem>>, %arg2: memref<32x32xbf16, #tpu.memory_space<vmem>>, %arg3: memref<1x32xf32, #tpu.memory_space<vmem>>, %arg4: memref<32x32xf32, #tpu.memory_space<vmem>>, %arg5: memref<1x32xf32, #tpu.memory_space<vmem>>, %arg6: memref<1x32xf32, #tpu.memory_space<vmem>>, %arg7: memref<32x32xf32, #tpu.memory_space<vmem>>) attributes {dimension_semantics = [#tpu.dimension_semantics<parallel>], iteration_bounds = array<i64: 1>, scalar_prefetch = 0 : i64, scratch_operands = 0 : i64, tpu.core_type = #tpu.core_type<tc>, window_params = [{transform_indices = @transform_0, window_bounds = array<i64: 32, 32>}, {pipeline_mode = #tpu.pipeline_mode<synchronous>, transform_indices = @transform_1, window_bounds = array<i64: 32, 32>}, {pipeline_mode = #tpu.pipeline_mode<synchronous>, transform_indices = @transform_2, window_bounds = array<i64: 1, 32>}, {transform_indices = @transform_3, window_bounds = array<i64: 32, 32>}, {pipeline_mode = #tpu.pipeline_mode<synchronous>, transform_indices = @transform_4, window_bounds = array<i64: 1, 32>}, {pipeline_mode = #tpu.pipeline_mode<synchronous>, transform_indices = @transform_5, window_bounds = array<i64: 1, 32>}, {transform_indices = @transform_6, window_bounds = array<i64: 32, 32>}]} {
    %c0 = arith.constant 0 : index
    %c0_0 = arith.constant 0 : index
    %0 = vector.load %arg1[%c0, %c0_0] : memref<32x32xf32, #tpu.memory_space<vmem>>, vector<32x32xf32>
    %1 = arith.truncf %0 : vector<32x32xf32> to vector<32x32xbf16>
    %c0_1 = arith.constant 0 : index
    %c0_2 = arith.constant 0 : index
    %2 = vector.load %arg2[%c0_1, %c0_2] : memref<32x32xbf16, #tpu.memory_space<vmem>>, vector<32x32xbf16>
    %cst = arith.constant dense<0.000000e+00> : vector<32x32xf32>
    %3 = tpu.matmul %1, %2, %cst {dimension_numbers = #tpu.dot_dimension_numbers<[1], [0], [0], [1], [0, 0, 1, 1], [], []>} : vector<32x32xbf16>, vector<32x32xbf16>, vector<32x32xf32> -> vector<32x32xf32>
    %c0_3 = arith.constant 0 : index
    %c0_4 = arith.constant 0 : index
    %4 = vector.load %arg3[%c0_3, %c0_4] : memref<1x32xf32, #tpu.memory_space<vmem>>, vector<1x32xf32>
    %5 = vector.broadcast %4 : vector<1x32xf32> to vector<32x32xf32>
    %6 = arith.addf %3, %5 : vector<32x32xf32>
    %c0_5 = arith.constant 0 : index
    %c0_6 = arith.constant 0 : index
    %7 = vector.load %arg4[%c0_5, %c0_6] : memref<32x32xf32, #tpu.memory_space<vmem>>, vector<32x32xf32>
    %8 = arith.addf %6, %7 : vector<32x32xf32>
    %c0_7 = arith.constant 0 : index
    %c0_8 = arith.constant 0 : index
    %9 = vector.load %arg5[%c0_7, %c0_8] : memref<1x32xf32, #tpu.memory_space<vmem>>, vector<1x32xf32>
    %c0_9 = arith.constant 0 : index
    %c0_10 = arith.constant 0 : index
    %10 = vector.load %arg6[%c0_9, %c0_10] : memref<1x32xf32, #tpu.memory_space<vmem>>, vector<1x32xf32>
    %cst_11 = arith.constant dense<0.000000e+00> : vector<32xf32>
    %11 = vector.multi_reduction <add>, %8, %cst_11 [1] : vector<32x32xf32> to vector<32xf32>
    %12 = vector.shape_cast %11 : vector<32xf32> to vector<32x1xf32>
    %13 = arith.mulf %8, %8 : vector<32x32xf32>
    %cst_12 = arith.constant dense<0.000000e+00> : vector<32xf32>
    %14 = vector.multi_reduction <add>, %13, %cst_12 [1] : vector<32x32xf32> to vector<32xf32>
    %15 = vector.shape_cast %14 : vector<32xf32> to vector<32x1xf32>
    %cst_13 = arith.constant 3.125000e-02 : f32
    %16 = vector.broadcast %cst_13 : f32 to vector<32x1xf32>
    %17 = arith.mulf %12, %16 : vector<32x1xf32>
    %cst_14 = arith.constant 3.125000e-02 : f32
    %18 = vector.broadcast %cst_14 : f32 to vector<32x1xf32>
    %19 = arith.mulf %15, %18 : vector<32x1xf32>
    %20 = arith.mulf %17, %17 : vector<32x1xf32>
    %21 = arith.subf %19, %20 : vector<32x1xf32>
    %cst_15 = arith.constant 9.99999974E-6 : f32
    %22 = vector.broadcast %cst_15 : f32 to vector<32x1xf32>
    %23 = arith.addf %21, %22 : vector<32x1xf32>
    %24 = math.rsqrt %23 : vector<32x1xf32>
    %25 = vector.broadcast %17 : vector<32x1xf32> to vector<32x32xf32>
    %26 = arith.subf %8, %25 : vector<32x32xf32>
    %27 = vector.broadcast %24 : vector<32x1xf32> to vector<32x32xf32>
    %28 = arith.mulf %26, %27 : vector<32x32xf32>
    %29 = vector.broadcast %9 : vector<1x32xf32> to vector<32x32xf32>
    %30 = arith.mulf %28, %29 : vector<32x32xf32>
    %31 = vector.broadcast %10 : vector<1x32xf32> to vector<32x32xf32>
    %32 = arith.addf %30, %31 : vector<32x32xf32>
    %c0_16 = arith.constant 0 : index
    %c0_17 = arith.constant 0 : index
    %33 = vector.load %arg7[%c0_16, %c0_17] : memref<32x32xf32, #tpu.memory_space<vmem>>, vector<32x32xf32>
    tpu.vector_store %arg7[%c0_16, %c0_17], %32 {strides = array<i32>} : memref<32x32xf32, #tpu.memory_space<vmem>>, vector<32x32xf32>,
    return
  }
  func.func @transform_0(%arg0: i32) -> (i32, i32) {
    %c0_i32 = arith.constant 0 : i32
    %c0_i32_0 = arith.constant 0 : i32
    return %arg0, %c0_i32 : i32, i32
  }
  func.func @transform_1(%arg0: i32) -> (i32, i32) {
    %c0_i32 = arith.constant 0 : i32
    %c0_i32_0 = arith.constant 0 : i32
    %c0_i32_1 = arith.constant 0 : i32
    return %c0_i32, %c0_i32_0 : i32, i32
  }
  func.func @transform_2(%arg0: i32) -> (i32, i32) {
    %c0_i32 = arith.constant 0 : i32
    %c0_i32_0 = arith.constant 0 : i32
    %c0_i32_1 = arith.constant 0 : i32
    return %c0_i32, %c0_i32_0 : i32, i32
  }
  func.func @transform_3(%arg0: i32) -> (i32, i32) {
    %c0_i32 = arith.constant 0 : i32
    %c0_i32_0 = arith.constant 0 : i32
    return %arg0, %c0_i32 : i32, i32
  }
  func.func @transform_4(%arg0: i32) -> (i32, i32) {
    %c0_i32 = arith.constant 0 : i32
    %c0_i32_0 = arith.constant 0 : i32
    %c0_i32_1 = arith.constant 0 : i32
    return %c0_i32, %c0_i32_0 : i32, i32
  }
  func.func @transform_5(%arg0: i32) -> (i32, i32) {
    %c0_i32 = arith.constant 0 : i32
    %c0_i32_0 = arith.constant 0 : i32
    %c0_i32_1 = arith.constant 0 : i32
    return %c0_i32, %c0_i32_0 : i32, i32
  }
  func.func @transform_6(%arg0: i32) -> (i32, i32) {
    %c0_i32 = arith.constant 0 : i32
    %c0_i32_0 = arith.constant 0 : i32
    return %arg0, %c0_i32 : i32, i32
  }
}

module attributes {stable_mosaic.version = 11 : i64} {
  func.func @_linear_kernel(%arg0: i32, %arg1: i32, %arg2: i32, %arg3: memref<32x32xf32, #tpu.memory_space<vmem>>, %arg4: memref<32x96xbf16, #tpu.memory_space<vmem>>, %arg5: memref<1x96xf32, #tpu.memory_space<vmem>>, %arg6: memref<32x96xf32, #tpu.memory_space<vmem>>, %arg7: memref<32x96xf32, #tpu.memory_space<vmem>>) attributes {dimension_semantics = [#tpu.dimension_semantics<parallel>, #tpu.dimension_semantics<parallel>, #tpu.dimension_semantics<arbitrary>], iteration_bounds = array<i64: 1, 1, 1>, scalar_prefetch = 0 : i64, scratch_operands = 1 : i64, tpu.core_type = #tpu.core_type<tc>, window_params = [{transform_indices = @transform_0, window_bounds = array<i64: 32, 32>}, {transform_indices = @transform_1, window_bounds = array<i64: 32, 96>}, {transform_indices = @transform_2, window_bounds = array<i64: 1, 96>}, {transform_indices = @transform_3, window_bounds = array<i64: 32, 96>}]} {
    %c0_i32 = arith.constant 0 : i32
    %0 = arith.cmpi eq, %arg2, %c0_i32 : i32
    %1 = arith.extui %0 : i1 to i32
    %c0_i32_0 = arith.constant 0 : i32
    %2 = arith.cmpi ne, %1, %c0_i32_0 : i32
    scf.if %2 {
      %cst_10 = arith.constant 0.000000e+00 : f32
      %13 = vector.broadcast %cst_10 : f32 to vector<32x96xf32>
      %c0_11 = arith.constant 0 : index
      %c0_12 = arith.constant 0 : index
      %14 = vector.load %arg7[%c0_11, %c0_12] : memref<32x96xf32, #tpu.memory_space<vmem>>, vector<32x96xf32>
      tpu.vector_store %arg7[%c0_11, %c0_12], %13 {strides = array<i32>} : memref<32x96xf32, #tpu.memory_space<vmem>>, vector<32x96xf32>,
    } else {
    }
    %c0 = arith.constant 0 : index
    %c0_1 = arith.constant 0 : index
    %3 = vector.load %arg7[%c0, %c0_1] : memref<32x96xf32, #tpu.memory_space<vmem>>, vector<32x96xf32>
    %c0_2 = arith.constant 0 : index
    %c0_3 = arith.constant 0 : index
    %4 = vector.load %arg3[%c0_2, %c0_3] : memref<32x32xf32, #tpu.memory_space<vmem>>, vector<32x32xf32>
    %5 = arith.truncf %4 : vector<32x32xf32> to vector<32x32xbf16>
    %c0_4 = arith.constant 0 : index
    %c0_5 = arith.constant 0 : index
    %6 = vector.load %arg4[%c0_4, %c0_5] : memref<32x96xbf16, #tpu.memory_space<vmem>>, vector<32x96xbf16>
    %cst = arith.constant dense<0.000000e+00> : vector<32x96xf32>
    %7 = tpu.matmul %5, %6, %cst {dimension_numbers = #tpu.dot_dimension_numbers<[1], [0], [0], [1], [0, 0, 1, 1], [], []>} : vector<32x32xbf16>, vector<32x96xbf16>, vector<32x96xf32> -> vector<32x96xf32>
    %8 = arith.addf %3, %7 : vector<32x96xf32>
    %c0_6 = arith.constant 0 : index
    %c0_7 = arith.constant 0 : index
    %9 = vector.load %arg7[%c0_6, %c0_7] : memref<32x96xf32, #tpu.memory_space<vmem>>, vector<32x96xf32>
    tpu.vector_store %arg7[%c0_6, %c0_7], %8 {strides = array<i32>} : memref<32x96xf32, #tpu.memory_space<vmem>>, vector<32x96xf32>,
    %c0_i32_8 = arith.constant 0 : i32
    %10 = arith.cmpi eq, %arg2, %c0_i32_8 : i32
    %11 = arith.extui %10 : i1 to i32
    %c0_i32_9 = arith.constant 0 : i32
    %12 = arith.cmpi ne, %11, %c0_i32_9 : i32
    scf.if %12 {
      %c0_10 = arith.constant 0 : index
      %c0_11 = arith.constant 0 : index
      %13 = vector.load %arg7[%c0_10, %c0_11] : memref<32x96xf32, #tpu.memory_space<vmem>>, vector<32x96xf32>
      %c0_12 = arith.constant 0 : index
      %c0_13 = arith.constant 0 : index
      %14 = vector.load %arg5[%c0_12, %c0_13] : memref<1x96xf32, #tpu.memory_space<vmem>>, vector<1x96xf32>
      %15 = vector.broadcast %14 : vector<1x96xf32> to vector<32x96xf32>
      %16 = arith.addf %13, %15 : vector<32x96xf32>
      %c0_14 = arith.constant 0 : index
      %c0_15 = arith.constant 0 : index
      %17 = vector.load %arg6[%c0_14, %c0_15] : memref<32x96xf32, #tpu.memory_space<vmem>>, vector<32x96xf32>
      tpu.vector_store %arg6[%c0_14, %c0_15], %16 {strides = array<i32>} : memref<32x96xf32, #tpu.memory_space<vmem>>, vector<32x96xf32>,
    } else {
    }
    return
  }
  func.func @transform_0(%arg0: i32, %arg1: i32, %arg2: i32) -> (i32, i32) {
    %c0_i32 = arith.constant 0 : i32
    return %arg0, %arg2 : i32, i32
  }
  func.func @transform_1(%arg0: i32, %arg1: i32, %arg2: i32) -> (i32, i32) {
    %c0_i32 = arith.constant 0 : i32
    return %arg2, %arg1 : i32, i32
  }
  func.func @transform_2(%arg0: i32, %arg1: i32, %arg2: i32) -> (i32, i32) {
    %c0_i32 = arith.constant 0 : i32
    %c0_i32_0 = arith.constant 0 : i32
    return %c0_i32, %arg1 : i32, i32
  }
  func.func @transform_3(%arg0: i32, %arg1: i32, %arg2: i32) -> (i32, i32) {
    %c0_i32 = arith.constant 0 : i32
    return %arg0, %arg1 : i32, i32
  }
}

module attributes {stable_mosaic.version = 11 : i64} {
  func.func @_self_attn_kernel(%arg0: i32, %arg1: memref<1x16x96xf32, #tpu.memory_space<vmem>>, %arg2: memref<1x16x32xf32, #tpu.memory_space<vmem>>) attributes {dimension_semantics = [#tpu.dimension_semantics<parallel>], iteration_bounds = array<i64: 2>, scalar_prefetch = 0 : i64, scratch_operands = 0 : i64, tpu.core_type = #tpu.core_type<tc>, window_params = [{transform_indices = @transform_0, window_bounds = array<i64: 1, 16, 96>}, {transform_indices = @transform_1, window_bounds = array<i64: 1, 16, 32>}]} {
    %c0 = arith.constant 0 : index
    %c0_0 = arith.constant 0 : index
    %c0_1 = arith.constant 0 : index
    %0 = vector.load %arg1[%c0, %c0_0, %c0_1] : memref<1x16x96xf32, #tpu.memory_space<vmem>>, vector<1x16x96xf32>
    %1 = vector.shape_cast %0 : vector<1x16x96xf32> to vector<16x96xf32>
    %2 = vector.extract_strided_slice %1 {offsets = [0, 0], sizes = [16, 32], strides = [1, 1]} : vector<16x96xf32> to vector<16x32xf32>
    %3 = vector.extract_strided_slice %1 {offsets = [0, 32], sizes = [16, 32], strides = [1, 1]} : vector<16x96xf32> to vector<16x32xf32>
    %4 = vector.extract_strided_slice %1 {offsets = [0, 64], sizes = [16, 32], strides = [1, 1]} : vector<16x96xf32> to vector<16x32xf32>
    %5 = vector.extract_strided_slice %2 {offsets = [0, 0], sizes = [16, 8], strides = [1, 1]} : vector<16x32xf32> to vector<16x8xf32>
    %6 = arith.truncf %5 : vector<16x8xf32> to vector<16x8xbf16>
    %7 = vector.extract_strided_slice %3 {offsets = [0, 0], sizes = [16, 8], strides = [1, 1]} : vector<16x32xf32> to vector<16x8xf32>
    %8 = arith.truncf %7 : vector<16x8xf32> to vector<16x8xbf16>
    %9 = vector.extract_strided_slice %4 {offsets = [0, 0], sizes = [16, 8], strides = [1, 1]} : vector<16x32xf32> to vector<16x8xf32>
    %10 = arith.truncf %9 : vector<16x8xf32> to vector<16x8xbf16>
    %cst = arith.constant dense<0.000000e+00> : vector<16x16xf32>
    %11 = tpu.matmul %6, %8, %cst {dimension_numbers = #tpu.dot_dimension_numbers<[1], [1], [0], [0], [0, 0, 1, 0], [], []>} : vector<16x8xbf16>, vector<16x8xbf16>, vector<16x16xf32> -> vector<16x16xf32>
    %cst_2 = arith.constant 0.353553385 : f32
    %12 = vector.broadcast %cst_2 : f32 to vector<16x16xf32>
    %13 = arith.mulf %11, %12 : vector<16x16xf32>
    %cst_3 = arith.constant dense<0xFF800000> : vector<16xf32>
    %14 = vector.multi_reduction <maximumf>, %13, %cst_3 [1] : vector<16x16xf32> to vector<16xf32>
    %15 = vector.shape_cast %14 : vector<16xf32> to vector<16x1xf32>
    %16 = vector.broadcast %15 : vector<16x1xf32> to vector<16x16xf32>
    %17 = arith.subf %13, %16 : vector<16x16xf32>
    %18 = math.exp %17 : vector<16x16xf32>
    %cst_4 = arith.constant dense<0.000000e+00> : vector<16xf32>
    %19 = vector.multi_reduction <add>, %18, %cst_4 [1] : vector<16x16xf32> to vector<16xf32>
    %20 = vector.shape_cast %19 : vector<16xf32> to vector<16x1xf32>
    %21 = tpu.reciprocal %20 {approx = true} : vector<16x1xf32> -> vector<16x1xf32>
    %22 = vector.broadcast %21 : vector<16x1xf32> to vector<16x16xf32>
    %23 = arith.mulf %18, %22 : vector<16x16xf32>
    %24 = arith.truncf %23 : vector<16x16xf32> to vector<16x16xbf16>
    %cst_5 = arith.constant dense<0.000000e+00> : vector<16x8xf32>
    %25 = tpu.matmul %24, %10, %cst_5 {dimension_numbers = #tpu.dot_dimension_numbers<[1], [0], [0], [1], [0, 0, 1, 1], [], []>} : vector<16x16xbf16>, vector<16x8xbf16>, vector<16x8xf32> -> vector<16x8xf32>
    %26 = vector.extract_strided_slice %2 {offsets = [0, 8], sizes = [16, 8], strides = [1, 1]} : vector<16x32xf32> to vector<16x8xf32>
    %27 = arith.truncf %26 : vector<16x8xf32> to vector<16x8xbf16>
    %28 = vector.extract_strided_slice %3 {offsets = [0, 8], sizes = [16, 8], strides = [1, 1]} : vector<16x32xf32> to vector<16x8xf32>
    %29 = arith.truncf %28 : vector<16x8xf32> to vector<16x8xbf16>
    %30 = vector.extract_strided_slice %4 {offsets = [0, 8], sizes = [16, 8], strides = [1, 1]} : vector<16x32xf32> to vector<16x8xf32>
    %31 = arith.truncf %30 : vector<16x8xf32> to vector<16x8xbf16>
    %cst_6 = arith.constant dense<0.000000e+00> : vector<16x16xf32>
    %32 = tpu.matmul %27, %29, %cst_6 {dimension_numbers = #tpu.dot_dimension_numbers<[1], [1], [0], [0], [0, 0, 1, 0], [], []>} : vector<16x8xbf16>, vector<16x8xbf16>, vector<16x16xf32> -> vector<16x16xf32>
    %cst_7 = arith.constant 0.353553385 : f32
    %33 = vector.broadcast %cst_7 : f32 to vector<16x16xf32>
    %34 = arith.mulf %32, %33 : vector<16x16xf32>
    %cst_8 = arith.constant dense<0xFF800000> : vector<16xf32>
    %35 = vector.multi_reduction <maximumf>, %34, %cst_8 [1] : vector<16x16xf32> to vector<16xf32>
    %36 = vector.shape_cast %35 : vector<16xf32> to vector<16x1xf32>
    %37 = vector.broadcast %36 : vector<16x1xf32> to vector<16x16xf32>
    %38 = arith.subf %34, %37 : vector<16x16xf32>
    %39 = math.exp %38 : vector<16x16xf32>
    %cst_9 = arith.constant dense<0.000000e+00> : vector<16xf32>
    %40 = vector.multi_reduction <add>, %39, %cst_9 [1] : vector<16x16xf32> to vector<16xf32>
    %41 = vector.shape_cast %40 : vector<16xf32> to vector<16x1xf32>
    %42 = tpu.reciprocal %41 {approx = true} : vector<16x1xf32> -> vector<16x1xf32>
    %43 = vector.broadcast %42 : vector<16x1xf32> to vector<16x16xf32>
    %44 = arith.mulf %39, %43 : vector<16x16xf32>
    %45 = arith.truncf %44 : vector<16x16xf32> to vector<16x16xbf16>
    %cst_10 = arith.constant dense<0.000000e+00> : vector<16x8xf32>
    %46 = tpu.matmul %45, %31, %cst_10 {dimension_numbers = #tpu.dot_dimension_numbers<[1], [0], [0], [1], [0, 0, 1, 1], [], []>} : vector<16x16xbf16>, vector<16x8xbf16>, vector<16x8xf32> -> vector<16x8xf32>
    %47 = vector.extract_strided_slice %2 {offsets = [0, 16], sizes = [16, 8], strides = [1, 1]} : vector<16x32xf32> to vector<16x8xf32>
    %48 = arith.truncf %47 : vector<16x8xf32> to vector<16x8xbf16>
    %49 = vector.extract_strided_slice %3 {offsets = [0, 16], sizes = [16, 8], strides = [1, 1]} : vector<16x32xf32> to vector<16x8xf32>
    %50 = arith.truncf %49 : vector<16x8xf32> to vector<16x8xbf16>
    %51 = vector.extract_strided_slice %4 {offsets = [0, 16], sizes = [16, 8], strides = [1, 1]} : vector<16x32xf32> to vector<16x8xf32>
    %52 = arith.truncf %51 : vector<16x8xf32> to vector<16x8xbf16>
    %cst_11 = arith.constant dense<0.000000e+00> : vector<16x16xf32>
    %53 = tpu.matmul %48, %50, %cst_11 {dimension_numbers = #tpu.dot_dimension_numbers<[1], [1], [0], [0], [0, 0, 1, 0], [], []>} : vector<16x8xbf16>, vector<16x8xbf16>, vector<16x16xf32> -> vector<16x16xf32>
    %cst_12 = arith.constant 0.353553385 : f32
    %54 = vector.broadcast %cst_12 : f32 to vector<16x16xf32>
    %55 = arith.mulf %53, %54 : vector<16x16xf32>
    %cst_13 = arith.constant dense<0xFF800000> : vector<16xf32>
    %56 = vector.multi_reduction <maximumf>, %55, %cst_13 [1] : vector<16x16xf32> to vector<16xf32>
    %57 = vector.shape_cast %56 : vector<16xf32> to vector<16x1xf32>
    %58 = vector.broadcast %57 : vector<16x1xf32> to vector<16x16xf32>
    %59 = arith.subf %55, %58 : vector<16x16xf32>
    %60 = math.exp %59 : vector<16x16xf32>
    %cst_14 = arith.constant dense<0.000000e+00> : vector<16xf32>
    %61 = vector.multi_reduction <add>, %60, %cst_14 [1] : vector<16x16xf32> to vector<16xf32>
    %62 = vector.shape_cast %61 : vector<16xf32> to vector<16x1xf32>
    %63 = tpu.reciprocal %62 {approx = true} : vector<16x1xf32> -> vector<16x1xf32>
    %64 = vector.broadcast %63 : vector<16x1xf32> to vector<16x16xf32>
    %65 = arith.mulf %60, %64 : vector<16x16xf32>
    %66 = arith.truncf %65 : vector<16x16xf32> to vector<16x16xbf16>
    %cst_15 = arith.constant dense<0.000000e+00> : vector<16x8xf32>
    %67 = tpu.matmul %66, %52, %cst_15 {dimension_numbers = #tpu.dot_dimension_numbers<[1], [0], [0], [1], [0, 0, 1, 1], [], []>} : vector<16x16xbf16>, vector<16x8xbf16>, vector<16x8xf32> -> vector<16x8xf32>
    %68 = vector.extract_strided_slice %2 {offsets = [0, 24], sizes = [16, 8], strides = [1, 1]} : vector<16x32xf32> to vector<16x8xf32>
    %69 = arith.truncf %68 : vector<16x8xf32> to vector<16x8xbf16>
    %70 = vector.extract_strided_slice %3 {offsets = [0, 24], sizes = [16, 8], strides = [1, 1]} : vector<16x32xf32> to vector<16x8xf32>
    %71 = arith.truncf %70 : vector<16x8xf32> to vector<16x8xbf16>
    %72 = vector.extract_strided_slice %4 {offsets = [0, 24], sizes = [16, 8], strides = [1, 1]} : vector<16x32xf32> to vector<16x8xf32>
    %73 = arith.truncf %72 : vector<16x8xf32> to vector<16x8xbf16>
    %cst_16 = arith.constant dense<0.000000e+00> : vector<16x16xf32>
    %74 = tpu.matmul %69, %71, %cst_16 {dimension_numbers = #tpu.dot_dimension_numbers<[1], [1], [0], [0], [0, 0, 1, 0], [], []>} : vector<16x8xbf16>, vector<16x8xbf16>, vector<16x16xf32> -> vector<16x16xf32>
    %cst_17 = arith.constant 0.353553385 : f32
    %75 = vector.broadcast %cst_17 : f32 to vector<16x16xf32>
    %76 = arith.mulf %74, %75 : vector<16x16xf32>
    %cst_18 = arith.constant dense<0xFF800000> : vector<16xf32>
    %77 = vector.multi_reduction <maximumf>, %76, %cst_18 [1] : vector<16x16xf32> to vector<16xf32>
    %78 = vector.shape_cast %77 : vector<16xf32> to vector<16x1xf32>
    %79 = vector.broadcast %78 : vector<16x1xf32> to vector<16x16xf32>
    %80 = arith.subf %76, %79 : vector<16x16xf32>
    %81 = math.exp %80 : vector<16x16xf32>
    %cst_19 = arith.constant dense<0.000000e+00> : vector<16xf32>
    %82 = vector.multi_reduction <add>, %81, %cst_19 [1] : vector<16x16xf32> to vector<16xf32>
    %83 = vector.shape_cast %82 : vector<16xf32> to vector<16x1xf32>
    %84 = tpu.reciprocal %83 {approx = true} : vector<16x1xf32> -> vector<16x1xf32>
    %85 = vector.broadcast %84 : vector<16x1xf32> to vector<16x16xf32>
    %86 = arith.mulf %81, %85 : vector<16x16xf32>
    %87 = arith.truncf %86 : vector<16x16xf32> to vector<16x16xbf16>
    %cst_20 = arith.constant dense<0.000000e+00> : vector<16x8xf32>
    %88 = tpu.matmul %87, %73, %cst_20 {dimension_numbers = #tpu.dot_dimension_numbers<[1], [0], [0], [1], [0, 0, 1, 1], [], []>} : vector<16x16xbf16>, vector<16x8xbf16>, vector<16x8xf32> -> vector<16x8xf32>
    %89 = tpu.concatenate %25, %46, %67, %88 in 1 : vector<16x8xf32>, vector<16x8xf32>, vector<16x8xf32>, vector<16x8xf32> -> vector<16x32xf32>
    %c0_21 = arith.constant 0 : index
    %c0_22 = arith.constant 0 : index
    %c0_23 = arith.constant 0 : index
    %90 = vector.load %arg2[%c0_21, %c0_22, %c0_23] : memref<1x16x32xf32, #tpu.memory_space<vmem>>, vector<1x16x32xf32>
    %91 = vector.shape_cast %90 : vector<1x16x32xf32> to vector<16x32xf32>
    %92 = vector.shape_cast %89 : vector<16x32xf32> to vector<1x16x32xf32>
    tpu.vector_store %arg2[%c0_21, %c0_22, %c0_23], %92 {strides = array<i32>} : memref<1x16x32xf32, #tpu.memory_space<vmem>>, vector<1x16x32xf32>,
    return
  }
  func.func @transform_0(%arg0: i32) -> (i32, i32, i32) {
    %c0_i32 = arith.constant 0 : i32
    %c0_i32_0 = arith.constant 0 : i32
    %c0_i32_1 = arith.constant 0 : i32
    return %arg0, %c0_i32, %c0_i32_0 : i32, i32, i32
  }
  func.func @transform_1(%arg0: i32) -> (i32, i32, i32) {
    %c0_i32 = arith.constant 0 : i32
    %c0_i32_0 = arith.constant 0 : i32
    %c0_i32_1 = arith.constant 0 : i32
    return %arg0, %c0_i32, %c0_i32_0 : i32, i32, i32
  }
}

module attributes {stable_mosaic.version = 11 : i64} {
  func.func @_linear_kernel(%arg0: i32, %arg1: i32, %arg2: i32, %arg3: memref<32x32xf32, #tpu.memory_space<vmem>>, %arg4: memref<32x64xbf16, #tpu.memory_space<vmem>>, %arg5: memref<1x64xf32, #tpu.memory_space<vmem>>, %arg6: memref<32x64xf32, #tpu.memory_space<vmem>>, %arg7: memref<32x64xf32, #tpu.memory_space<vmem>>) attributes {dimension_semantics = [#tpu.dimension_semantics<parallel>, #tpu.dimension_semantics<parallel>, #tpu.dimension_semantics<arbitrary>], iteration_bounds = array<i64: 1, 1, 1>, scalar_prefetch = 0 : i64, scratch_operands = 1 : i64, tpu.core_type = #tpu.core_type<tc>, window_params = [{transform_indices = @transform_0, window_bounds = array<i64: 32, 32>}, {transform_indices = @transform_1, window_bounds = array<i64: 32, 64>}, {transform_indices = @transform_2, window_bounds = array<i64: 1, 64>}, {transform_indices = @transform_3, window_bounds = array<i64: 32, 64>}]} {
    %c0_i32 = arith.constant 0 : i32
    %0 = arith.cmpi eq, %arg2, %c0_i32 : i32
    %1 = arith.extui %0 : i1 to i32
    %c0_i32_0 = arith.constant 0 : i32
    %2 = arith.cmpi ne, %1, %c0_i32_0 : i32
    scf.if %2 {
      %cst_10 = arith.constant 0.000000e+00 : f32
      %13 = vector.broadcast %cst_10 : f32 to vector<32x64xf32>
      %c0_11 = arith.constant 0 : index
      %c0_12 = arith.constant 0 : index
      %14 = vector.load %arg7[%c0_11, %c0_12] : memref<32x64xf32, #tpu.memory_space<vmem>>, vector<32x64xf32>
      tpu.vector_store %arg7[%c0_11, %c0_12], %13 {strides = array<i32>} : memref<32x64xf32, #tpu.memory_space<vmem>>, vector<32x64xf32>,
    } else {
    }
    %c0 = arith.constant 0 : index
    %c0_1 = arith.constant 0 : index
    %3 = vector.load %arg7[%c0, %c0_1] : memref<32x64xf32, #tpu.memory_space<vmem>>, vector<32x64xf32>
    %c0_2 = arith.constant 0 : index
    %c0_3 = arith.constant 0 : index
    %4 = vector.load %arg3[%c0_2, %c0_3] : memref<32x32xf32, #tpu.memory_space<vmem>>, vector<32x32xf32>
    %5 = arith.truncf %4 : vector<32x32xf32> to vector<32x32xbf16>
    %c0_4 = arith.constant 0 : index
    %c0_5 = arith.constant 0 : index
    %6 = vector.load %arg4[%c0_4, %c0_5] : memref<32x64xbf16, #tpu.memory_space<vmem>>, vector<32x64xbf16>
    %cst = arith.constant dense<0.000000e+00> : vector<32x64xf32>
    %7 = tpu.matmul %5, %6, %cst {dimension_numbers = #tpu.dot_dimension_numbers<[1], [0], [0], [1], [0, 0, 1, 1], [], []>} : vector<32x32xbf16>, vector<32x64xbf16>, vector<32x64xf32> -> vector<32x64xf32>
    %8 = arith.addf %3, %7 : vector<32x64xf32>
    %c0_6 = arith.constant 0 : index
    %c0_7 = arith.constant 0 : index
    %9 = vector.load %arg7[%c0_6, %c0_7] : memref<32x64xf32, #tpu.memory_space<vmem>>, vector<32x64xf32>
    tpu.vector_store %arg7[%c0_6, %c0_7], %8 {strides = array<i32>} : memref<32x64xf32, #tpu.memory_space<vmem>>, vector<32x64xf32>,
    %c0_i32_8 = arith.constant 0 : i32
    %10 = arith.cmpi eq, %arg2, %c0_i32_8 : i32
    %11 = arith.extui %10 : i1 to i32
    %c0_i32_9 = arith.constant 0 : i32
    %12 = arith.cmpi ne, %11, %c0_i32_9 : i32
    scf.if %12 {
      %c0_10 = arith.constant 0 : index
      %c0_11 = arith.constant 0 : index
      %13 = vector.load %arg7[%c0_10, %c0_11] : memref<32x64xf32, #tpu.memory_space<vmem>>, vector<32x64xf32>
      %c0_12 = arith.constant 0 : index
      %c0_13 = arith.constant 0 : index
      %14 = vector.load %arg5[%c0_12, %c0_13] : memref<1x64xf32, #tpu.memory_space<vmem>>, vector<1x64xf32>
      %15 = vector.broadcast %14 : vector<1x64xf32> to vector<32x64xf32>
      %16 = arith.addf %13, %15 : vector<32x64xf32>
      %c0_14 = arith.constant 0 : index
      %c0_15 = arith.constant 0 : index
      %17 = vector.load %arg6[%c0_14, %c0_15] : memref<32x64xf32, #tpu.memory_space<vmem>>, vector<32x64xf32>
      tpu.vector_store %arg6[%c0_14, %c0_15], %16 {strides = array<i32>} : memref<32x64xf32, #tpu.memory_space<vmem>>, vector<32x64xf32>,
    } else {
    }
    return
  }
  func.func @transform_0(%arg0: i32, %arg1: i32, %arg2: i32) -> (i32, i32) {
    %c0_i32 = arith.constant 0 : i32
    return %arg0, %arg2 : i32, i32
  }
  func.func @transform_1(%arg0: i32, %arg1: i32, %arg2: i32) -> (i32, i32) {
    %c0_i32 = arith.constant 0 : i32
    return %arg2, %arg1 : i32, i32
  }
  func.func @transform_2(%arg0: i32, %arg1: i32, %arg2: i32) -> (i32, i32) {
    %c0_i32 = arith.constant 0 : i32
    %c0_i32_0 = arith.constant 0 : i32
    return %c0_i32, %arg1 : i32, i32
  }
  func.func @transform_3(%arg0: i32, %arg1: i32, %arg2: i32) -> (i32, i32) {
    %c0_i32 = arith.constant 0 : i32
    return %arg0, %arg1 : i32, i32
  }
}

module attributes {stable_mosaic.version = 11 : i64} {
  func.func @_ffn_res_ln_kernel(%arg0: i32, %arg1: i32, %arg2: memref<32x32xf32, #tpu.memory_space<vmem>>, %arg3: memref<32x64xbf16, #tpu.memory_space<vmem>>, %arg4: memref<1x64xf32, #tpu.memory_space<vmem>>, %arg5: memref<64x32xbf16, #tpu.memory_space<vmem>>, %arg6: memref<1x32xf32, #tpu.memory_space<vmem>>, %arg7: memref<1x32xf32, #tpu.memory_space<vmem>>, %arg8: memref<1x32xf32, #tpu.memory_space<vmem>>, %arg9: memref<32x32xf32, #tpu.memory_space<vmem>>, %arg10: memref<32x32xf32, #tpu.memory_space<vmem>>) attributes {dimension_semantics = [#tpu.dimension_semantics<parallel>, #tpu.dimension_semantics<arbitrary>], iteration_bounds = array<i64: 1, 1>, scalar_prefetch = 0 : i64, scratch_operands = 1 : i64, tpu.core_type = #tpu.core_type<tc>, window_params = [{transform_indices = @transform_0, window_bounds = array<i64: 32, 32>}, {transform_indices = @transform_1, window_bounds = array<i64: 32, 64>}, {transform_indices = @transform_2, window_bounds = array<i64: 1, 64>}, {transform_indices = @transform_3, window_bounds = array<i64: 64, 32>}, {pipeline_mode = #tpu.pipeline_mode<synchronous>, transform_indices = @transform_4, window_bounds = array<i64: 1, 32>}, {pipeline_mode = #tpu.pipeline_mode<synchronous>, transform_indices = @transform_5, window_bounds = array<i64: 1, 32>}, {pipeline_mode = #tpu.pipeline_mode<synchronous>, transform_indices = @transform_6, window_bounds = array<i64: 1, 32>}, {transform_indices = @transform_7, window_bounds = array<i64: 32, 32>}]} {
    %c0_i32 = arith.constant 0 : i32
    %0 = arith.cmpi eq, %arg1, %c0_i32 : i32
    %1 = arith.extui %0 : i1 to i32
    %c0_i32_0 = arith.constant 0 : i32
    %2 = arith.cmpi ne, %1, %c0_i32_0 : i32
    scf.if %2 {
      %cst_16 = arith.constant 0.000000e+00 : f32
      %21 = vector.broadcast %cst_16 : f32 to vector<32x32xf32>
      %c0_17 = arith.constant 0 : index
      %c0_18 = arith.constant 0 : index
      %22 = vector.load %arg10[%c0_17, %c0_18] : memref<32x32xf32, #tpu.memory_space<vmem>>, vector<32x32xf32>
      tpu.vector_store %arg10[%c0_17, %c0_18], %21 {strides = array<i32>} : memref<32x32xf32, #tpu.memory_space<vmem>>, vector<32x32xf32>,
    } else {
    }
    %c0 = arith.constant 0 : index
    %c0_1 = arith.constant 0 : index
    %3 = vector.load %arg2[%c0, %c0_1] : memref<32x32xf32, #tpu.memory_space<vmem>>, vector<32x32xf32>
    %4 = arith.truncf %3 : vector<32x32xf32> to vector<32x32xbf16>
    %c0_2 = arith.constant 0 : index
    %c0_3 = arith.constant 0 : index
    %5 = vector.load %arg3[%c0_2, %c0_3] : memref<32x64xbf16, #tpu.memory_space<vmem>>, vector<32x64xbf16>
    %cst = arith.constant dense<0.000000e+00> : vector<32x64xf32>
    %6 = tpu.matmul %4, %5, %cst {dimension_numbers = #tpu.dot_dimension_numbers<[1], [0], [0], [1], [0, 0, 1, 1], [], []>} : vector<32x32xbf16>, vector<32x64xbf16>, vector<32x64xf32> -> vector<32x64xf32>
    %c0_4 = arith.constant 0 : index
    %c0_5 = arith.constant 0 : index
    %7 = vector.load %arg4[%c0_4, %c0_5] : memref<1x64xf32, #tpu.memory_space<vmem>>, vector<1x64xf32>
    %8 = vector.broadcast %7 : vector<1x64xf32> to vector<32x64xf32>
    %9 = arith.addf %6, %8 : vector<32x64xf32>
    %cst_6 = arith.constant 0.000000e+00 : f32
    %10 = vector.broadcast %cst_6 : f32 to vector<32x64xf32>
    %11 = arith.maximumf %9, %10 : vector<32x64xf32>
    %c0_7 = arith.constant 0 : index
    %c0_8 = arith.constant 0 : index
    %12 = vector.load %arg10[%c0_7, %c0_8] : memref<32x32xf32, #tpu.memory_space<vmem>>, vector<32x32xf32>
    %13 = arith.truncf %11 : vector<32x64xf32> to vector<32x64xbf16>
    %c0_9 = arith.constant 0 : index
    %c0_10 = arith.constant 0 : index
    %14 = vector.load %arg5[%c0_9, %c0_10] : memref<64x32xbf16, #tpu.memory_space<vmem>>, vector<64x32xbf16>
    %cst_11 = arith.constant dense<0.000000e+00> : vector<32x32xf32>
    %15 = tpu.matmul %13, %14, %cst_11 {dimension_numbers = #tpu.dot_dimension_numbers<[1], [0], [0], [1], [0, 0, 1, 1], [], []>} : vector<32x64xbf16>, vector<64x32xbf16>, vector<32x32xf32> -> vector<32x32xf32>
    %16 = arith.addf %12, %15 : vector<32x32xf32>
    %c0_12 = arith.constant 0 : index
    %c0_13 = arith.constant 0 : index
    %17 = vector.load %arg10[%c0_12, %c0_13] : memref<32x32xf32, #tpu.memory_space<vmem>>, vector<32x32xf32>
    tpu.vector_store %arg10[%c0_12, %c0_13], %16 {strides = array<i32>} : memref<32x32xf32, #tpu.memory_space<vmem>>, vector<32x32xf32>,
    %c0_i32_14 = arith.constant 0 : i32
    %18 = arith.cmpi eq, %arg1, %c0_i32_14 : i32
    %19 = arith.extui %18 : i1 to i32
    %c0_i32_15 = arith.constant 0 : i32
    %20 = arith.cmpi ne, %19, %c0_i32_15 : i32
    scf.if %20 {
      %c0_16 = arith.constant 0 : index
      %c0_17 = arith.constant 0 : index
      %21 = vector.load %arg10[%c0_16, %c0_17] : memref<32x32xf32, #tpu.memory_space<vmem>>, vector<32x32xf32>
      %c0_18 = arith.constant 0 : index
      %c0_19 = arith.constant 0 : index
      %22 = vector.load %arg6[%c0_18, %c0_19] : memref<1x32xf32, #tpu.memory_space<vmem>>, vector<1x32xf32>
      %23 = vector.broadcast %22 : vector<1x32xf32> to vector<32x32xf32>
      %24 = arith.addf %21, %23 : vector<32x32xf32>
      %c0_20 = arith.constant 0 : index
      %c0_21 = arith.constant 0 : index
      %25 = vector.load %arg2[%c0_20, %c0_21] : memref<32x32xf32, #tpu.memory_space<vmem>>, vector<32x32xf32>
      %26 = arith.addf %24, %25 : vector<32x32xf32>
      %c0_22 = arith.constant 0 : index
      %c0_23 = arith.constant 0 : index
      %27 = vector.load %arg7[%c0_22, %c0_23] : memref<1x32xf32, #tpu.memory_space<vmem>>, vector<1x32xf32>
      %c0_24 = arith.constant 0 : index
      %c0_25 = arith.constant 0 : index
      %28 = vector.load %arg8[%c0_24, %c0_25] : memref<1x32xf32, #tpu.memory_space<vmem>>, vector<1x32xf32>
      %cst_26 = arith.constant dense<0.000000e+00> : vector<32xf32>
      %29 = vector.multi_reduction <add>, %26, %cst_26 [1] : vector<32x32xf32> to vector<32xf32>
      %30 = vector.shape_cast %29 : vector<32xf32> to vector<32x1xf32>
      %31 = arith.mulf %26, %26 : vector<32x32xf32>
      %cst_27 = arith.constant dense<0.000000e+00> : vector<32xf32>
      %32 = vector.multi_reduction <add>, %31, %cst_27 [1] : vector<32x32xf32> to vector<32xf32>
      %33 = vector.shape_cast %32 : vector<32xf32> to vector<32x1xf32>
      %cst_28 = arith.constant 3.125000e-02 : f32
      %34 = vector.broadcast %cst_28 : f32 to vector<32x1xf32>
      %35 = arith.mulf %30, %34 : vector<32x1xf32>
      %cst_29 = arith.constant 3.125000e-02 : f32
      %36 = vector.broadcast %cst_29 : f32 to vector<32x1xf32>
      %37 = arith.mulf %33, %36 : vector<32x1xf32>
      %38 = arith.mulf %35, %35 : vector<32x1xf32>
      %39 = arith.subf %37, %38 : vector<32x1xf32>
      %cst_30 = arith.constant 9.99999974E-6 : f32
      %40 = vector.broadcast %cst_30 : f32 to vector<32x1xf32>
      %41 = arith.addf %39, %40 : vector<32x1xf32>
      %42 = math.rsqrt %41 : vector<32x1xf32>
      %43 = vector.broadcast %35 : vector<32x1xf32> to vector<32x32xf32>
      %44 = arith.subf %26, %43 : vector<32x32xf32>
      %45 = vector.broadcast %42 : vector<32x1xf32> to vector<32x32xf32>
      %46 = arith.mulf %44, %45 : vector<32x32xf32>
      %47 = vector.broadcast %27 : vector<1x32xf32> to vector<32x32xf32>
      %48 = arith.mulf %46, %47 : vector<32x32xf32>
      %49 = vector.broadcast %28 : vector<1x32xf32> to vector<32x32xf32>
      %50 = arith.addf %48, %49 : vector<32x32xf32>
      %c0_31 = arith.constant 0 : index
      %c0_32 = arith.constant 0 : index
      %51 = vector.load %arg9[%c0_31, %c0_32] : memref<32x32xf32, #tpu.memory_space<vmem>>, vector<32x32xf32>
      tpu.vector_store %arg9[%c0_31, %c0_32], %50 {strides = array<i32>} : memref<32x32xf32, #tpu.memory_space<vmem>>, vector<32x32xf32>,
    } else {
    }
    return
  }
  func.func @transform_0(%arg0: i32, %arg1: i32) -> (i32, i32) {
    %c0_i32 = arith.constant 0 : i32
    %c0_i32_0 = arith.constant 0 : i32
    return %arg0, %c0_i32 : i32, i32
  }
  func.func @transform_1(%arg0: i32, %arg1: i32) -> (i32, i32) {
    %c0_i32 = arith.constant 0 : i32
    %c0_i32_0 = arith.constant 0 : i32
    return %c0_i32, %arg1 : i32, i32
  }
  func.func @transform_2(%arg0: i32, %arg1: i32) -> (i32, i32) {
    %c0_i32 = arith.constant 0 : i32
    %c0_i32_0 = arith.constant 0 : i32
    return %c0_i32, %arg1 : i32, i32
  }
  func.func @transform_3(%arg0: i32, %arg1: i32) -> (i32, i32) {
    %c0_i32 = arith.constant 0 : i32
    %c0_i32_0 = arith.constant 0 : i32
    return %arg1, %c0_i32 : i32, i32
  }
  func.func @transform_4(%arg0: i32, %arg1: i32) -> (i32, i32) {
    %c0_i32 = arith.constant 0 : i32
    %c0_i32_0 = arith.constant 0 : i32
    %c0_i32_1 = arith.constant 0 : i32
    return %c0_i32, %c0_i32_0 : i32, i32
  }
  func.func @transform_5(%arg0: i32, %arg1: i32) -> (i32, i32) {
    %c0_i32 = arith.constant 0 : i32
    %c0_i32_0 = arith.constant 0 : i32
    %c0_i32_1 = arith.constant 0 : i32
    return %c0_i32, %c0_i32_0 : i32, i32
  }
  func.func @transform_6(%arg0: i32, %arg1: i32) -> (i32, i32) {
    %c0_i32 = arith.constant 0 : i32
    %c0_i32_0 = arith.constant 0 : i32
    %c0_i32_1 = arith.constant 0 : i32
    return %c0_i32, %c0_i32_0 : i32, i32
  }
  func.func @transform_7(%arg0: i32, %arg1: i32) -> (i32, i32) {
    %c0_i32 = arith.constant 0 : i32
    %c0_i32_0 = arith.constant 0 : i32
    return %arg0, %c0_i32 : i32, i32
  }
}

module attributes {stable_mosaic.version = 11 : i64} {
  func.func @_cross_attn_kernel(%arg0: i32, %arg1: memref<1x8x32xf32, #tpu.memory_space<vmem>>, %arg2: memref<1x16x64xf32, #tpu.memory_space<vmem>>, %arg3: memref<1x8x32xf32, #tpu.memory_space<vmem>>) attributes {dimension_semantics = [#tpu.dimension_semantics<parallel>], iteration_bounds = array<i64: 2>, scalar_prefetch = 0 : i64, scratch_operands = 0 : i64, tpu.core_type = #tpu.core_type<tc>, window_params = [{transform_indices = @transform_0, window_bounds = array<i64: 1, 8, 32>}, {transform_indices = @transform_1, window_bounds = array<i64: 1, 16, 64>}, {transform_indices = @transform_2, window_bounds = array<i64: 1, 8, 32>}]} {
    %c0 = arith.constant 0 : index
    %c0_0 = arith.constant 0 : index
    %c0_1 = arith.constant 0 : index
    %0 = vector.load %arg1[%c0, %c0_0, %c0_1] : memref<1x8x32xf32, #tpu.memory_space<vmem>>, vector<1x8x32xf32>
    %1 = vector.shape_cast %0 : vector<1x8x32xf32> to vector<8x32xf32>
    %c0_2 = arith.constant 0 : index
    %c0_3 = arith.constant 0 : index
    %c0_4 = arith.constant 0 : index
    %2 = vector.load %arg2[%c0_2, %c0_3, %c0_4] : memref<1x16x64xf32, #tpu.memory_space<vmem>>, vector<1x16x64xf32>
    %3 = vector.shape_cast %2 : vector<1x16x64xf32> to vector<16x64xf32>
    %4 = vector.extract_strided_slice %3 {offsets = [0, 0], sizes = [16, 32], strides = [1, 1]} : vector<16x64xf32> to vector<16x32xf32>
    %5 = vector.extract_strided_slice %3 {offsets = [0, 32], sizes = [16, 32], strides = [1, 1]} : vector<16x64xf32> to vector<16x32xf32>
    %6 = vector.extract_strided_slice %1 {offsets = [0, 0], sizes = [8, 8], strides = [1, 1]} : vector<8x32xf32> to vector<8x8xf32>
    %7 = arith.truncf %6 : vector<8x8xf32> to vector<8x8xbf16>
    %8 = vector.extract_strided_slice %4 {offsets = [0, 0], sizes = [16, 8], strides = [1, 1]} : vector<16x32xf32> to vector<16x8xf32>
    %9 = arith.truncf %8 : vector<16x8xf32> to vector<16x8xbf16>
    %10 = vector.extract_strided_slice %5 {offsets = [0, 0], sizes = [16, 8], strides = [1, 1]} : vector<16x32xf32> to vector<16x8xf32>
    %11 = arith.truncf %10 : vector<16x8xf32> to vector<16x8xbf16>
    %cst = arith.constant dense<0.000000e+00> : vector<8x16xf32>
    %12 = tpu.matmul %7, %9, %cst {dimension_numbers = #tpu.dot_dimension_numbers<[1], [1], [0], [0], [0, 0, 1, 0], [], []>} : vector<8x8xbf16>, vector<16x8xbf16>, vector<8x16xf32> -> vector<8x16xf32>
    %cst_5 = arith.constant 0.353553385 : f32
    %13 = vector.broadcast %cst_5 : f32 to vector<8x16xf32>
    %14 = arith.mulf %12, %13 : vector<8x16xf32>
    %cst_6 = arith.constant dense<0xFF800000> : vector<8xf32>
    %15 = vector.multi_reduction <maximumf>, %14, %cst_6 [1] : vector<8x16xf32> to vector<8xf32>
    %16 = vector.shape_cast %15 : vector<8xf32> to vector<8x1xf32>
    %17 = vector.broadcast %16 : vector<8x1xf32> to vector<8x16xf32>
    %18 = arith.subf %14, %17 : vector<8x16xf32>
    %19 = math.exp %18 : vector<8x16xf32>
    %cst_7 = arith.constant dense<0.000000e+00> : vector<8xf32>
    %20 = vector.multi_reduction <add>, %19, %cst_7 [1] : vector<8x16xf32> to vector<8xf32>
    %21 = vector.shape_cast %20 : vector<8xf32> to vector<8x1xf32>
    %22 = tpu.reciprocal %21 {approx = true} : vector<8x1xf32> -> vector<8x1xf32>
    %23 = vector.broadcast %22 : vector<8x1xf32> to vector<8x16xf32>
    %24 = arith.mulf %19, %23 : vector<8x16xf32>
    %25 = arith.truncf %24 : vector<8x16xf32> to vector<8x16xbf16>
    %cst_8 = arith.constant dense<0.000000e+00> : vector<8x8xf32>
    %26 = tpu.matmul %25, %11, %cst_8 {dimension_numbers = #tpu.dot_dimension_numbers<[1], [0], [0], [1], [0, 0, 1, 1], [], []>} : vector<8x16xbf16>, vector<16x8xbf16>, vector<8x8xf32> -> vector<8x8xf32>
    %27 = vector.extract_strided_slice %1 {offsets = [0, 8], sizes = [8, 8], strides = [1, 1]} : vector<8x32xf32> to vector<8x8xf32>
    %28 = arith.truncf %27 : vector<8x8xf32> to vector<8x8xbf16>
    %29 = vector.extract_strided_slice %4 {offsets = [0, 8], sizes = [16, 8], strides = [1, 1]} : vector<16x32xf32> to vector<16x8xf32>
    %30 = arith.truncf %29 : vector<16x8xf32> to vector<16x8xbf16>
    %31 = vector.extract_strided_slice %5 {offsets = [0, 8], sizes = [16, 8], strides = [1, 1]} : vector<16x32xf32> to vector<16x8xf32>
    %32 = arith.truncf %31 : vector<16x8xf32> to vector<16x8xbf16>
    %cst_9 = arith.constant dense<0.000000e+00> : vector<8x16xf32>
    %33 = tpu.matmul %28, %30, %cst_9 {dimension_numbers = #tpu.dot_dimension_numbers<[1], [1], [0], [0], [0, 0, 1, 0], [], []>} : vector<8x8xbf16>, vector<16x8xbf16>, vector<8x16xf32> -> vector<8x16xf32>
    %cst_10 = arith.constant 0.353553385 : f32
    %34 = vector.broadcast %cst_10 : f32 to vector<8x16xf32>
    %35 = arith.mulf %33, %34 : vector<8x16xf32>
    %cst_11 = arith.constant dense<0xFF800000> : vector<8xf32>
    %36 = vector.multi_reduction <maximumf>, %35, %cst_11 [1] : vector<8x16xf32> to vector<8xf32>
    %37 = vector.shape_cast %36 : vector<8xf32> to vector<8x1xf32>
    %38 = vector.broadcast %37 : vector<8x1xf32> to vector<8x16xf32>
    %39 = arith.subf %35, %38 : vector<8x16xf32>
    %40 = math.exp %39 : vector<8x16xf32>
    %cst_12 = arith.constant dense<0.000000e+00> : vector<8xf32>
    %41 = vector.multi_reduction <add>, %40, %cst_12 [1] : vector<8x16xf32> to vector<8xf32>
    %42 = vector.shape_cast %41 : vector<8xf32> to vector<8x1xf32>
    %43 = tpu.reciprocal %42 {approx = true} : vector<8x1xf32> -> vector<8x1xf32>
    %44 = vector.broadcast %43 : vector<8x1xf32> to vector<8x16xf32>
    %45 = arith.mulf %40, %44 : vector<8x16xf32>
    %46 = arith.truncf %45 : vector<8x16xf32> to vector<8x16xbf16>
    %cst_13 = arith.constant dense<0.000000e+00> : vector<8x8xf32>
    %47 = tpu.matmul %46, %32, %cst_13 {dimension_numbers = #tpu.dot_dimension_numbers<[1], [0], [0], [1], [0, 0, 1, 1], [], []>} : vector<8x16xbf16>, vector<16x8xbf16>, vector<8x8xf32> -> vector<8x8xf32>
    %48 = vector.extract_strided_slice %1 {offsets = [0, 16], sizes = [8, 8], strides = [1, 1]} : vector<8x32xf32> to vector<8x8xf32>
    %49 = arith.truncf %48 : vector<8x8xf32> to vector<8x8xbf16>
    %50 = vector.extract_strided_slice %4 {offsets = [0, 16], sizes = [16, 8], strides = [1, 1]} : vector<16x32xf32> to vector<16x8xf32>
    %51 = arith.truncf %50 : vector<16x8xf32> to vector<16x8xbf16>
    %52 = vector.extract_strided_slice %5 {offsets = [0, 16], sizes = [16, 8], strides = [1, 1]} : vector<16x32xf32> to vector<16x8xf32>
    %53 = arith.truncf %52 : vector<16x8xf32> to vector<16x8xbf16>
    %cst_14 = arith.constant dense<0.000000e+00> : vector<8x16xf32>
    %54 = tpu.matmul %49, %51, %cst_14 {dimension_numbers = #tpu.dot_dimension_numbers<[1], [1], [0], [0], [0, 0, 1, 0], [], []>} : vector<8x8xbf16>, vector<16x8xbf16>, vector<8x16xf32> -> vector<8x16xf32>
    %cst_15 = arith.constant 0.353553385 : f32
    %55 = vector.broadcast %cst_15 : f32 to vector<8x16xf32>
    %56 = arith.mulf %54, %55 : vector<8x16xf32>
    %cst_16 = arith.constant dense<0xFF800000> : vector<8xf32>
    %57 = vector.multi_reduction <maximumf>, %56, %cst_16 [1] : vector<8x16xf32> to vector<8xf32>
    %58 = vector.shape_cast %57 : vector<8xf32> to vector<8x1xf32>
    %59 = vector.broadcast %58 : vector<8x1xf32> to vector<8x16xf32>
    %60 = arith.subf %56, %59 : vector<8x16xf32>
    %61 = math.exp %60 : vector<8x16xf32>
    %cst_17 = arith.constant dense<0.000000e+00> : vector<8xf32>
    %62 = vector.multi_reduction <add>, %61, %cst_17 [1] : vector<8x16xf32> to vector<8xf32>
    %63 = vector.shape_cast %62 : vector<8xf32> to vector<8x1xf32>
    %64 = tpu.reciprocal %63 {approx = true} : vector<8x1xf32> -> vector<8x1xf32>
    %65 = vector.broadcast %64 : vector<8x1xf32> to vector<8x16xf32>
    %66 = arith.mulf %61, %65 : vector<8x16xf32>
    %67 = arith.truncf %66 : vector<8x16xf32> to vector<8x16xbf16>
    %cst_18 = arith.constant dense<0.000000e+00> : vector<8x8xf32>
    %68 = tpu.matmul %67, %53, %cst_18 {dimension_numbers = #tpu.dot_dimension_numbers<[1], [0], [0], [1], [0, 0, 1, 1], [], []>} : vector<8x16xbf16>, vector<16x8xbf16>, vector<8x8xf32> -> vector<8x8xf32>
    %69 = vector.extract_strided_slice %1 {offsets = [0, 24], sizes = [8, 8], strides = [1, 1]} : vector<8x32xf32> to vector<8x8xf32>
    %70 = arith.truncf %69 : vector<8x8xf32> to vector<8x8xbf16>
    %71 = vector.extract_strided_slice %4 {offsets = [0, 24], sizes = [16, 8], strides = [1, 1]} : vector<16x32xf32> to vector<16x8xf32>
    %72 = arith.truncf %71 : vector<16x8xf32> to vector<16x8xbf16>
    %73 = vector.extract_strided_slice %5 {offsets = [0, 24], sizes = [16, 8], strides = [1, 1]} : vector<16x32xf32> to vector<16x8xf32>
    %74 = arith.truncf %73 : vector<16x8xf32> to vector<16x8xbf16>
    %cst_19 = arith.constant dense<0.000000e+00> : vector<8x16xf32>
    %75 = tpu.matmul %70, %72, %cst_19 {dimension_numbers = #tpu.dot_dimension_numbers<[1], [1], [0], [0], [0, 0, 1, 0], [], []>} : vector<8x8xbf16>, vector<16x8xbf16>, vector<8x16xf32> -> vector<8x16xf32>
    %cst_20 = arith.constant 0.353553385 : f32
    %76 = vector.broadcast %cst_20 : f32 to vector<8x16xf32>
    %77 = arith.mulf %75, %76 : vector<8x16xf32>
    %cst_21 = arith.constant dense<0xFF800000> : vector<8xf32>
    %78 = vector.multi_reduction <maximumf>, %77, %cst_21 [1] : vector<8x16xf32> to vector<8xf32>
    %79 = vector.shape_cast %78 : vector<8xf32> to vector<8x1xf32>
    %80 = vector.broadcast %79 : vector<8x1xf32> to vector<8x16xf32>
    %81 = arith.subf %77, %80 : vector<8x16xf32>
    %82 = math.exp %81 : vector<8x16xf32>
    %cst_22 = arith.constant dense<0.000000e+00> : vector<8xf32>
    %83 = vector.multi_reduction <add>, %82, %cst_22 [1] : vector<8x16xf32> to vector<8xf32>
    %84 = vector.shape_cast %83 : vector<8xf32> to vector<8x1xf32>
    %85 = tpu.reciprocal %84 {approx = true} : vector<8x1xf32> -> vector<8x1xf32>
    %86 = vector.broadcast %85 : vector<8x1xf32> to vector<8x16xf32>
    %87 = arith.mulf %82, %86 : vector<8x16xf32>
    %88 = arith.truncf %87 : vector<8x16xf32> to vector<8x16xbf16>
    %cst_23 = arith.constant dense<0.000000e+00> : vector<8x8xf32>
    %89 = tpu.matmul %88, %74, %cst_23 {dimension_numbers = #tpu.dot_dimension_numbers<[1], [0], [0], [1], [0, 0, 1, 1], [], []>} : vector<8x16xbf16>, vector<16x8xbf16>, vector<8x8xf32> -> vector<8x8xf32>
    %90 = tpu.concatenate %26, %47, %68, %89 in 1 : vector<8x8xf32>, vector<8x8xf32>, vector<8x8xf32>, vector<8x8xf32> -> vector<8x32xf32>
    %c0_24 = arith.constant 0 : index
    %c0_25 = arith.constant 0 : index
    %c0_26 = arith.constant 0 : index
    %91 = vector.load %arg3[%c0_24, %c0_25, %c0_26] : memref<1x8x32xf32, #tpu.memory_space<vmem>>, vector<1x8x32xf32>
    %92 = vector.shape_cast %91 : vector<1x8x32xf32> to vector<8x32xf32>
    %93 = vector.shape_cast %90 : vector<8x32xf32> to vector<1x8x32xf32>
    tpu.vector_store %arg3[%c0_24, %c0_25, %c0_26], %93 {strides = array<i32>} : memref<1x8x32xf32, #tpu.memory_space<vmem>>, vector<1x8x32xf32>,
    return
  }
  func.func @transform_0(%arg0: i32) -> (i32, i32, i32) {
    %c0_i32 = arith.constant 0 : i32
    %c0_i32_0 = arith.constant 0 : i32
    %c0_i32_1 = arith.constant 0 : i32
    return %arg0, %c0_i32, %c0_i32_0 : i32, i32, i32
  }
  func.func @transform_1(%arg0: i32) -> (i32, i32, i32) {
    %c0_i32 = arith.constant 0 : i32
    %c0_i32_0 = arith.constant 0 : i32
    %c0_i32_1 = arith.constant 0 : i32
    return %arg0, %c0_i32, %c0_i32_0 : i32, i32, i32
  }
  func.func @transform_2(%arg0: i32) -> (i32, i32, i32) {
    %c0_i32 = arith.constant 0 : i32
    %c0_i32_0 = arith.constant 0 : i32
    %c0_i32_1 = arith.constant 0 : i32
    return %arg0, %c0_i32, %c0_i32_0 : i32, i32, i32
  }
}

module attributes {stable_mosaic.version = 11 : i64} {
  func.func @_linear_kernel(%arg0: i32, %arg1: i32, %arg2: i32, %arg3: memref<16x32xf32, #tpu.memory_space<vmem>>, %arg4: memref<32x32xbf16, #tpu.memory_space<vmem>>, %arg5: memref<1x32xf32, #tpu.memory_space<vmem>>, %arg6: memref<16x32xf32, #tpu.memory_space<vmem>>, %arg7: memref<16x32xf32, #tpu.memory_space<vmem>>) attributes {dimension_semantics = [#tpu.dimension_semantics<parallel>, #tpu.dimension_semantics<parallel>, #tpu.dimension_semantics<arbitrary>], iteration_bounds = array<i64: 1, 1, 1>, scalar_prefetch = 0 : i64, scratch_operands = 1 : i64, tpu.core_type = #tpu.core_type<tc>, window_params = [{transform_indices = @transform_0, window_bounds = array<i64: 16, 32>}, {transform_indices = @transform_1, window_bounds = array<i64: 32, 32>}, {transform_indices = @transform_2, window_bounds = array<i64: 1, 32>}, {transform_indices = @transform_3, window_bounds = array<i64: 16, 32>}]} {
    %c0_i32 = arith.constant 0 : i32
    %0 = arith.cmpi eq, %arg2, %c0_i32 : i32
    %1 = arith.extui %0 : i1 to i32
    %c0_i32_0 = arith.constant 0 : i32
    %2 = arith.cmpi ne, %1, %c0_i32_0 : i32
    scf.if %2 {
      %cst_10 = arith.constant 0.000000e+00 : f32
      %13 = vector.broadcast %cst_10 : f32 to vector<16x32xf32>
      %c0_11 = arith.constant 0 : index
      %c0_12 = arith.constant 0 : index
      %14 = vector.load %arg7[%c0_11, %c0_12] : memref<16x32xf32, #tpu.memory_space<vmem>>, vector<16x32xf32>
      tpu.vector_store %arg7[%c0_11, %c0_12], %13 {strides = array<i32>} : memref<16x32xf32, #tpu.memory_space<vmem>>, vector<16x32xf32>,
    } else {
    }
    %c0 = arith.constant 0 : index
    %c0_1 = arith.constant 0 : index
    %3 = vector.load %arg7[%c0, %c0_1] : memref<16x32xf32, #tpu.memory_space<vmem>>, vector<16x32xf32>
    %c0_2 = arith.constant 0 : index
    %c0_3 = arith.constant 0 : index
    %4 = vector.load %arg3[%c0_2, %c0_3] : memref<16x32xf32, #tpu.memory_space<vmem>>, vector<16x32xf32>
    %5 = arith.truncf %4 : vector<16x32xf32> to vector<16x32xbf16>
    %c0_4 = arith.constant 0 : index
    %c0_5 = arith.constant 0 : index
    %6 = vector.load %arg4[%c0_4, %c0_5] : memref<32x32xbf16, #tpu.memory_space<vmem>>, vector<32x32xbf16>
    %cst = arith.constant dense<0.000000e+00> : vector<16x32xf32>
    %7 = tpu.matmul %5, %6, %cst {dimension_numbers = #tpu.dot_dimension_numbers<[1], [0], [0], [1], [0, 0, 1, 1], [], []>} : vector<16x32xbf16>, vector<32x32xbf16>, vector<16x32xf32> -> vector<16x32xf32>
    %8 = arith.addf %3, %7 : vector<16x32xf32>
    %c0_6 = arith.constant 0 : index
    %c0_7 = arith.constant 0 : index
    %9 = vector.load %arg7[%c0_6, %c0_7] : memref<16x32xf32, #tpu.memory_space<vmem>>, vector<16x32xf32>
    tpu.vector_store %arg7[%c0_6, %c0_7], %8 {strides = array<i32>} : memref<16x32xf32, #tpu.memory_space<vmem>>, vector<16x32xf32>,
    %c0_i32_8 = arith.constant 0 : i32
    %10 = arith.cmpi eq, %arg2, %c0_i32_8 : i32
    %11 = arith.extui %10 : i1 to i32
    %c0_i32_9 = arith.constant 0 : i32
    %12 = arith.cmpi ne, %11, %c0_i32_9 : i32
    scf.if %12 {
      %c0_10 = arith.constant 0 : index
      %c0_11 = arith.constant 0 : index
      %13 = vector.load %arg7[%c0_10, %c0_11] : memref<16x32xf32, #tpu.memory_space<vmem>>, vector<16x32xf32>
      %c0_12 = arith.constant 0 : index
      %c0_13 = arith.constant 0 : index
      %14 = vector.load %arg5[%c0_12, %c0_13] : memref<1x32xf32, #tpu.memory_space<vmem>>, vector<1x32xf32>
      %15 = vector.broadcast %14 : vector<1x32xf32> to vector<16x32xf32>
      %16 = arith.addf %13, %15 : vector<16x32xf32>
      %c0_14 = arith.constant 0 : index
      %c0_15 = arith.constant 0 : index
      %17 = vector.load %arg6[%c0_14, %c0_15] : memref<16x32xf32, #tpu.memory_space<vmem>>, vector<16x32xf32>
      tpu.vector_store %arg6[%c0_14, %c0_15], %16 {strides = array<i32>} : memref<16x32xf32, #tpu.memory_space<vmem>>, vector<16x32xf32>,
    } else {
    }
    return
  }
  func.func @transform_0(%arg0: i32, %arg1: i32, %arg2: i32) -> (i32, i32) {
    %c0_i32 = arith.constant 0 : i32
    return %arg0, %arg2 : i32, i32
  }
  func.func @transform_1(%arg0: i32, %arg1: i32, %arg2: i32) -> (i32, i32) {
    %c0_i32 = arith.constant 0 : i32
    return %arg2, %arg1 : i32, i32
  }
  func.func @transform_2(%arg0: i32, %arg1: i32, %arg2: i32) -> (i32, i32) {
    %c0_i32 = arith.constant 0 : i32
    %c0_i32_0 = arith.constant 0 : i32
    return %c0_i32, %arg1 : i32, i32
  }
  func.func @transform_3(%arg0: i32, %arg1: i32, %arg2: i32) -> (i32, i32) {
    %c0_i32 = arith.constant 0 : i32
    return %arg0, %arg1 : i32, i32
  }
}

module attributes {stable_mosaic.version = 11 : i64} {
  func.func @_linear_res_ln_kernel(%arg0: i32, %arg1: memref<16x32xf32, #tpu.memory_space<vmem>>, %arg2: memref<32x32xbf16, #tpu.memory_space<vmem>>, %arg3: memref<1x32xf32, #tpu.memory_space<vmem>>, %arg4: memref<16x32xf32, #tpu.memory_space<vmem>>, %arg5: memref<1x32xf32, #tpu.memory_space<vmem>>, %arg6: memref<1x32xf32, #tpu.memory_space<vmem>>, %arg7: memref<16x32xf32, #tpu.memory_space<vmem>>) attributes {dimension_semantics = [#tpu.dimension_semantics<parallel>], iteration_bounds = array<i64: 1>, scalar_prefetch = 0 : i64, scratch_operands = 0 : i64, tpu.core_type = #tpu.core_type<tc>, window_params = [{transform_indices = @transform_0, window_bounds = array<i64: 16, 32>}, {pipeline_mode = #tpu.pipeline_mode<synchronous>, transform_indices = @transform_1, window_bounds = array<i64: 32, 32>}, {pipeline_mode = #tpu.pipeline_mode<synchronous>, transform_indices = @transform_2, window_bounds = array<i64: 1, 32>}, {transform_indices = @transform_3, window_bounds = array<i64: 16, 32>}, {pipeline_mode = #tpu.pipeline_mode<synchronous>, transform_indices = @transform_4, window_bounds = array<i64: 1, 32>}, {pipeline_mode = #tpu.pipeline_mode<synchronous>, transform_indices = @transform_5, window_bounds = array<i64: 1, 32>}, {transform_indices = @transform_6, window_bounds = array<i64: 16, 32>}]} {
    %c0 = arith.constant 0 : index
    %c0_0 = arith.constant 0 : index
    %0 = vector.load %arg1[%c0, %c0_0] : memref<16x32xf32, #tpu.memory_space<vmem>>, vector<16x32xf32>
    %1 = arith.truncf %0 : vector<16x32xf32> to vector<16x32xbf16>
    %c0_1 = arith.constant 0 : index
    %c0_2 = arith.constant 0 : index
    %2 = vector.load %arg2[%c0_1, %c0_2] : memref<32x32xbf16, #tpu.memory_space<vmem>>, vector<32x32xbf16>
    %cst = arith.constant dense<0.000000e+00> : vector<16x32xf32>
    %3 = tpu.matmul %1, %2, %cst {dimension_numbers = #tpu.dot_dimension_numbers<[1], [0], [0], [1], [0, 0, 1, 1], [], []>} : vector<16x32xbf16>, vector<32x32xbf16>, vector<16x32xf32> -> vector<16x32xf32>
    %c0_3 = arith.constant 0 : index
    %c0_4 = arith.constant 0 : index
    %4 = vector.load %arg3[%c0_3, %c0_4] : memref<1x32xf32, #tpu.memory_space<vmem>>, vector<1x32xf32>
    %5 = vector.broadcast %4 : vector<1x32xf32> to vector<16x32xf32>
    %6 = arith.addf %3, %5 : vector<16x32xf32>
    %c0_5 = arith.constant 0 : index
    %c0_6 = arith.constant 0 : index
    %7 = vector.load %arg4[%c0_5, %c0_6] : memref<16x32xf32, #tpu.memory_space<vmem>>, vector<16x32xf32>
    %8 = arith.addf %6, %7 : vector<16x32xf32>
    %c0_7 = arith.constant 0 : index
    %c0_8 = arith.constant 0 : index
    %9 = vector.load %arg5[%c0_7, %c0_8] : memref<1x32xf32, #tpu.memory_space<vmem>>, vector<1x32xf32>
    %c0_9 = arith.constant 0 : index
    %c0_10 = arith.constant 0 : index
    %10 = vector.load %arg6[%c0_9, %c0_10] : memref<1x32xf32, #tpu.memory_space<vmem>>, vector<1x32xf32>
    %cst_11 = arith.constant dense<0.000000e+00> : vector<16xf32>
    %11 = vector.multi_reduction <add>, %8, %cst_11 [1] : vector<16x32xf32> to vector<16xf32>
    %12 = vector.shape_cast %11 : vector<16xf32> to vector<16x1xf32>
    %13 = arith.mulf %8, %8 : vector<16x32xf32>
    %cst_12 = arith.constant dense<0.000000e+00> : vector<16xf32>
    %14 = vector.multi_reduction <add>, %13, %cst_12 [1] : vector<16x32xf32> to vector<16xf32>
    %15 = vector.shape_cast %14 : vector<16xf32> to vector<16x1xf32>
    %cst_13 = arith.constant 3.125000e-02 : f32
    %16 = vector.broadcast %cst_13 : f32 to vector<16x1xf32>
    %17 = arith.mulf %12, %16 : vector<16x1xf32>
    %cst_14 = arith.constant 3.125000e-02 : f32
    %18 = vector.broadcast %cst_14 : f32 to vector<16x1xf32>
    %19 = arith.mulf %15, %18 : vector<16x1xf32>
    %20 = arith.mulf %17, %17 : vector<16x1xf32>
    %21 = arith.subf %19, %20 : vector<16x1xf32>
    %cst_15 = arith.constant 9.99999974E-6 : f32
    %22 = vector.broadcast %cst_15 : f32 to vector<16x1xf32>
    %23 = arith.addf %21, %22 : vector<16x1xf32>
    %24 = math.rsqrt %23 : vector<16x1xf32>
    %25 = vector.broadcast %17 : vector<16x1xf32> to vector<16x32xf32>
    %26 = arith.subf %8, %25 : vector<16x32xf32>
    %27 = vector.broadcast %24 : vector<16x1xf32> to vector<16x32xf32>
    %28 = arith.mulf %26, %27 : vector<16x32xf32>
    %29 = vector.broadcast %9 : vector<1x32xf32> to vector<16x32xf32>
    %30 = arith.mulf %28, %29 : vector<16x32xf32>
    %31 = vector.broadcast %10 : vector<1x32xf32> to vector<16x32xf32>
    %32 = arith.addf %30, %31 : vector<16x32xf32>
    %c0_16 = arith.constant 0 : index
    %c0_17 = arith.constant 0 : index
    %33 = vector.load %arg7[%c0_16, %c0_17] : memref<16x32xf32, #tpu.memory_space<vmem>>, vector<16x32xf32>
    tpu.vector_store %arg7[%c0_16, %c0_17], %32 {strides = array<i32>} : memref<16x32xf32, #tpu.memory_space<vmem>>, vector<16x32xf32>,
    return
  }
  func.func @transform_0(%arg0: i32) -> (i32, i32) {
    %c0_i32 = arith.constant 0 : i32
    %c0_i32_0 = arith.constant 0 : i32
    return %arg0, %c0_i32 : i32, i32
  }
  func.func @transform_1(%arg0: i32) -> (i32, i32) {
    %c0_i32 = arith.constant 0 : i32
    %c0_i32_0 = arith.constant 0 : i32
    %c0_i32_1 = arith.constant 0 : i32
    return %c0_i32, %c0_i32_0 : i32, i32
  }
  func.func @transform_2(%arg0: i32) -> (i32, i32) {
    %c0_i32 = arith.constant 0 : i32
    %c0_i32_0 = arith.constant 0 : i32
    %c0_i32_1 = arith.constant 0 : i32
    return %c0_i32, %c0_i32_0 : i32, i32
  }
  func.func @transform_3(%arg0: i32) -> (i32, i32) {
    %c0_i32 = arith.constant 0 : i32
    %c0_i32_0 = arith.constant 0 : i32
    return %arg0, %c0_i32 : i32, i32
  }
  func.func @transform_4(%arg0: i32) -> (i32, i32) {
    %c0_i32 = arith.constant 0 : i32
    %c0_i32_0 = arith.constant 0 : i32
    %c0_i32_1 = arith.constant 0 : i32
    return %c0_i32, %c0_i32_0 : i32, i32
  }
  func.func @transform_5(%arg0: i32) -> (i32, i32) {
    %c0_i32 = arith.constant 0 : i32
    %c0_i32_0 = arith.constant 0 : i32
    %c0_i32_1 = arith.constant 0 : i32
    return %c0_i32, %c0_i32_0 : i32, i32
  }
  func.func @transform_6(%arg0: i32) -> (i32, i32) {
    %c0_i32 = arith.constant 0 : i32
    %c0_i32_0 = arith.constant 0 : i32
    return %arg0, %c0_i32 : i32, i32
  }
}

module attributes {stable_mosaic.version = 11 : i64} {
  func.func @_linear_kernel(%arg0: i32, %arg1: i32, %arg2: i32, %arg3: memref<16x32xf32, #tpu.memory_space<vmem>>, %arg4: memref<32x96xbf16, #tpu.memory_space<vmem>>, %arg5: memref<1x96xf32, #tpu.memory_space<vmem>>, %arg6: memref<16x96xf32, #tpu.memory_space<vmem>>, %arg7: memref<16x96xf32, #tpu.memory_space<vmem>>) attributes {dimension_semantics = [#tpu.dimension_semantics<parallel>, #tpu.dimension_semantics<parallel>, #tpu.dimension_semantics<arbitrary>], iteration_bounds = array<i64: 1, 1, 1>, scalar_prefetch = 0 : i64, scratch_operands = 1 : i64, tpu.core_type = #tpu.core_type<tc>, window_params = [{transform_indices = @transform_0, window_bounds = array<i64: 16, 32>}, {transform_indices = @transform_1, window_bounds = array<i64: 32, 96>}, {transform_indices = @transform_2, window_bounds = array<i64: 1, 96>}, {transform_indices = @transform_3, window_bounds = array<i64: 16, 96>}]} {
    %c0_i32 = arith.constant 0 : i32
    %0 = arith.cmpi eq, %arg2, %c0_i32 : i32
    %1 = arith.extui %0 : i1 to i32
    %c0_i32_0 = arith.constant 0 : i32
    %2 = arith.cmpi ne, %1, %c0_i32_0 : i32
    scf.if %2 {
      %cst_10 = arith.constant 0.000000e+00 : f32
      %13 = vector.broadcast %cst_10 : f32 to vector<16x96xf32>
      %c0_11 = arith.constant 0 : index
      %c0_12 = arith.constant 0 : index
      %14 = vector.load %arg7[%c0_11, %c0_12] : memref<16x96xf32, #tpu.memory_space<vmem>>, vector<16x96xf32>
      tpu.vector_store %arg7[%c0_11, %c0_12], %13 {strides = array<i32>} : memref<16x96xf32, #tpu.memory_space<vmem>>, vector<16x96xf32>,
    } else {
    }
    %c0 = arith.constant 0 : index
    %c0_1 = arith.constant 0 : index
    %3 = vector.load %arg7[%c0, %c0_1] : memref<16x96xf32, #tpu.memory_space<vmem>>, vector<16x96xf32>
    %c0_2 = arith.constant 0 : index
    %c0_3 = arith.constant 0 : index
    %4 = vector.load %arg3[%c0_2, %c0_3] : memref<16x32xf32, #tpu.memory_space<vmem>>, vector<16x32xf32>
    %5 = arith.truncf %4 : vector<16x32xf32> to vector<16x32xbf16>
    %c0_4 = arith.constant 0 : index
    %c0_5 = arith.constant 0 : index
    %6 = vector.load %arg4[%c0_4, %c0_5] : memref<32x96xbf16, #tpu.memory_space<vmem>>, vector<32x96xbf16>
    %cst = arith.constant dense<0.000000e+00> : vector<16x96xf32>
    %7 = tpu.matmul %5, %6, %cst {dimension_numbers = #tpu.dot_dimension_numbers<[1], [0], [0], [1], [0, 0, 1, 1], [], []>} : vector<16x32xbf16>, vector<32x96xbf16>, vector<16x96xf32> -> vector<16x96xf32>
    %8 = arith.addf %3, %7 : vector<16x96xf32>
    %c0_6 = arith.constant 0 : index
    %c0_7 = arith.constant 0 : index
    %9 = vector.load %arg7[%c0_6, %c0_7] : memref<16x96xf32, #tpu.memory_space<vmem>>, vector<16x96xf32>
    tpu.vector_store %arg7[%c0_6, %c0_7], %8 {strides = array<i32>} : memref<16x96xf32, #tpu.memory_space<vmem>>, vector<16x96xf32>,
    %c0_i32_8 = arith.constant 0 : i32
    %10 = arith.cmpi eq, %arg2, %c0_i32_8 : i32
    %11 = arith.extui %10 : i1 to i32
    %c0_i32_9 = arith.constant 0 : i32
    %12 = arith.cmpi ne, %11, %c0_i32_9 : i32
    scf.if %12 {
      %c0_10 = arith.constant 0 : index
      %c0_11 = arith.constant 0 : index
      %13 = vector.load %arg7[%c0_10, %c0_11] : memref<16x96xf32, #tpu.memory_space<vmem>>, vector<16x96xf32>
      %c0_12 = arith.constant 0 : index
      %c0_13 = arith.constant 0 : index
      %14 = vector.load %arg5[%c0_12, %c0_13] : memref<1x96xf32, #tpu.memory_space<vmem>>, vector<1x96xf32>
      %15 = vector.broadcast %14 : vector<1x96xf32> to vector<16x96xf32>
      %16 = arith.addf %13, %15 : vector<16x96xf32>
      %c0_14 = arith.constant 0 : index
      %c0_15 = arith.constant 0 : index
      %17 = vector.load %arg6[%c0_14, %c0_15] : memref<16x96xf32, #tpu.memory_space<vmem>>, vector<16x96xf32>
      tpu.vector_store %arg6[%c0_14, %c0_15], %16 {strides = array<i32>} : memref<16x96xf32, #tpu.memory_space<vmem>>, vector<16x96xf32>,
    } else {
    }
    return
  }
  func.func @transform_0(%arg0: i32, %arg1: i32, %arg2: i32) -> (i32, i32) {
    %c0_i32 = arith.constant 0 : i32
    return %arg0, %arg2 : i32, i32
  }
  func.func @transform_1(%arg0: i32, %arg1: i32, %arg2: i32) -> (i32, i32) {
    %c0_i32 = arith.constant 0 : i32
    return %arg2, %arg1 : i32, i32
  }
  func.func @transform_2(%arg0: i32, %arg1: i32, %arg2: i32) -> (i32, i32) {
    %c0_i32 = arith.constant 0 : i32
    %c0_i32_0 = arith.constant 0 : i32
    return %c0_i32, %arg1 : i32, i32
  }
  func.func @transform_3(%arg0: i32, %arg1: i32, %arg2: i32) -> (i32, i32) {
    %c0_i32 = arith.constant 0 : i32
    return %arg0, %arg1 : i32, i32
  }
}

module attributes {stable_mosaic.version = 11 : i64} {
  func.func @_self_attn_kernel(%arg0: i32, %arg1: memref<1x8x96xf32, #tpu.memory_space<vmem>>, %arg2: memref<1x8x32xf32, #tpu.memory_space<vmem>>) attributes {dimension_semantics = [#tpu.dimension_semantics<parallel>], iteration_bounds = array<i64: 2>, scalar_prefetch = 0 : i64, scratch_operands = 0 : i64, tpu.core_type = #tpu.core_type<tc>, window_params = [{transform_indices = @transform_0, window_bounds = array<i64: 1, 8, 96>}, {transform_indices = @transform_1, window_bounds = array<i64: 1, 8, 32>}]} {
    %c0 = arith.constant 0 : index
    %c0_0 = arith.constant 0 : index
    %c0_1 = arith.constant 0 : index
    %0 = vector.load %arg1[%c0, %c0_0, %c0_1] : memref<1x8x96xf32, #tpu.memory_space<vmem>>, vector<1x8x96xf32>
    %1 = vector.shape_cast %0 : vector<1x8x96xf32> to vector<8x96xf32>
    %2 = vector.extract_strided_slice %1 {offsets = [0, 0], sizes = [8, 32], strides = [1, 1]} : vector<8x96xf32> to vector<8x32xf32>
    %3 = vector.extract_strided_slice %1 {offsets = [0, 32], sizes = [8, 32], strides = [1, 1]} : vector<8x96xf32> to vector<8x32xf32>
    %4 = vector.extract_strided_slice %1 {offsets = [0, 64], sizes = [8, 32], strides = [1, 1]} : vector<8x96xf32> to vector<8x32xf32>
    %5 = vector.extract_strided_slice %2 {offsets = [0, 0], sizes = [8, 8], strides = [1, 1]} : vector<8x32xf32> to vector<8x8xf32>
    %6 = arith.truncf %5 : vector<8x8xf32> to vector<8x8xbf16>
    %7 = vector.extract_strided_slice %3 {offsets = [0, 0], sizes = [8, 8], strides = [1, 1]} : vector<8x32xf32> to vector<8x8xf32>
    %8 = arith.truncf %7 : vector<8x8xf32> to vector<8x8xbf16>
    %9 = vector.extract_strided_slice %4 {offsets = [0, 0], sizes = [8, 8], strides = [1, 1]} : vector<8x32xf32> to vector<8x8xf32>
    %10 = arith.truncf %9 : vector<8x8xf32> to vector<8x8xbf16>
    %cst = arith.constant dense<0.000000e+00> : vector<8x8xf32>
    %11 = tpu.matmul %6, %8, %cst {dimension_numbers = #tpu.dot_dimension_numbers<[1], [1], [0], [0], [0, 0, 1, 0], [], []>} : vector<8x8xbf16>, vector<8x8xbf16>, vector<8x8xf32> -> vector<8x8xf32>
    %cst_2 = arith.constant 0.353553385 : f32
    %12 = vector.broadcast %cst_2 : f32 to vector<8x8xf32>
    %13 = arith.mulf %11, %12 : vector<8x8xf32>
    %cst_3 = arith.constant dense<0xFF800000> : vector<8xf32>
    %14 = vector.multi_reduction <maximumf>, %13, %cst_3 [1] : vector<8x8xf32> to vector<8xf32>
    %15 = vector.shape_cast %14 : vector<8xf32> to vector<8x1xf32>
    %16 = vector.broadcast %15 : vector<8x1xf32> to vector<8x8xf32>
    %17 = arith.subf %13, %16 : vector<8x8xf32>
    %18 = math.exp %17 : vector<8x8xf32>
    %cst_4 = arith.constant dense<0.000000e+00> : vector<8xf32>
    %19 = vector.multi_reduction <add>, %18, %cst_4 [1] : vector<8x8xf32> to vector<8xf32>
    %20 = vector.shape_cast %19 : vector<8xf32> to vector<8x1xf32>
    %21 = tpu.reciprocal %20 {approx = true} : vector<8x1xf32> -> vector<8x1xf32>
    %22 = vector.broadcast %21 : vector<8x1xf32> to vector<8x8xf32>
    %23 = arith.mulf %18, %22 : vector<8x8xf32>
    %24 = arith.truncf %23 : vector<8x8xf32> to vector<8x8xbf16>
    %cst_5 = arith.constant dense<0.000000e+00> : vector<8x8xf32>
    %25 = tpu.matmul %24, %10, %cst_5 {dimension_numbers = #tpu.dot_dimension_numbers<[1], [0], [0], [1], [0, 0, 1, 1], [], []>} : vector<8x8xbf16>, vector<8x8xbf16>, vector<8x8xf32> -> vector<8x8xf32>
    %26 = vector.extract_strided_slice %2 {offsets = [0, 8], sizes = [8, 8], strides = [1, 1]} : vector<8x32xf32> to vector<8x8xf32>
    %27 = arith.truncf %26 : vector<8x8xf32> to vector<8x8xbf16>
    %28 = vector.extract_strided_slice %3 {offsets = [0, 8], sizes = [8, 8], strides = [1, 1]} : vector<8x32xf32> to vector<8x8xf32>
    %29 = arith.truncf %28 : vector<8x8xf32> to vector<8x8xbf16>
    %30 = vector.extract_strided_slice %4 {offsets = [0, 8], sizes = [8, 8], strides = [1, 1]} : vector<8x32xf32> to vector<8x8xf32>
    %31 = arith.truncf %30 : vector<8x8xf32> to vector<8x8xbf16>
    %cst_6 = arith.constant dense<0.000000e+00> : vector<8x8xf32>
    %32 = tpu.matmul %27, %29, %cst_6 {dimension_numbers = #tpu.dot_dimension_numbers<[1], [1], [0], [0], [0, 0, 1, 0], [], []>} : vector<8x8xbf16>, vector<8x8xbf16>, vector<8x8xf32> -> vector<8x8xf32>
    %cst_7 = arith.constant 0.353553385 : f32
    %33 = vector.broadcast %cst_7 : f32 to vector<8x8xf32>
    %34 = arith.mulf %32, %33 : vector<8x8xf32>
    %cst_8 = arith.constant dense<0xFF800000> : vector<8xf32>
    %35 = vector.multi_reduction <maximumf>, %34, %cst_8 [1] : vector<8x8xf32> to vector<8xf32>
    %36 = vector.shape_cast %35 : vector<8xf32> to vector<8x1xf32>
    %37 = vector.broadcast %36 : vector<8x1xf32> to vector<8x8xf32>
    %38 = arith.subf %34, %37 : vector<8x8xf32>
    %39 = math.exp %38 : vector<8x8xf32>
    %cst_9 = arith.constant dense<0.000000e+00> : vector<8xf32>
    %40 = vector.multi_reduction <add>, %39, %cst_9 [1] : vector<8x8xf32> to vector<8xf32>
    %41 = vector.shape_cast %40 : vector<8xf32> to vector<8x1xf32>
    %42 = tpu.reciprocal %41 {approx = true} : vector<8x1xf32> -> vector<8x1xf32>
    %43 = vector.broadcast %42 : vector<8x1xf32> to vector<8x8xf32>
    %44 = arith.mulf %39, %43 : vector<8x8xf32>
    %45 = arith.truncf %44 : vector<8x8xf32> to vector<8x8xbf16>
    %cst_10 = arith.constant dense<0.000000e+00> : vector<8x8xf32>
    %46 = tpu.matmul %45, %31, %cst_10 {dimension_numbers = #tpu.dot_dimension_numbers<[1], [0], [0], [1], [0, 0, 1, 1], [], []>} : vector<8x8xbf16>, vector<8x8xbf16>, vector<8x8xf32> -> vector<8x8xf32>
    %47 = vector.extract_strided_slice %2 {offsets = [0, 16], sizes = [8, 8], strides = [1, 1]} : vector<8x32xf32> to vector<8x8xf32>
    %48 = arith.truncf %47 : vector<8x8xf32> to vector<8x8xbf16>
    %49 = vector.extract_strided_slice %3 {offsets = [0, 16], sizes = [8, 8], strides = [1, 1]} : vector<8x32xf32> to vector<8x8xf32>
    %50 = arith.truncf %49 : vector<8x8xf32> to vector<8x8xbf16>
    %51 = vector.extract_strided_slice %4 {offsets = [0, 16], sizes = [8, 8], strides = [1, 1]} : vector<8x32xf32> to vector<8x8xf32>
    %52 = arith.truncf %51 : vector<8x8xf32> to vector<8x8xbf16>
    %cst_11 = arith.constant dense<0.000000e+00> : vector<8x8xf32>
    %53 = tpu.matmul %48, %50, %cst_11 {dimension_numbers = #tpu.dot_dimension_numbers<[1], [1], [0], [0], [0, 0, 1, 0], [], []>} : vector<8x8xbf16>, vector<8x8xbf16>, vector<8x8xf32> -> vector<8x8xf32>
    %cst_12 = arith.constant 0.353553385 : f32
    %54 = vector.broadcast %cst_12 : f32 to vector<8x8xf32>
    %55 = arith.mulf %53, %54 : vector<8x8xf32>
    %cst_13 = arith.constant dense<0xFF800000> : vector<8xf32>
    %56 = vector.multi_reduction <maximumf>, %55, %cst_13 [1] : vector<8x8xf32> to vector<8xf32>
    %57 = vector.shape_cast %56 : vector<8xf32> to vector<8x1xf32>
    %58 = vector.broadcast %57 : vector<8x1xf32> to vector<8x8xf32>
    %59 = arith.subf %55, %58 : vector<8x8xf32>
    %60 = math.exp %59 : vector<8x8xf32>
    %cst_14 = arith.constant dense<0.000000e+00> : vector<8xf32>
    %61 = vector.multi_reduction <add>, %60, %cst_14 [1] : vector<8x8xf32> to vector<8xf32>
    %62 = vector.shape_cast %61 : vector<8xf32> to vector<8x1xf32>
    %63 = tpu.reciprocal %62 {approx = true} : vector<8x1xf32> -> vector<8x1xf32>
    %64 = vector.broadcast %63 : vector<8x1xf32> to vector<8x8xf32>
    %65 = arith.mulf %60, %64 : vector<8x8xf32>
    %66 = arith.truncf %65 : vector<8x8xf32> to vector<8x8xbf16>
    %cst_15 = arith.constant dense<0.000000e+00> : vector<8x8xf32>
    %67 = tpu.matmul %66, %52, %cst_15 {dimension_numbers = #tpu.dot_dimension_numbers<[1], [0], [0], [1], [0, 0, 1, 1], [], []>} : vector<8x8xbf16>, vector<8x8xbf16>, vector<8x8xf32> -> vector<8x8xf32>
    %68 = vector.extract_strided_slice %2 {offsets = [0, 24], sizes = [8, 8], strides = [1, 1]} : vector<8x32xf32> to vector<8x8xf32>
    %69 = arith.truncf %68 : vector<8x8xf32> to vector<8x8xbf16>
    %70 = vector.extract_strided_slice %3 {offsets = [0, 24], sizes = [8, 8], strides = [1, 1]} : vector<8x32xf32> to vector<8x8xf32>
    %71 = arith.truncf %70 : vector<8x8xf32> to vector<8x8xbf16>
    %72 = vector.extract_strided_slice %4 {offsets = [0, 24], sizes = [8, 8], strides = [1, 1]} : vector<8x32xf32> to vector<8x8xf32>
    %73 = arith.truncf %72 : vector<8x8xf32> to vector<8x8xbf16>
    %cst_16 = arith.constant dense<0.000000e+00> : vector<8x8xf32>
    %74 = tpu.matmul %69, %71, %cst_16 {dimension_numbers = #tpu.dot_dimension_numbers<[1], [1], [0], [0], [0, 0, 1, 0], [], []>} : vector<8x8xbf16>, vector<8x8xbf16>, vector<8x8xf32> -> vector<8x8xf32>
    %cst_17 = arith.constant 0.353553385 : f32
    %75 = vector.broadcast %cst_17 : f32 to vector<8x8xf32>
    %76 = arith.mulf %74, %75 : vector<8x8xf32>
    %cst_18 = arith.constant dense<0xFF800000> : vector<8xf32>
    %77 = vector.multi_reduction <maximumf>, %76, %cst_18 [1] : vector<8x8xf32> to vector<8xf32>
    %78 = vector.shape_cast %77 : vector<8xf32> to vector<8x1xf32>
    %79 = vector.broadcast %78 : vector<8x1xf32> to vector<8x8xf32>
    %80 = arith.subf %76, %79 : vector<8x8xf32>
    %81 = math.exp %80 : vector<8x8xf32>
    %cst_19 = arith.constant dense<0.000000e+00> : vector<8xf32>
    %82 = vector.multi_reduction <add>, %81, %cst_19 [1] : vector<8x8xf32> to vector<8xf32>
    %83 = vector.shape_cast %82 : vector<8xf32> to vector<8x1xf32>
    %84 = tpu.reciprocal %83 {approx = true} : vector<8x1xf32> -> vector<8x1xf32>
    %85 = vector.broadcast %84 : vector<8x1xf32> to vector<8x8xf32>
    %86 = arith.mulf %81, %85 : vector<8x8xf32>
    %87 = arith.truncf %86 : vector<8x8xf32> to vector<8x8xbf16>
    %cst_20 = arith.constant dense<0.000000e+00> : vector<8x8xf32>
    %88 = tpu.matmul %87, %73, %cst_20 {dimension_numbers = #tpu.dot_dimension_numbers<[1], [0], [0], [1], [0, 0, 1, 1], [], []>} : vector<8x8xbf16>, vector<8x8xbf16>, vector<8x8xf32> -> vector<8x8xf32>
    %89 = tpu.concatenate %25, %46, %67, %88 in 1 : vector<8x8xf32>, vector<8x8xf32>, vector<8x8xf32>, vector<8x8xf32> -> vector<8x32xf32>
    %c0_21 = arith.constant 0 : index
    %c0_22 = arith.constant 0 : index
    %c0_23 = arith.constant 0 : index
    %90 = vector.load %arg2[%c0_21, %c0_22, %c0_23] : memref<1x8x32xf32, #tpu.memory_space<vmem>>, vector<1x8x32xf32>
    %91 = vector.shape_cast %90 : vector<1x8x32xf32> to vector<8x32xf32>
    %92 = vector.shape_cast %89 : vector<8x32xf32> to vector<1x8x32xf32>
    tpu.vector_store %arg2[%c0_21, %c0_22, %c0_23], %92 {strides = array<i32>} : memref<1x8x32xf32, #tpu.memory_space<vmem>>, vector<1x8x32xf32>,
    return
  }
  func.func @transform_0(%arg0: i32) -> (i32, i32, i32) {
    %c0_i32 = arith.constant 0 : i32
    %c0_i32_0 = arith.constant 0 : i32
    %c0_i32_1 = arith.constant 0 : i32
    return %arg0, %c0_i32, %c0_i32_0 : i32, i32, i32
  }
  func.func @transform_1(%arg0: i32) -> (i32, i32, i32) {
    %c0_i32 = arith.constant 0 : i32
    %c0_i32_0 = arith.constant 0 : i32
    %c0_i32_1 = arith.constant 0 : i32
    return %arg0, %c0_i32, %c0_i32_0 : i32, i32, i32
  }
}

module attributes {stable_mosaic.version = 11 : i64} {
  func.func @_ffn_res_ln_kernel(%arg0: i32, %arg1: i32, %arg2: memref<16x32xf32, #tpu.memory_space<vmem>>, %arg3: memref<32x64xbf16, #tpu.memory_space<vmem>>, %arg4: memref<1x64xf32, #tpu.memory_space<vmem>>, %arg5: memref<64x32xbf16, #tpu.memory_space<vmem>>, %arg6: memref<1x32xf32, #tpu.memory_space<vmem>>, %arg7: memref<1x32xf32, #tpu.memory_space<vmem>>, %arg8: memref<1x32xf32, #tpu.memory_space<vmem>>, %arg9: memref<16x32xf32, #tpu.memory_space<vmem>>, %arg10: memref<16x32xf32, #tpu.memory_space<vmem>>) attributes {dimension_semantics = [#tpu.dimension_semantics<parallel>, #tpu.dimension_semantics<arbitrary>], iteration_bounds = array<i64: 1, 1>, scalar_prefetch = 0 : i64, scratch_operands = 1 : i64, tpu.core_type = #tpu.core_type<tc>, window_params = [{transform_indices = @transform_0, window_bounds = array<i64: 16, 32>}, {transform_indices = @transform_1, window_bounds = array<i64: 32, 64>}, {transform_indices = @transform_2, window_bounds = array<i64: 1, 64>}, {transform_indices = @transform_3, window_bounds = array<i64: 64, 32>}, {pipeline_mode = #tpu.pipeline_mode<synchronous>, transform_indices = @transform_4, window_bounds = array<i64: 1, 32>}, {pipeline_mode = #tpu.pipeline_mode<synchronous>, transform_indices = @transform_5, window_bounds = array<i64: 1, 32>}, {pipeline_mode = #tpu.pipeline_mode<synchronous>, transform_indices = @transform_6, window_bounds = array<i64: 1, 32>}, {transform_indices = @transform_7, window_bounds = array<i64: 16, 32>}]} {
    %c0_i32 = arith.constant 0 : i32
    %0 = arith.cmpi eq, %arg1, %c0_i32 : i32
    %1 = arith.extui %0 : i1 to i32
    %c0_i32_0 = arith.constant 0 : i32
    %2 = arith.cmpi ne, %1, %c0_i32_0 : i32
    scf.if %2 {
      %cst_16 = arith.constant 0.000000e+00 : f32
      %21 = vector.broadcast %cst_16 : f32 to vector<16x32xf32>
      %c0_17 = arith.constant 0 : index
      %c0_18 = arith.constant 0 : index
      %22 = vector.load %arg10[%c0_17, %c0_18] : memref<16x32xf32, #tpu.memory_space<vmem>>, vector<16x32xf32>
      tpu.vector_store %arg10[%c0_17, %c0_18], %21 {strides = array<i32>} : memref<16x32xf32, #tpu.memory_space<vmem>>, vector<16x32xf32>,
    } else {
    }
    %c0 = arith.constant 0 : index
    %c0_1 = arith.constant 0 : index
    %3 = vector.load %arg2[%c0, %c0_1] : memref<16x32xf32, #tpu.memory_space<vmem>>, vector<16x32xf32>
    %4 = arith.truncf %3 : vector<16x32xf32> to vector<16x32xbf16>
    %c0_2 = arith.constant 0 : index
    %c0_3 = arith.constant 0 : index
    %5 = vector.load %arg3[%c0_2, %c0_3] : memref<32x64xbf16, #tpu.memory_space<vmem>>, vector<32x64xbf16>
    %cst = arith.constant dense<0.000000e+00> : vector<16x64xf32>
    %6 = tpu.matmul %4, %5, %cst {dimension_numbers = #tpu.dot_dimension_numbers<[1], [0], [0], [1], [0, 0, 1, 1], [], []>} : vector<16x32xbf16>, vector<32x64xbf16>, vector<16x64xf32> -> vector<16x64xf32>
    %c0_4 = arith.constant 0 : index
    %c0_5 = arith.constant 0 : index
    %7 = vector.load %arg4[%c0_4, %c0_5] : memref<1x64xf32, #tpu.memory_space<vmem>>, vector<1x64xf32>
    %8 = vector.broadcast %7 : vector<1x64xf32> to vector<16x64xf32>
    %9 = arith.addf %6, %8 : vector<16x64xf32>
    %cst_6 = arith.constant 0.000000e+00 : f32
    %10 = vector.broadcast %cst_6 : f32 to vector<16x64xf32>
    %11 = arith.maximumf %9, %10 : vector<16x64xf32>
    %c0_7 = arith.constant 0 : index
    %c0_8 = arith.constant 0 : index
    %12 = vector.load %arg10[%c0_7, %c0_8] : memref<16x32xf32, #tpu.memory_space<vmem>>, vector<16x32xf32>
    %13 = arith.truncf %11 : vector<16x64xf32> to vector<16x64xbf16>
    %c0_9 = arith.constant 0 : index
    %c0_10 = arith.constant 0 : index
    %14 = vector.load %arg5[%c0_9, %c0_10] : memref<64x32xbf16, #tpu.memory_space<vmem>>, vector<64x32xbf16>
    %cst_11 = arith.constant dense<0.000000e+00> : vector<16x32xf32>
    %15 = tpu.matmul %13, %14, %cst_11 {dimension_numbers = #tpu.dot_dimension_numbers<[1], [0], [0], [1], [0, 0, 1, 1], [], []>} : vector<16x64xbf16>, vector<64x32xbf16>, vector<16x32xf32> -> vector<16x32xf32>
    %16 = arith.addf %12, %15 : vector<16x32xf32>
    %c0_12 = arith.constant 0 : index
    %c0_13 = arith.constant 0 : index
    %17 = vector.load %arg10[%c0_12, %c0_13] : memref<16x32xf32, #tpu.memory_space<vmem>>, vector<16x32xf32>
    tpu.vector_store %arg10[%c0_12, %c0_13], %16 {strides = array<i32>} : memref<16x32xf32, #tpu.memory_space<vmem>>, vector<16x32xf32>,
    %c0_i32_14 = arith.constant 0 : i32
    %18 = arith.cmpi eq, %arg1, %c0_i32_14 : i32
    %19 = arith.extui %18 : i1 to i32
    %c0_i32_15 = arith.constant 0 : i32
    %20 = arith.cmpi ne, %19, %c0_i32_15 : i32
    scf.if %20 {
      %c0_16 = arith.constant 0 : index
      %c0_17 = arith.constant 0 : index
      %21 = vector.load %arg10[%c0_16, %c0_17] : memref<16x32xf32, #tpu.memory_space<vmem>>, vector<16x32xf32>
      %c0_18 = arith.constant 0 : index
      %c0_19 = arith.constant 0 : index
      %22 = vector.load %arg6[%c0_18, %c0_19] : memref<1x32xf32, #tpu.memory_space<vmem>>, vector<1x32xf32>
      %23 = vector.broadcast %22 : vector<1x32xf32> to vector<16x32xf32>
      %24 = arith.addf %21, %23 : vector<16x32xf32>
      %c0_20 = arith.constant 0 : index
      %c0_21 = arith.constant 0 : index
      %25 = vector.load %arg2[%c0_20, %c0_21] : memref<16x32xf32, #tpu.memory_space<vmem>>, vector<16x32xf32>
      %26 = arith.addf %24, %25 : vector<16x32xf32>
      %c0_22 = arith.constant 0 : index
      %c0_23 = arith.constant 0 : index
      %27 = vector.load %arg7[%c0_22, %c0_23] : memref<1x32xf32, #tpu.memory_space<vmem>>, vector<1x32xf32>
      %c0_24 = arith.constant 0 : index
      %c0_25 = arith.constant 0 : index
      %28 = vector.load %arg8[%c0_24, %c0_25] : memref<1x32xf32, #tpu.memory_space<vmem>>, vector<1x32xf32>
      %cst_26 = arith.constant dense<0.000000e+00> : vector<16xf32>
      %29 = vector.multi_reduction <add>, %26, %cst_26 [1] : vector<16x32xf32> to vector<16xf32>
      %30 = vector.shape_cast %29 : vector<16xf32> to vector<16x1xf32>
      %31 = arith.mulf %26, %26 : vector<16x32xf32>
      %cst_27 = arith.constant dense<0.000000e+00> : vector<16xf32>
      %32 = vector.multi_reduction <add>, %31, %cst_27 [1] : vector<16x32xf32> to vector<16xf32>
      %33 = vector.shape_cast %32 : vector<16xf32> to vector<16x1xf32>
      %cst_28 = arith.constant 3.125000e-02 : f32
      %34 = vector.broadcast %cst_28 : f32 to vector<16x1xf32>
      %35 = arith.mulf %30, %34 : vector<16x1xf32>
      %cst_29 = arith.constant 3.125000e-02 : f32
      %36 = vector.broadcast %cst_29 : f32 to vector<16x1xf32>
      %37 = arith.mulf %33, %36 : vector<16x1xf32>
      %38 = arith.mulf %35, %35 : vector<16x1xf32>
      %39 = arith.subf %37, %38 : vector<16x1xf32>
      %cst_30 = arith.constant 9.99999974E-6 : f32
      %40 = vector.broadcast %cst_30 : f32 to vector<16x1xf32>
      %41 = arith.addf %39, %40 : vector<16x1xf32>
      %42 = math.rsqrt %41 : vector<16x1xf32>
      %43 = vector.broadcast %35 : vector<16x1xf32> to vector<16x32xf32>
      %44 = arith.subf %26, %43 : vector<16x32xf32>
      %45 = vector.broadcast %42 : vector<16x1xf32> to vector<16x32xf32>
      %46 = arith.mulf %44, %45 : vector<16x32xf32>
      %47 = vector.broadcast %27 : vector<1x32xf32> to vector<16x32xf32>
      %48 = arith.mulf %46, %47 : vector<16x32xf32>
      %49 = vector.broadcast %28 : vector<1x32xf32> to vector<16x32xf32>
      %50 = arith.addf %48, %49 : vector<16x32xf32>
      %c0_31 = arith.constant 0 : index
      %c0_32 = arith.constant 0 : index
      %51 = vector.load %arg9[%c0_31, %c0_32] : memref<16x32xf32, #tpu.memory_space<vmem>>, vector<16x32xf32>
      tpu.vector_store %arg9[%c0_31, %c0_32], %50 {strides = array<i32>} : memref<16x32xf32, #tpu.memory_space<vmem>>, vector<16x32xf32>,
    } else {
    }
    return
  }
  func.func @transform_0(%arg0: i32, %arg1: i32) -> (i32, i32) {
    %c0_i32 = arith.constant 0 : i32
    %c0_i32_0 = arith.constant 0 : i32
    return %arg0, %c0_i32 : i32, i32
  }
  func.func @transform_1(%arg0: i32, %arg1: i32) -> (i32, i32) {
    %c0_i32 = arith.constant 0 : i32
    %c0_i32_0 = arith.constant 0 : i32
    return %c0_i32, %arg1 : i32, i32
  }
  func.func @transform_2(%arg0: i32, %arg1: i32) -> (i32, i32) {
    %c0_i32 = arith.constant 0 : i32
    %c0_i32_0 = arith.constant 0 : i32
    return %c0_i32, %arg1 : i32, i32
  }
  func.func @transform_3(%arg0: i32, %arg1: i32) -> (i32, i32) {
    %c0_i32 = arith.constant 0 : i32
    %c0_i32_0 = arith.constant 0 : i32
    return %arg1, %c0_i32 : i32, i32
  }
  func.func @transform_4(%arg0: i32, %arg1: i32) -> (i32, i32) {
    %c0_i32 = arith.constant 0 : i32
    %c0_i32_0 = arith.constant 0 : i32
    %c0_i32_1 = arith.constant 0 : i32
    return %c0_i32, %c0_i32_0 : i32, i32
  }
  func.func @transform_5(%arg0: i32, %arg1: i32) -> (i32, i32) {
    %c0_i32 = arith.constant 0 : i32
    %c0_i32_0 = arith.constant 0 : i32
    %c0_i32_1 = arith.constant 0 : i32
    return %c0_i32, %c0_i32_0 : i32, i32
  }
  func.func @transform_6(%arg0: i32, %arg1: i32) -> (i32, i32) {
    %c0_i32 = arith.constant 0 : i32
    %c0_i32_0 = arith.constant 0 : i32
    %c0_i32_1 = arith.constant 0 : i32
    return %c0_i32, %c0_i32_0 : i32, i32
  }
  func.func @transform_7(%arg0: i32, %arg1: i32) -> (i32, i32) {
    %c0_i32 = arith.constant 0 : i32
    %c0_i32_0 = arith.constant 0 : i32
    return %arg0, %c0_i32 : i32, i32
  }
}

module attributes {stable_mosaic.version = 11 : i64} {
  func.func @_ffn_res_ln_kernel(%arg0: i32, %arg1: i32, %arg2: memref<16x32xf32, #tpu.memory_space<vmem>>, %arg3: memref<32x64xbf16, #tpu.memory_space<vmem>>, %arg4: memref<1x64xf32, #tpu.memory_space<vmem>>, %arg5: memref<64x32xbf16, #tpu.memory_space<vmem>>, %arg6: memref<1x32xf32, #tpu.memory_space<vmem>>, %arg7: memref<1x32xf32, #tpu.memory_space<vmem>>, %arg8: memref<1x32xf32, #tpu.memory_space<vmem>>, %arg9: memref<16x32xf32, #tpu.memory_space<vmem>>, %arg10: memref<16x32xf32, #tpu.memory_space<vmem>>) attributes {dimension_semantics = [#tpu.dimension_semantics<parallel>, #tpu.dimension_semantics<arbitrary>], iteration_bounds = array<i64: 1, 1>, scalar_prefetch = 0 : i64, scratch_operands = 1 : i64, tpu.core_type = #tpu.core_type<tc>, window_params = [{transform_indices = @transform_0, window_bounds = array<i64: 16, 32>}, {transform_indices = @transform_1, window_bounds = array<i64: 32, 64>}, {transform_indices = @transform_2, window_bounds = array<i64: 1, 64>}, {transform_indices = @transform_3, window_bounds = array<i64: 64, 32>}, {pipeline_mode = #tpu.pipeline_mode<synchronous>, transform_indices = @transform_4, window_bounds = array<i64: 1, 32>}, {pipeline_mode = #tpu.pipeline_mode<synchronous>, transform_indices = @transform_5, window_bounds = array<i64: 1, 32>}, {pipeline_mode = #tpu.pipeline_mode<synchronous>, transform_indices = @transform_6, window_bounds = array<i64: 1, 32>}, {transform_indices = @transform_7, window_bounds = array<i64: 16, 32>}]} {
    %c0_i32 = arith.constant 0 : i32
    %0 = arith.cmpi eq, %arg1, %c0_i32 : i32
    %1 = arith.extui %0 : i1 to i32
    %c0_i32_0 = arith.constant 0 : i32
    %2 = arith.cmpi ne, %1, %c0_i32_0 : i32
    scf.if %2 {
      %cst_16 = arith.constant 0.000000e+00 : f32
      %21 = vector.broadcast %cst_16 : f32 to vector<16x32xf32>
      %c0_17 = arith.constant 0 : index
      %c0_18 = arith.constant 0 : index
      %22 = vector.load %arg10[%c0_17, %c0_18] : memref<16x32xf32, #tpu.memory_space<vmem>>, vector<16x32xf32>
      tpu.vector_store %arg10[%c0_17, %c0_18], %21 {strides = array<i32>} : memref<16x32xf32, #tpu.memory_space<vmem>>, vector<16x32xf32>,
    } else {
    }
    %c0 = arith.constant 0 : index
    %c0_1 = arith.constant 0 : index
    %3 = vector.load %arg2[%c0, %c0_1] : memref<16x32xf32, #tpu.memory_space<vmem>>, vector<16x32xf32>
    %4 = arith.truncf %3 : vector<16x32xf32> to vector<16x32xbf16>
    %c0_2 = arith.constant 0 : index
    %c0_3 = arith.constant 0 : index
    %5 = vector.load %arg3[%c0_2, %c0_3] : memref<32x64xbf16, #tpu.memory_space<vmem>>, vector<32x64xbf16>
    %cst = arith.constant dense<0.000000e+00> : vector<16x64xf32>
    %6 = tpu.matmul %4, %5, %cst {dimension_numbers = #tpu.dot_dimension_numbers<[1], [0], [0], [1], [0, 0, 1, 1], [], []>} : vector<16x32xbf16>, vector<32x64xbf16>, vector<16x64xf32> -> vector<16x64xf32>
    %c0_4 = arith.constant 0 : index
    %c0_5 = arith.constant 0 : index
    %7 = vector.load %arg4[%c0_4, %c0_5] : memref<1x64xf32, #tpu.memory_space<vmem>>, vector<1x64xf32>
    %8 = vector.broadcast %7 : vector<1x64xf32> to vector<16x64xf32>
    %9 = arith.addf %6, %8 : vector<16x64xf32>
    %cst_6 = arith.constant 0.000000e+00 : f32
    %10 = vector.broadcast %cst_6 : f32 to vector<16x64xf32>
    %11 = arith.maximumf %9, %10 : vector<16x64xf32>
    %c0_7 = arith.constant 0 : index
    %c0_8 = arith.constant 0 : index
    %12 = vector.load %arg10[%c0_7, %c0_8] : memref<16x32xf32, #tpu.memory_space<vmem>>, vector<16x32xf32>
    %13 = arith.truncf %11 : vector<16x64xf32> to vector<16x64xbf16>
    %c0_9 = arith.constant 0 : index
    %c0_10 = arith.constant 0 : index
    %14 = vector.load %arg5[%c0_9, %c0_10] : memref<64x32xbf16, #tpu.memory_space<vmem>>, vector<64x32xbf16>
    %cst_11 = arith.constant dense<0.000000e+00> : vector<16x32xf32>
    %15 = tpu.matmul %13, %14, %cst_11 {dimension_numbers = #tpu.dot_dimension_numbers<[1], [0], [0], [1], [0, 0, 1, 1], [], []>} : vector<16x64xbf16>, vector<64x32xbf16>, vector<16x32xf32> -> vector<16x32xf32>
    %16 = arith.addf %12, %15 : vector<16x32xf32>
    %c0_12 = arith.constant 0 : index
    %c0_13 = arith.constant 0 : index
    %17 = vector.load %arg10[%c0_12, %c0_13] : memref<16x32xf32, #tpu.memory_space<vmem>>, vector<16x32xf32>
    tpu.vector_store %arg10[%c0_12, %c0_13], %16 {strides = array<i32>} : memref<16x32xf32, #tpu.memory_space<vmem>>, vector<16x32xf32>,
    %c0_i32_14 = arith.constant 0 : i32
    %18 = arith.cmpi eq, %arg1, %c0_i32_14 : i32
    %19 = arith.extui %18 : i1 to i32
    %c0_i32_15 = arith.constant 0 : i32
    %20 = arith.cmpi ne, %19, %c0_i32_15 : i32
    scf.if %20 {
      %c0_16 = arith.constant 0 : index
      %c0_17 = arith.constant 0 : index
      %21 = vector.load %arg10[%c0_16, %c0_17] : memref<16x32xf32, #tpu.memory_space<vmem>>, vector<16x32xf32>
      %c0_18 = arith.constant 0 : index
      %c0_19 = arith.constant 0 : index
      %22 = vector.load %arg6[%c0_18, %c0_19] : memref<1x32xf32, #tpu.memory_space<vmem>>, vector<1x32xf32>
      %23 = vector.broadcast %22 : vector<1x32xf32> to vector<16x32xf32>
      %24 = arith.addf %21, %23 : vector<16x32xf32>
      %c0_20 = arith.constant 0 : index
      %c0_21 = arith.constant 0 : index
      %25 = vector.load %arg2[%c0_20, %c0_21] : memref<16x32xf32, #tpu.memory_space<vmem>>, vector<16x32xf32>
      %26 = arith.addf %24, %25 : vector<16x32xf32>
      %c0_22 = arith.constant 0 : index
      %c0_23 = arith.constant 0 : index
      %27 = vector.load %arg7[%c0_22, %c0_23] : memref<1x32xf32, #tpu.memory_space<vmem>>, vector<1x32xf32>
      %c0_24 = arith.constant 0 : index
      %c0_25 = arith.constant 0 : index
      %28 = vector.load %arg8[%c0_24, %c0_25] : memref<1x32xf32, #tpu.memory_space<vmem>>, vector<1x32xf32>
      %cst_26 = arith.constant dense<0.000000e+00> : vector<16xf32>
      %29 = vector.multi_reduction <add>, %26, %cst_26 [1] : vector<16x32xf32> to vector<16xf32>
      %30 = vector.shape_cast %29 : vector<16xf32> to vector<16x1xf32>
      %31 = arith.mulf %26, %26 : vector<16x32xf32>
      %cst_27 = arith.constant dense<0.000000e+00> : vector<16xf32>
      %32 = vector.multi_reduction <add>, %31, %cst_27 [1] : vector<16x32xf32> to vector<16xf32>
      %33 = vector.shape_cast %32 : vector<16xf32> to vector<16x1xf32>
      %cst_28 = arith.constant 3.125000e-02 : f32
      %34 = vector.broadcast %cst_28 : f32 to vector<16x1xf32>
      %35 = arith.mulf %30, %34 : vector<16x1xf32>
      %cst_29 = arith.constant 3.125000e-02 : f32
      %36 = vector.broadcast %cst_29 : f32 to vector<16x1xf32>
      %37 = arith.mulf %33, %36 : vector<16x1xf32>
      %38 = arith.mulf %35, %35 : vector<16x1xf32>
      %39 = arith.subf %37, %38 : vector<16x1xf32>
      %cst_30 = arith.constant 9.99999974E-6 : f32
      %40 = vector.broadcast %cst_30 : f32 to vector<16x1xf32>
      %41 = arith.addf %39, %40 : vector<16x1xf32>
      %42 = math.rsqrt %41 : vector<16x1xf32>
      %43 = vector.broadcast %35 : vector<16x1xf32> to vector<16x32xf32>
      %44 = arith.subf %26, %43 : vector<16x32xf32>
      %45 = vector.broadcast %42 : vector<16x1xf32> to vector<16x32xf32>
      %46 = arith.mulf %44, %45 : vector<16x32xf32>
      %47 = vector.broadcast %27 : vector<1x32xf32> to vector<16x32xf32>
      %48 = arith.mulf %46, %47 : vector<16x32xf32>
      %49 = vector.broadcast %28 : vector<1x32xf32> to vector<16x32xf32>
      %50 = arith.addf %48, %49 : vector<16x32xf32>
      %c0_31 = arith.constant 0 : index
      %c0_32 = arith.constant 0 : index
      %51 = vector.load %arg9[%c0_31, %c0_32] : memref<16x32xf32, #tpu.memory_space<vmem>>, vector<16x32xf32>
      tpu.vector_store %arg9[%c0_31, %c0_32], %50 {strides = array<i32>} : memref<16x32xf32, #tpu.memory_space<vmem>>, vector<16x32xf32>,
    } else {
    }
    return
  }
  func.func @transform_0(%arg0: i32, %arg1: i32) -> (i32, i32) {
    %c0_i32 = arith.constant 0 : i32
    %c0_i32_0 = arith.constant 0 : i32
    return %arg0, %c0_i32 : i32, i32
  }
  func.func @transform_1(%arg0: i32, %arg1: i32) -> (i32, i32) {
    %c0_i32 = arith.constant 0 : i32
    %c0_i32_0 = arith.constant 0 : i32
    return %c0_i32, %arg1 : i32, i32
  }
  func.func @transform_2(%arg0: i32, %arg1: i32) -> (i32, i32) {
    %c0_i32 = arith.constant 0 : i32
    %c0_i32_0 = arith.constant 0 : i32
    return %c0_i32, %arg1 : i32, i32
  }
  func.func @transform_3(%arg0: i32, %arg1: i32) -> (i32, i32) {
    %c0_i32 = arith.constant 0 : i32
    %c0_i32_0 = arith.constant 0 : i32
    return %arg1, %c0_i32 : i32, i32
  }
  func.func @transform_4(%arg0: i32, %arg1: i32) -> (i32, i32) {
    %c0_i32 = arith.constant 0 : i32
    %c0_i32_0 = arith.constant 0 : i32
    %c0_i32_1 = arith.constant 0 : i32
    return %c0_i32, %c0_i32_0 : i32, i32
  }
  func.func @transform_5(%arg0: i32, %arg1: i32) -> (i32, i32) {
    %c0_i32 = arith.constant 0 : i32
    %c0_i32_0 = arith.constant 0 : i32
    %c0_i32_1 = arith.constant 0 : i32
    return %c0_i32, %c0_i32_0 : i32, i32
  }
  func.func @transform_6(%arg0: i32, %arg1: i32) -> (i32, i32) {
    %c0_i32 = arith.constant 0 : i32
    %c0_i32_0 = arith.constant 0 : i32
    %c0_i32_1 = arith.constant 0 : i32
    return %c0_i32, %c0_i32_0 : i32, i32
  }
  func.func @transform_7(%arg0: i32, %arg1: i32) -> (i32, i32) {
    %c0_i32 = arith.constant 0 : i32
    %c0_i32_0 = arith.constant 0 : i32
    return %arg0, %c0_i32 : i32, i32
  }
}

</mosaic_0001>

<llo_original>
// kernel: _lambda_.32
$region0: #{_lambda_.32}
  #allocation0 [shape = 'u32[]', space=smem, size = 0x4, offset = 0x4, fixed_abs, tag = 'smem constant byte address 0x4 - core index']
  #allocation1 [shape = 'u32[144,128]{1,0:T(1,128)}', space=vmem, size = 0x12000, scoped, tag = 'internal scratch']
  %s0 = inlined_call_operand.vmem [shape: f32[32,32], index: 0, kind: input, shape index: {}]
  %s1 = inlined_call_operand.vmem [shape: bf16[32,32], index: 1, kind: input, shape index: {}]
  %s2 = inlined_call_operand.vmem [shape: f32[1,32], index: 2, kind: input, shape index: {}, may-alias: {2,5}]
  %s3 = inlined_call_operand.vmem [shape: f32[32,32], index: 3, kind: input, shape index: {}]
  %s4 = inlined_call_operand.vmem [shape: f32[1,32], index: 4, kind: input, shape index: {}]
  %s5 = inlined_call_operand.vmem [shape: f32[1,32], index: 5, kind: input, shape index: {}, may-alias: {2,5}]
  %s6 = inlined_call_operand.vmem [shape: f32[32,32], index: 6, kind: output, shape index: {}]
  %s7 = sld [smem:[#allocation0]]
  $region34: #{_lambda_.32} parent=0
    _
  %s9 = ssub.s32 1, %s7
  %s10 = scalar_select 0, %s9, %s7
  // Predicated region
  $region2: #{_lambda_.32} parent=0 // pred_check
    _
  $region3: #{_lambda_.32} parent=0 // pred_check_branch
    %12 = sbr.rel (0) target = $region5
  $region4: #{_lambda_.32} parent=0 // pred_region
    _
  $region5: #{_lambda_.32} parent=0 // pred_fallthru
    _
  // Predicated region
  $region6: #{_lambda_.32} parent=0 // pred_check
    _
  $region7: #{_lambda_.32} parent=0 // pred_check_branch
    %14 = sbr.rel (0) target = $region9
  $region8: #{_lambda_.32} parent=0 // pred_region
    _
  $region9: #{_lambda_.32} parent=0 // pred_fallthru
    _
  // Predicated region
  $region10: #{_lambda_.32} parent=0 // pred_check
    _
  $region11: #{_lambda_.32} parent=0 // pred_check_branch
    %16 = sbr.rel (0) target = $region13
  $region12: #{_lambda_.32} parent=0 // pred_region
    _
  $region13: #{_lambda_.32} parent=0 // pred_fallthru
    _
  // Predicated region
  $region14: #{_lambda_.32} parent=0 // pred_check
    _
  $region15: #{_lambda_.32} parent=0 // pred_check_branch
    %18 = sbr.rel (0) target = $region17
  $region16: #{_lambda_.32} parent=0 // pred_region
    _
  $region17: #{_lambda_.32} parent=0 // pred_fallthru
    _
  // Predicated region
  $region18: #{_lambda_.32} parent=0 // pred_check
    _
  $region19: #{_lambda_.32} parent=0 // pred_check_branch
    %20 = sbr.rel (0) target = $region21
  $region20: #{_lambda_.32} parent=0 // pred_region
    _
  $region21: #{_lambda_.32} parent=0 // pred_fallthru
    _
  // Predicated region
  $region22: #{_lambda_.32} parent=0 // pred_check
    _
  $region23: #{_lambda_.32} parent=0 // pred_check_branch
    %22 = sbr.rel (0) target = $region25
  $region24: #{_lambda_.32} parent=0 // pred_region
    _
  $region25: #{_lambda_.32} parent=0 // pred_fallthru
    _
  %v24 = vld [vmem:[%s0] sm:$0xff]
  %v25 = vld [vmem:[%s0 + $0x8] sm:$0xff]
  %v26 = vld [vmem:[%s0 + $0x10] sm:$0xff]
  %v27 = vld [vmem:[%s0 + $0x18] sm:$0xff]
  %v28 = vpack.c.bf16 %v25, %v24
  %v29 = vpack.c.bf16 %v27, %v26
  %v30 = vld [vmem:[%s1] sm:$0xf]
  %v31 = vld [vmem:[%s1 + $0x4] sm:$0xf]
  %v32 = vld [vmem:[%s1 + $0x8] sm:$0xf]
  %v33 = vld [vmem:[%s1 + $0xc] sm:$0xf]
  %v34 = vld [vmem:[%s2] sm:$0x1]
  %v36 = vlaneseq
  %v37 = vshrl.u32 %v36, 7
  %v38 = vsub.s32 0, %v37
  %v39 = vrot.slane %v34, %v38
  %v45 = vunpack.c.l.b16 %v30
  %v46 = vunpack.c.l.b16 %v31
  %v47 = vunpack.c.l.b16 %v32
  %v48 = vunpack.c.l.b16 %v33
  %v49 = vpack.c.b16 %v46, %v45
  %v50 = vpack.c.b16 %v48, %v47
  %vm53 = vcmask 261120
  %v55 = vsel %vm53, %v28, 0
  %v58 = vsel %vm53, %v29, 0
  %60 = vmatprep.subr.bf16.mxu0 0
  %61 = vmatpush1.bf16.msra.mxu0 %v49
  %62 = vmatprep.subr.bf16.mxu0 0
  %63 = vmatpush1.bf16.msra.mxu0 %v50
  %64 = vmatprep.subr.bf16.mxu0 0
  %65 = vmatpush1.bf16.msra.mxu0 0
  %66 = vmatprep.subr.bf16.mxu0 0
  %67 = vmatpush1.bf16.msra.mxu0 0
  %68 = vmatprep.subr.bf16.mxu0 0
  %69 = vmatpush1.bf16.msra.mxu0 0
  %70 = vmatprep.subr.bf16.mxu0 0
  %71 = vmatpush1.bf16.msra.mxu0 0
  %72 = vmatprep.subr.bf16.mxu0 0
  %73 = vmatpush1.bf16.msra.mxu0 0
  %74 = vmatprep.subr.bf16.mxu0 0
  %75 = vmatpush1.bf16.msra.mxu0 0
  %76 = vmatprep.subr.bf16.mxu0 0
  %77 = vmatpush1.bf16.msra.mxu0 0
  %78 = vmatprep.subr.bf16.mxu0 0
  %79 = vmatpush1.bf16.msra.mxu0 0
  %80 = vmatprep.subr.bf16.mxu0 0
  %81 = vmatpush1.bf16.msra.mxu0 0
  %82 = vmatprep.subr.bf16.mxu0 0
  %83 = vmatpush1.bf16.msra.mxu0 0
  %84 = vmatprep.subr.bf16.mxu0 0
  %85 = vmatpush1.bf16.msra.mxu0 0
  %86 = vmatprep.subr.bf16.mxu0 0
  %87 = vmatpush1.bf16.msra.mxu0 0
  %88 = vmatprep.subr.bf16.mxu0 0
  %89 = vmatpush1.bf16.msra.mxu0 0
  %90 = vmatprep.subr.bf16.mxu0 0
  %91 = vmatpush1.bf16.msra.mxu0 0
  %92 = vmatprep.mubr.bf16.mxu0 0
  %93 = vmatmul.mubr.bf16.gmra.mrb[0].mxu0 %v55
  %v94 = vpop.f32.mrb[0].mxu0
  %v95 = vadd.f32 %v39, %v94
  %v96 = vpop.f32.mrb[0].mxu0
  %v97 = vpop.f32.mrb[0].mxu0
  %v98 = vadd.f32 %v39, %v97
  %v99 = vpop.f32.mrb[0].mxu0
  %100 = vmatprep.mubr.bf16.mxu0 0
  %101 = vmatmul.mubr.bf16.gmra.mrb[0].mxu0 %v58
  %v102 = vpop.f32.mrb[0].mxu0
  %v103 = vadd.f32 %v39, %v102
  %v104 = vpop.f32.mrb[0].mxu0
  %v105 = vpop.f32.mrb[0].mxu0
  %v106 = vadd.f32 %v39, %v105
  %v107 = vpop.f32.mrb[0].mxu0
  %108 = vdwg.mxu0
  %v109 = vld [vmem:[%s3] sm:$0xff]
  %v110 = vld [vmem:[%s3 + $0x8] sm:$0xff]
  %v111 = vld [vmem:[%s3 + $0x10] sm:$0xff]
  %v112 = vld [vmem:[%s3 + $0x18] sm:$0xff]
  %v113 = vadd.f32 %v95, %v109
  %v114 = vadd.f32 %v98, %v110
  %v115 = vadd.f32 %v103, %v111
  %v116 = vadd.f32 %v106, %v112
  %v117 = vld [vmem:[%s4] sm:$0x1]
  %v118 = vld [vmem:[%s5] sm:$0x1]
  %v119 = vsel %vm53, %v113, 0.0
  %120 = vadd.xlane.f32.xlu0 %v119
  %v121 = vpop.xlane.xlu0 %120
  %v122 = vsel %vm53, %v114, 0.0
  %123 = vadd.xlane.f32.xlu0 %v122
  %v124 = vpop.xlane.xlu0 %123
  %v125 = vsel %vm53, %v115, 0.0
  %126 = vadd.xlane.f32.xlu0 %v125
  %v127 = vpop.xlane.xlu0 %126
  %v128 = vsel %vm53, %v116, 0.0
  %129 = vadd.xlane.f32.xlu0 %v128
  %v130 = vpop.xlane.xlu0 %129
  %v131 = vmul.f32 %v113, %v113
  %v132 = vmul.f32 %v114, %v114
  %v133 = vmul.f32 %v115, %v115
  %v134 = vmul.f32 %v116, %v116
  %v135 = vsel %vm53, %v131, 0.0
  %136 = vadd.xlane.f32.xlu0 %v135
  %v137 = vpop.xlane.xlu0 %136
  %v138 = vsel %vm53, %v132, 0.0
  %139 = vadd.xlane.f32.xlu0 %v138
  %v140 = vpop.xlane.xlu0 %139
  %v141 = vsel %vm53, %v133, 0.0
  %142 = vadd.xlane.f32.xlu0 %v141
  %v143 = vpop.xlane.xlu0 %142
  %v144 = vsel %vm53, %v134, 0.0
  %145 = vadd.xlane.f32.xlu0 %v144
  %v146 = vpop.xlane.xlu0 %145
  %v147 = vmul.f32 %v121, 0.03125
  %v148 = vmul.f32 %v124, 0.03125
  %v149 = vmul.f32 %v127, 0.03125
  %v150 = vmul.f32 %v130, 0.03125
  %v151 = vmul.f32 %v137, 0.03125
  %v152 = vmul.f32 %v140, 0.03125
  %v153 = vmul.f32 %v143, 0.03125
  %v154 = vmul.f32 %v146, 0.03125
  %v155 = vmul.f32 %v147, %v147
  %v156 = vmul.f32 %v148, %v148
  %v157 = vmul.f32 %v149, %v149
  %v158 = vmul.f32 %v150, %v150
  %v159 = vsub.f32 %v151, %v155
  %v160 = vsub.f32 %v152, %v156
  %v161 = vsub.f32 %v153, %v157
  %v162 = vsub.f32 %v154, %v158
  %v163 = vadd.f32 %v159, 1e-05
  %v164 = vadd.f32 %v160, 1e-05
  %v165 = vadd.f32 %v161, 1e-05
  %v166 = vadd.f32 %v162, 1e-05
  %v167 = vrsqrt.pop %v163
  %v168 = vrsqrt.pop %v164
  %v169 = vrsqrt.pop %v165
  %v170 = vrsqrt.pop %v166
  %v171 = vsub.f32 %v113, %v147
  %v172 = vsub.f32 %v114, %v148
  %v173 = vsub.f32 %v115, %v149
  %v174 = vsub.f32 %v116, %v150
  %v175 = vmul.f32 %v171, %v167
  %v176 = vmul.f32 %v172, %v168
  %v177 = vmul.f32 %v173, %v169
  %v178 = vmul.f32 %v174, %v170
  %v180 = vlaneseq
  %v181 = vshrl.u32 %v180, 7
  %v182 = vsub.s32 0, %v181
  %v183 = vrot.slane %v117, %v182
  %v185 = vmul.f32 %v175, %v183
  %v186 = vmul.f32 %v176, %v183
  %v187 = vmul.f32 %v177, %v183
  %v188 = vmul.f32 %v178, %v183
  %v190 = vlaneseq
  %v191 = vshrl.u32 %v190, 7
  %v192 = vsub.s32 0, %v191
  %v193 = vrot.slane %v118, %v192
  %v195 = vadd.f32 %v185, %v193
  %v196 = vadd.f32 %v186, %v193
  %v197 = vadd.f32 %v187, %v193
  %v198 = vadd.f32 %v188, %v193
  %199 = vst.msk [vmem:[%s6] sm:$0xff] %vm53, %v195
  %200 = vst.msk [vmem:[%s6 + $0x8] sm:$0xff] %vm53, %v196
  %201 = vst.msk [vmem:[%s6 + $0x10] sm:$0xff] %vm53, %v197
  %202 = vst.msk [vmem:[%s6 + $0x18] sm:$0xff] %vm53, %v198
  // Predicated region
  $region26: #{_lambda_.32} parent=0 // pred_check
    _
  $region27: #{_lambda_.32} parent=0 // pred_check_branch
    %204 = sbr.rel (0) target = $region29
  $region28: #{_lambda_.32} parent=0 // pred_region
    _
  $region29: #{_lambda_.32} parent=0 // pred_fallthru
    _
  // Predicated region
  $region30: #{_lambda_.32} parent=0 // pred_check
    _
  $region31: #{_lambda_.32} parent=0 // pred_check_branch
    %206 = sbr.rel (0) target = $region33
  $region32: #{_lambda_.32} parent=0 // pred_region
    _
  $region33: #{_lambda_.32} parent=0 // pred_fallthru
    _

// kernel: _lambda_.30
$region0: #{_lambda_.30}
  #allocation0 [shape = 'u32[]', space=smem, size = 0x4, offset = 0x4, fixed_abs, tag = 'smem constant byte address 0x4 - core index']
  #allocation1 [shape = 'u32[144,128]{1,0:T(1,128)}', space=vmem, size = 0x12000, scoped, tag = 'internal scratch']
  #allocation2 [shape = 'f32[32,96]{1,0:T(8,128)}', space=vmem, size = 0x4000, scoped, tag = 'scratch operand']
  %s0 = inlined_call_operand.vmem [shape: f32[32,32], index: 0, kind: input, shape index: {}]
  %s1 = inlined_call_operand.vmem [shape: bf16[32,96], index: 1, kind: input, shape index: {}]
  %s2 = inlined_call_operand.vmem [shape: f32[1,96], index: 2, kind: input, shape index: {}]
  %s3 = inlined_call_operand.vmem [shape: f32[32,96], index: 3, kind: output, shape index: {}]
  %s4 = sld [smem:[#allocation0]]
  $region30: #{_lambda_.30} parent=0
    _
  %s6 = ssub.s32 1, %s4
  %s7 = scalar_select 0, %s6, %s4
  // Predicated region
  $region2: #{_lambda_.30} parent=0 // pred_check
    _
  $region3: #{_lambda_.30} parent=0 // pred_check_branch
    %9 = sbr.rel (0) target = $region5
  $region4: #{_lambda_.30} parent=0 // pred_region
    _
  $region5: #{_lambda_.30} parent=0 // pred_fallthru
    _
  // Predicated region
  $region6: #{_lambda_.30} parent=0 // pred_check
    _
  $region7: #{_lambda_.30} parent=0 // pred_check_branch
    %11 = sbr.rel (0) target = $region9
  $region8: #{_lambda_.30} parent=0 // pred_region
    _
  $region9: #{_lambda_.30} parent=0 // pred_fallthru
    _
  // Predicated region
  $region10: #{_lambda_.30} parent=0 // pred_check
    _
  $region11: #{_lambda_.30} parent=0 // pred_check_branch
    %13 = sbr.rel (0) target = $region13
  $region12: #{_lambda_.30} parent=0 // pred_region
    _
  $region13: #{_lambda_.30} parent=0 // pred_fallthru
    _
  %p15 = scmp.eq.s32.totalorder 0, 0
  // Predicated region
  $region14: #{_lambda_.30} parent=0 // pred_check
    %p16 = pneg %p15
  $region15: #{_lambda_.30} parent=0 // pred_check_branch
    %18 = sbr.rel (%p16) target = $region17
  $region16: #{_lambda_.30} parent=0 // pred_region
    %vm19 = vcmask 785408
    %20 = vst.msk [vmem:[#allocation2] sm:$0xff] %vm19, 0.0
    %21 = vst.msk [vmem:[#allocation2 + $0x8] sm:$0xff] %vm19, 0.0
    %22 = vst.msk [vmem:[#allocation2 + $0x10] sm:$0xff] %vm19, 0.0
    %23 = vst.msk [vmem:[#allocation2 + $0x18] sm:$0xff] %vm19, 0.0
  $region17: #{_lambda_.30} parent=0 // pred_fallthru
    _
  %v24 = vld [vmem:[#allocation2] sm:$0xff]
  %v25 = vld [vmem:[#allocation2 + $0x8] sm:$0xff]
  %v26 = vld [vmem:[#allocation2 + $0x10] sm:$0xff]
  %v27 = vld [vmem:[#allocation2 + $0x18] sm:$0xff]
  %v28 = vld [vmem:[%s0] sm:$0xff]
  %v29 = vld [vmem:[%s0 + $0x8] sm:$0xff]
  %v30 = vld [vmem:[%s0 + $0x10] sm:$0xff]
  %v31 = vld [vmem:[%s0 + $0x18] sm:$0xff]
  %v32 = vpack.c.bf16 %v29, %v28
  %v33 = vpack.c.bf16 %v31, %v30
  %v34 = vld [vmem:[%s1] sm:$0xf]
  %v35 = vld [vmem:[%s1 + $0x4] sm:$0xf]
  %v36 = vld [vmem:[%s1 + $0x8] sm:$0xf]
  %v37 = vld [vmem:[%s1 + $0xc] sm:$0xf]
  %v42 = vunpack.c.l.b16 %v34
  %v43 = vunpack.c.l.b16 %v35
  %v44 = vunpack.c.l.b16 %v36
  %v45 = vunpack.c.l.b16 %v37
  %v46 = vpack.c.b16 %v43, %v42
  %v47 = vpack.c.b16 %v45, %v44
  %vm50 = vcmask 261120
  %v52 = vsel %vm50, %v32, 0
  %v55 = vsel %vm50, %v33, 0
  %57 = vmatprep.subr.bf16.mxu0 0
  %58 = vmatpush1.bf16.msra.mxu0 %v46
  %59 = vmatprep.subr.bf16.mxu0 0
  %60 = vmatpush1.bf16.msra.mxu0 %v47
  %61 = vmatprep.subr.bf16.mxu0 0
  %62 = vmatpush1.bf16.msra.mxu0 0
  %63 = vmatprep.subr.bf16.mxu0 0
  %64 = vmatpush1.bf16.msra.mxu0 0
  %65 = vmatprep.subr.bf16.mxu0 0
  %66 = vmatpush1.bf16.msra.mxu0 0
  %67 = vmatprep.subr.bf16.mxu0 0
  %68 = vmatpush1.bf16.msra.mxu0 0
  %69 = vmatprep.subr.bf16.mxu0 0
  %70 = vmatpush1.bf16.msra.mxu0 0
  %71 = vmatprep.subr.bf16.mxu0 0
  %72 = vmatpush1.bf16.msra.mxu0 0
  %73 = vmatprep.subr.bf16.mxu0 0
  %74 = vmatpush1.bf16.msra.mxu0 0
  %75 = vmatprep.subr.bf16.mxu0 0
  %76 = vmatpush1.bf16.msra.mxu0 0
  %77 = vmatprep.subr.bf16.mxu0 0
  %78 = vmatpush1.bf16.msra.mxu0 0
  %79 = vmatprep.subr.bf16.mxu0 0
  %80 = vmatpush1.bf16.msra.mxu0 0
  %81 = vmatprep.subr.bf16.mxu0 0
  %82 = vmatpush1.bf16.msra.mxu0 0
  %83 = vmatprep.subr.bf16.mxu0 0
  %84 = vmatpush1.bf16.msra.mxu0 0
  %85 = vmatprep.subr.bf16.mxu0 0
  %86 = vmatpush1.bf16.msra.mxu0 0
  %87 = vmatprep.subr.bf16.mxu0 0
  %88 = vmatpush1.bf16.msra.mxu0 0
  %89 = vmatprep.mubr.bf16.mxu0 0
  %90 = vmatmul.mubr.bf16.gmra.mrb[0].mxu0 %v52
  %v91 = vpop.f32.mrb[0].mxu0
  %v92 = vadd.f32 0.0, %v91
  %v93 = vpop.f32.mrb[0].mxu0
  %v94 = vpop.f32.mrb[0].mxu0
  %v95 = vadd.f32 0.0, %v94
  %v96 = vpop.f32.mrb[0].mxu0
  %97 = vmatprep.mubr.bf16.mxu0 0
  %98 = vmatmul.mubr.bf16.gmra.mrb[0].mxu0 %v55
  %v99 = vpop.f32.mrb[0].mxu0
  %v100 = vadd.f32 0.0, %v99
  %v101 = vpop.f32.mrb[0].mxu0
  %v102 = vpop.f32.mrb[0].mxu0
  %v103 = vadd.f32 0.0, %v102
  %v104 = vpop.f32.mrb[0].mxu0
  %105 = vdwg.mxu0
  %v106 = vadd.f32 %v24, %v92
  %v107 = vadd.f32 %v25, %v95
  %v108 = vadd.f32 %v26, %v100
  %v109 = vadd.f32 %v27, %v103
  %vm110 = vcmask 785408
  %111 = vst.msk [vmem:[#allocation2] sm:$0xff] %vm110, %v106
  %112 = vst.msk [vmem:[#allocation2 + $0x8] sm:$0xff] %vm110, %v107
  %113 = vst.msk [vmem:[#allocation2 + $0x10] sm:$0xff] %vm110, %v108
  %114 = vst.msk [vmem:[#allocation2 + $0x18] sm:$0xff] %vm110, %v109
  // Predicated region
  $region18: #{_lambda_.30} parent=0 // pred_check
    %p115 = pneg %p15
  $region19: #{_lambda_.30} parent=0 // pred_check_branch
    %117 = sbr.rel (%p115) target = $region21
  $region20: #{_lambda_.30} parent=0 // pred_region
    %v118 = vld [vmem:[#allocation2] sm:$0xff]
    %v119 = vld [vmem:[#allocation2 + $0x8] sm:$0xff]
    %v120 = vld [vmem:[#allocation2 + $0x10] sm:$0xff]
    %v121 = vld [vmem:[#allocation2 + $0x18] sm:$0xff]
    %v122 = vld [vmem:[%s2] sm:$0x1]
    %v124 = vlaneseq
    %v125 = vshrl.u32 %v124, 7
    %v126 = vsub.s32 0, %v125
    %v127 = vrot.slane %v122, %v126
    %v129 = vadd.f32 %v118, %v127
    %v130 = vadd.f32 %v119, %v127
    %v131 = vadd.f32 %v120, %v127
    %v132 = vadd.f32 %v121, %v127
    %133 = vst.msk [vmem:[%s3] sm:$0xff] %vm110, %v129
    %134 = vst.msk [vmem:[%s3 + $0x8] sm:$0xff] %vm110, %v130
    %135 = vst.msk [vmem:[%s3 + $0x10] sm:$0xff] %vm110, %v131
    %136 = vst.msk [vmem:[%s3 + $0x18] sm:$0xff] %vm110, %v132
  $region21: #{_lambda_.30} parent=0 // pred_fallthru
    _
  // Predicated region
  $region22: #{_lambda_.30} parent=0 // pred_check
    _
  $region23: #{_lambda_.30} parent=0 // pred_check_branch
    %138 = sbr.rel (0) target = $region25
  $region24: #{_lambda_.30} parent=0 // pred_region
    _
  $region25: #{_lambda_.30} parent=0 // pred_fallthru
    _
  // Predicated region
  $region26: #{_lambda_.30} parent=0 // pred_check
    _
  $region27: #{_lambda_.30} parent=0 // pred_check_branch
    %140 = sbr.rel (0) target = $region29
  $region28: #{_lambda_.30} parent=0 // pred_region
    _
  $region29: #{_lambda_.30} parent=0 // pred_fallthru
    _

// kernel: _lambda_.29
$region0: #{_lambda_.29}
  #allocation0 [shape = 'u32[]', space=smem, size = 0x4, offset = 0x4, fixed_abs, tag = 'smem constant byte address 0x4 - core index']
  #allocation1 [shape = 'u32[144,128]{1,0:T(1,128)}', space=vmem, size = 0x12000, scoped, tag = 'internal scratch']
  %s0 = inlined_call_operand.vmem [shape: f32[2,16,4], index: 0, kind: input, shape index: {}]
  %s1 = inlined_call_operand.vmem [shape: bf16[4,32], index: 1, kind: input, shape index: {}]
  %s2 = inlined_call_operand.vmem [shape: f32[1,32], index: 2, kind: input, shape index: {}]
  %s3 = inlined_call_operand.vmem [shape: f32[16,32], index: 3, kind: input, shape index: {}]
  %s4 = inlined_call_operand.vmem [shape: f32[2,16,32], index: 4, kind: output, shape index: {}]
  %s5 = sld [smem:[#allocation0]]
  $region49: #{_lambda_.29} parent=0
    _
  %s7 = ssub.s32 1, %s5
  %s8 = scalar_select 0, %s7, %s5
  loop: start=0, step=1, limit=4
  $region2: #{_lambda_.29} parent=0 // loop_pre_header
    _
  $region3: #{_lambda_.29} parent=0 // loop_header
    %s10 = sphi 0, %s14
    %p11 = scmp.ge.s32.totalorder %s10, 4
    %s17 = sphi 0, %s29
    %s18 = sphi 0, %s25
    %s19 = sphi 0, %s17
    %s20 = sphi 0, %s18
    %s21 = sphi 0, %s19
    %s22 = sphi 0, %s20
    %s34 = sphi 0, %s36
    %s37 = sphi 0, %s34
    %s38 = sphi 0, %s37
    %s54 = sphi 0, %s38
    %s58 = sphi 0, %s58
    %s60 = sphi 0, %s58
    %s61 = sphi 0, %s60
    %s75 = sphi 0, %s61
    %s79 = sphi 0, %s79
    %s81 = sphi 0, %s79
    %s82 = sphi 0, %s81
    %s96 = sphi 0, %s82
    %s102 = sphi 0, %s104
    %s105 = sphi 0, %s102
    %s106 = sphi 0, %s105
    %s122 = sphi 0, %s106
    %s130 = sphi 0, %s132
    %s133 = sphi 0, %s130
    %s134 = sphi 0, %s133
    %s150 = sphi 0, %s134
  $region4: #{_lambda_.29} parent=0 // loop_header_branch
    %13 = sbr.rel (%p11) target = $region8
  $region5: #{_lambda_.29} parent=0 // loop_body
    %s15 = ssub.s32 %s10, 1
    %s16 = ssub.s32 %s10, 2
    %s23 = sadd.s32 1, %s18
    %p24 = scmp.ge.s32.totalorder %s23, 1
    %s25 = scalar_select %p24, 0, %s23
    %s26 = sadd.s32 1, %s17
    %s27 = scalar_select %p24, %s26, %s17
    %p28 = scmp.ge.s32.totalorder %s27, 2
    %s29 = scalar_select %p28, 0, %s27
    %s30 = ssub.s32 %s17, %s29
    %s31 = ssub.s32 %s18, %s25
    %s32 = sor.u32 %s30, %s31
    %p33 = scmp.eq.s32.totalorder %s32, 0
    %s35 = sadd.s32 %s34, 1
    %s36 = scalar_select %p33, %s34, %s35
    %p39 = pneg %p33
    %p40 = scmp.eq.s32.totalorder %s10, 1
    %p41 = por %p39, %p40
    %p42 = scmp.ne.s32.totalorder %s34, %s37
    %p43 = scmp.eq.s32.totalorder %s10, 0
    %p44 = por %p42, %p43
    %p45 = scmp.ne.s32.totalorder %s34, %s37
    %p46 = scmp.eq.s32.totalorder %s15, 1
    %p47 = por %p45, %p46
    %p48 = scmp.ne.s32.totalorder %s37, %s38
    %p49 = scmp.eq.s32.totalorder %s15, 0
    %p50 = por %p48, %p49
    %p51 = scmp.ne.s32.totalorder %s37, %s38
    %p52 = scmp.eq.s32.totalorder %s16, 1
    %p53 = por %p51, %p52
    %p55 = scmp.ne.s32.totalorder %s38, %s54
    %p56 = scmp.eq.s32.totalorder %s16, 0
    %p57 = por %p55, %p56
    %s59 = sadd.s32 %s58, 1
    %p62 = scmp.eq.s32.totalorder %s10, 1
    %p63 = scmp.ne.s32.totalorder %s58, %s60
    %p64 = scmp.eq.s32.totalorder %s10, 0
    %p65 = por %p63, %p64
    %p66 = scmp.ne.s32.totalorder %s58, %s60
    %p67 = scmp.eq.s32.totalorder %s15, 1
    %p68 = por %p66, %p67
    %p69 = scmp.ne.s32.totalorder %s60, %s61
    %p70 = scmp.eq.s32.totalorder %s15, 0
    %p71 = por %p69, %p70
    %p72 = scmp.ne.s32.totalorder %s60, %s61
    %p73 = scmp.eq.s32.totalorder %s16, 1
    %p74 = por %p72, %p73
    %p76 = scmp.ne.s32.totalorder %s61, %s75
    %p77 = scmp.eq.s32.totalorder %s16, 0
    %p78 = por %p76, %p77
    %s80 = sadd.s32 %s79, 1
    %p83 = scmp.eq.s32.totalorder %s10, 1
    %p84 = scmp.ne.s32.totalorder %s79, %s81
    %p85 = scmp.eq.s32.totalorder %s10, 0
    %p86 = por %p84, %p85
    %p87 = scmp.ne.s32.totalorder %s79, %s81
    %p88 = scmp.eq.s32.totalorder %s15, 1
    %p89 = por %p87, %p88
    %p90 = scmp.ne.s32.totalorder %s81, %s82
    %p91 = scmp.eq.s32.totalorder %s15, 0
    %p92 = por %p90, %p91
    %p93 = scmp.ne.s32.totalorder %s81, %s82
    %p94 = scmp.eq.s32.totalorder %s16, 1
    %p95 = por %p93, %p94
    %p97 = scmp.ne.s32.totalorder %s82, %s96
    %p98 = scmp.eq.s32.totalorder %s16, 0
    %p99 = por %p97, %p98
    %s100 = ssub.s32 %s18, %s25
    %p101 = scmp.eq.s32.totalorder %s100, 0
    %s103 = sadd.s32 %s102, 1
    %s104 = scalar_select %p101, %s102, %s103
    %p107 = pneg %p101
    %p108 = scmp.eq.s32.totalorder %s10, 1
    %p109 = por %p107, %p108
    %p110 = scmp.ne.s32.totalorder %s102, %s105
    %p111 = scmp.eq.s32.totalorder %s10, 0
    %p112 = por %p110, %p111
    %p113 = scmp.ne.s32.totalorder %s102, %s105
    %p114 = scmp.eq.s32.totalorder %s15, 1
    %p115 = por %p113, %p114
    %p116 = scmp.ne.s32.totalorder %s105, %s106
    %p117 = scmp.eq.s32.totalorder %s15, 0
    %p118 = por %p116, %p117
    %p119 = scmp.ne.s32.totalorder %s105, %s106
    %p120 = scmp.eq.s32.totalorder %s16, 1
    %p121 = por %p119, %p120
    %p123 = scmp.ne.s32.totalorder %s106, %s122
    %p124 = scmp.eq.s32.totalorder %s16, 0
    %p125 = por %p123, %p124
    %s126 = ssub.s32 %s17, %s29
    %s127 = ssub.s32 %s18, %s25
    %s128 = sor.u32 %s126, %s127
    %p129 = scmp.eq.s32.totalorder %s128, 0
    %s131 = sadd.s32 %s130, 1
    %s132 = scalar_select %p129, %s130, %s131
    %p135 = pneg %p129
    %p136 = scmp.eq.s32.totalorder %s10, 1
    %p137 = por %p135, %p136
    %p138 = scmp.ne.s32.totalorder %s130, %s133
    %p139 = scmp.eq.s32.totalorder %s10, 0
    %p140 = por %p138, %p139
    %p141 = scmp.ne.s32.totalorder %s130, %s133
    %p142 = scmp.eq.s32.totalorder %s15, 1
    %p143 = por %p141, %p142
    %p144 = scmp.ne.s32.totalorder %s133, %s134
    %p145 = scmp.eq.s32.totalorder %s15, 0
    %p146 = por %p144, %p145
    %p147 = scmp.ne.s32.totalorder %s133, %s134
    %p148 = scmp.eq.s32.totalorder %s16, 1
    %p149 = por %p147, %p148
    %p151 = scmp.ne.s32.totalorder %s134, %s150
    %p152 = scmp.eq.s32.totalorder %s16, 0
    %p153 = por %p151, %p152
    %p154 = scmp.le.s32.totalorder 1, %s10
    %p155 = scmp.lt.s32.totalorder %s10, 3
    %p156 = pnand %p154, %p155
    %p157 = pneg %p156
    // Predicated region
    $region9: #{_lambda_.29} parent=5 // pred_check
      _
    $region10: #{_lambda_.29} parent=5 // pred_check_branch
      %159 = sbr.rel (%p156) target = $region12
    $region11: #{_lambda_.29} parent=5 // pred_region
      %s160 = ssub.s32 %s10, 1
      // Predicated region
      $region13: #{_lambda_.29} parent=11 // pred_check
        %p161 = pneg %p71
      $region14: #{_lambda_.29} parent=11 // pred_check_branch
        %163 = sbr.rel (%p161) target = $region16
      $region15: #{_lambda_.29} parent=11 // pred_region
        _
      $region16: #{_lambda_.29} parent=11 // pred_fallthru
        _
      // Predicated region
      $region17: #{_lambda_.29} parent=11 // pred_check
        %p164 = pneg %p92
      $region18: #{_lambda_.29} parent=11 // pred_check_branch
        %166 = sbr.rel (%p164) target = $region20
      $region19: #{_lambda_.29} parent=11 // pred_region
        _
      $region20: #{_lambda_.29} parent=11 // pred_fallthru
        _
      // Predicated region
      $region21: #{_lambda_.29} parent=11 // pred_check
        %p167 = pneg %p118
      $region22: #{_lambda_.29} parent=11 // pred_check_branch
        %169 = sbr.rel (%p167) target = $region24
      $region23: #{_lambda_.29} parent=11 // pred_region
        %s170 = smul.u32 2, %s20
        %p171 = scmp.lt.s32.totalorder %s170, 1
        %s172 = scalar_select %p171, %s170, 1
        %s173 = smul.addr %s172, 8
        %s174 = scalar_lea.vmem %s3, %s173
        %s175 = smul.u32 2, %s20
      $region24: #{_lambda_.29} parent=11 // pred_fallthru
        _
    $region12: #{_lambda_.29} parent=5 // pred_fallthru
      _
    %p176 = scmp.lt.s32.totalorder %s10, 2
    // Predicated region
    $region25: #{_lambda_.29} parent=5 // pred_check
      %p177 = pneg %p176
    $region26: #{_lambda_.29} parent=5 // pred_check_branch
      %179 = sbr.rel (%p177) target = $region28
    $region27: #{_lambda_.29} parent=5 // pred_region
      // Predicated region
      $region29: #{_lambda_.29} parent=27 // pred_check
        %p180 = pneg %p44
      $region30: #{_lambda_.29} parent=27 // pred_check_branch
        %182 = sbr.rel (%p180) target = $region32
      $region31: #{_lambda_.29} parent=27 // pred_region
        %s183 = smul.u32 2, %s18
        %p184 = scmp.lt.s32.totalorder %s17, 1
        %s185 = scalar_select %p184, %s17, 1
        %p186 = scmp.lt.s32.totalorder %s183, 1
        %s187 = scalar_select %p186, %s183, 1
        %s188 = smul.addr %s185, 2
        %s189 = sadd.s32 %s187, %s188
        %s190 = smul.addr %s189, 8
        %s191 = scalar_lea.vmem %s0, %s190
        %s192 = smul.u32 2, %s18
      $region32: #{_lambda_.29} parent=27 // pred_fallthru
        _
    $region28: #{_lambda_.29} parent=5 // pred_fallthru
      _
    %p193 = scmp.le.s32.totalorder 1, %s10
    %p194 = scmp.lt.s32.totalorder %s10, 3
    %p195 = pnand %p193, %p194
    %p196 = pneg %p195
    // Predicated region
    $region33: #{_lambda_.29} parent=5 // pred_check
      _
    $region34: #{_lambda_.29} parent=5 // pred_check_branch
      %198 = sbr.rel (%p195) target = $region36
    $region35: #{_lambda_.29} parent=5 // pred_region
      %s199 = ssub.s32 %s10, 1
      %s200 = smul.u32 2, %s20
      %p201 = scmp.lt.s32.totalorder %s19, 1
      %s202 = scalar_select %p201, %s19, 1
      %p203 = scmp.lt.s32.totalorder %s200, 1
      %s204 = scalar_select %p203, %s200, 1
      %s205 = smul.addr %s202, 2
      %s206 = sadd.s32 %s204, %s205
      %s207 = smul.addr %s206, 8
      %s208 = scalar_lea.vmem %s0, %s207
      %p209 = pneg %p50
      %p210 = pneg %p47
      %p211 = pneg %p71
      %p212 = pneg %p68
      %p213 = pneg %p92
      %p214 = pneg %p89
      %s215 = smul.u32 2, %s20
      %p216 = scmp.lt.s32.totalorder %s215, 1
      %s217 = scalar_select %p216, %s215, 1
      %s218 = smul.addr %s217, 8
      %s219 = scalar_lea.vmem %s3, %s218
      %p220 = pneg %p118
      %p221 = pneg %p115
      %p222 = pneg %p146
      %p223 = pneg %p143
      %s224 = smul.u32 2, %s20
      %p225 = scmp.lt.s32.totalorder %s19, 1
      %s226 = scalar_select %p225, %s19, 1
      %p227 = scmp.lt.s32.totalorder %s224, 1
      %s228 = scalar_select %p227, %s224, 1
      %s229 = smul.addr %s226, 2
      %s230 = sadd.s32 %s228, %s229
      %s231 = smul.addr %s230, 8
      %s232 = scalar_lea.vmem %s4, %s231
      %s233 = smul.u32 2, %s20
      %p234 = scmp.lt.s32.totalorder %s19, 1
      %s235 = scalar_select %p234, %s19, 1
      %p236 = scmp.lt.s32.totalorder %s233, 1
      %s237 = scalar_select %p236, %s233, 1
      %s238 = smul.addr %s235, 2
      %s239 = sadd.s32 %s237, %s238
      %s240 = smul.addr %s239, 8
      %s241 = scalar_lea.vmem %s0, %s240
      %s242 = smul.u32 2, %s20
      %s243 = smul.u32 2, %s20
      %p244 = scmp.lt.s32.totalorder %s243, 1
      %s245 = scalar_select %p244, %s243, 1
      %s246 = smul.addr %s245, 8
      %s247 = scalar_lea.vmem %s3, %s246
      %s248 = smul.u32 2, %s20
      %s249 = smul.u32 2, %s20
      %p250 = scmp.lt.s32.totalorder %s19, 1
      %s251 = scalar_select %p250, %s19, 1
      %p252 = scmp.lt.s32.totalorder %s249, 1
      %s253 = scalar_select %p252, %s249, 1
      %s254 = smul.addr %s251, 2
      %s255 = sadd.s32 %s253, %s254
      %s256 = smul.addr %s255, 8
      %s257 = scalar_lea.vmem %s4, %s256
      %s258 = smul.u32 2, %s20
      %v260 = vld [vmem:[%s241] sm:$0xff]
      %v261 = vld [vmem:[%s241 + $0x8] sm:$0xff]
      %v262 = vpack.c.bf16 %v261, %v260
      %v263 = vld [vmem:[%s1] sm:$0x3]
      %v264 = vld [vmem:[%s2] sm:$0x1]
      %v266 = vlaneseq
      %v267 = vshrl.u32 %v266, 7
      %v268 = vsub.s32 0, %v267
      %v269 = vrot.slane %v264, %v268
      %vm271 = vcmask 31744
      %v273 = vsel %vm271, %v262, 0
      %vm275 = vcmask 1041408
      %v277 = vsel %vm275, %v263, 0
      %279 = vmatprep.subr.bf16.mxu0 0
      %280 = vmatpush1.bf16.msra.mxu0 %v277
      %281 = vmatprep.subr.bf16.mxu0 0
      %282 = vmatpush1.bf16.msra.mxu0 0
      %283 = vmatprep.subr.bf16.mxu0 0
      %284 = vmatpush1.bf16.msra.mxu0 0
      %285 = vmatprep.subr.bf16.mxu0 0
      %286 = vmatpush1.bf16.msra.mxu0 0
      %287 = vmatprep.subr.bf16.mxu0 0
      %288 = vmatpush1.bf16.msra.mxu0 0
      %289 = vmatprep.subr.bf16.mxu0 0
      %290 = vmatpush1.bf16.msra.mxu0 0
      %291 = vmatprep.subr.bf16.mxu0 0
      %292 = vmatpush1.bf16.msra.mxu0 0
      %293 = vmatprep.subr.bf16.mxu0 0
      %294 = vmatpush1.bf16.msra.mxu0 0
      %295 = vmatprep.subr.bf16.mxu0 0
      %296 = vmatpush1.bf16.msra.mxu0 0
      %297 = vmatprep.subr.bf16.mxu0 0
      %298 = vmatpush1.bf16.msra.mxu0 0
      %299 = vmatprep.subr.bf16.mxu0 0
      %300 = vmatpush1.bf16.msra.mxu0 0
      %301 = vmatprep.subr.bf16.mxu0 0
      %302 = vmatpush1.bf16.msra.mxu0 0
      %303 = vmatprep.subr.bf16.mxu0 0
      %304 = vmatpush1.bf16.msra.mxu0 0
      %305 = vmatprep.subr.bf16.mxu0 0
      %306 = vmatpush1.bf16.msra.mxu0 0
      %307 = vmatprep.subr.bf16.mxu0 0
      %308 = vmatpush1.bf16.msra.mxu0 0
      %309 = vmatprep.subr.bf16.mxu0 0
      %310 = vmatpush1.bf16.msra.mxu0 0
      %311 = vmatprep.mubr.bf16.mxu0 0
      %312 = vmatmul.mubr.bf16.gmra.mrb[0].mxu0 %v273
      %v313 = vpop.f32.mrb[0].mxu0
      %v314 = vadd.f32 %v269, %v313
      %v315 = vpop.f32.mrb[0].mxu0
      %v316 = vpop.f32.mrb[0].mxu0
      %v317 = vadd.f32 %v269, %v316
      %v318 = vpop.f32.mrb[0].mxu0
      %319 = vdwg.mxu0
      %v320 = vld [vmem:[%s247] sm:$0xff]
      %v321 = vld [vmem:[%s247 + $0x8] sm:$0xff]
      %v322 = vadd.f32 %v314, %v320
      %v323 = vadd.f32 %v317, %v321
      %vm324 = vcmask 261120
      %325 = vst.msk [vmem:[%s257] sm:$0xff] %vm324, %v322
      %326 = vst.msk [vmem:[%s257 + $0x8] sm:$0xff] %vm324, %v323
      %s327 = smul.u32 2, %s20
      %p328 = scmp.lt.s32.totalorder %s19, 1
      %s329 = scalar_select %p328, %s19, 1
      %p330 = scmp.lt.s32.totalorder %s327, 1
      %s331 = scalar_select %p330, %s327, 1
      %s332 = smul.addr %s329, 2
      %s333 = sadd.s32 %s331, %s332
      %s334 = smul.addr %s333, 8
      %s335 = scalar_lea.vmem %s4, %s334
      // Predicated region
      $region37: #{_lambda_.29} parent=35 // pred_check
        %p336 = pneg %p143
      $region38: #{_lambda_.29} parent=35 // pred_check_branch
        %338 = sbr.rel (%p336) target = $region40
      $region39: #{_lambda_.29} parent=35 // pred_region
        %s339 = smul.u32 2, %s20
      $region40: #{_lambda_.29} parent=35 // pred_fallthru
        _
    $region36: #{_lambda_.29} parent=5 // pred_fallthru
      _
    %p340 = scmp.le.s32.totalorder 2, %s10
    // Predicated region
    $region41: #{_lambda_.29} parent=5 // pred_check
      %p341 = pneg %p340
    $region42: #{_lambda_.29} parent=5 // pred_check_branch
      %343 = sbr.rel (%p341) target = $region44
    $region43: #{_lambda_.29} parent=5 // pred_region
      %s344 = ssub.s32 %s10, 2
      // Predicated region
      $region45: #{_lambda_.29} parent=43 // pred_check
        %p345 = pneg %p149
      $region46: #{_lambda_.29} parent=43 // pred_check_branch
        %347 = sbr.rel (%p345) target = $region48
      $region47: #{_lambda_.29} parent=43 // pred_region
        %s348 = smul.u32 2, %s22
        %p349 = scmp.lt.s32.totalorder %s21, 1
        %s350 = scalar_select %p349, %s21, 1
        %p351 = scmp.lt.s32.totalorder %s348, 1
        %s352 = scalar_select %p351, %s348, 1
        %s353 = smul.addr %s350, 2
        %s354 = sadd.s32 %s352, %s353
        %s355 = smul.addr %s354, 8
        %s356 = scalar_lea.vmem %s4, %s355
      $region48: #{_lambda_.29} parent=43 // pred_fallthru
        _
    $region44: #{_lambda_.29} parent=5 // pred_fallthru
      _
  $region6: #{_lambda_.29} parent=0 // loop_footer
    %s14 = sadd.s32 1, %s10
  $region7: #{_lambda_.29} parent=0 // loop_footer_branch
    %9 = sbr.rel target = $region3
  $region8: #{_lambda_.29} parent=0 // loop_exit
    _

// kernel: _lambda_.31
$region0: #{_lambda_.31}
  #allocation0 [shape = 'u32[]', space=smem, size = 0x4, offset = 0x4, fixed_abs, tag = 'smem constant byte address 0x4 - core index']
  #allocation1 [shape = 'u32[144,128]{1,0:T(1,128)}', space=vmem, size = 0x12000, scoped, tag = 'internal scratch']
  %s0 = inlined_call_operand.vmem [shape: f32[2,16,96], index: 0, kind: input, shape index: {}]
  %s1 = inlined_call_operand.vmem [shape: f32[2,16,32], index: 1, kind: output, shape index: {}]
  %s2 = sld [smem:[#allocation0]]
  $region37: #{_lambda_.31} parent=0
    _
  %s4 = ssub.s32 1, %s2
  %s5 = scalar_select 0, %s4, %s2
  loop: start=0, step=1, limit=4
  $region2: #{_lambda_.31} parent=0 // loop_pre_header
    _
  $region3: #{_lambda_.31} parent=0 // loop_header
    %s7 = sphi 0, %s11
    %p8 = scmp.ge.s32.totalorder %s7, 4
    %s17 = sphi 0, %s19
    %s20 = sphi 0, %s17
    %s21 = sphi 0, %s20
    %s37 = sphi 0, %s21
    %s43 = sphi 0, %s45
    %s46 = sphi 0, %s43
    %s47 = sphi 0, %s46
    %s63 = sphi 0, %s47
  $region4: #{_lambda_.31} parent=0 // loop_header_branch
    %10 = sbr.rel (%p8) target = $region8
  $region5: #{_lambda_.31} parent=0 // loop_body
    %s12 = ssub.s32 %s7, 1
    %s13 = ssub.s32 %s7, 2
    %s14 = sadd.s32 %s7, 1
    %s15 = ssub.s32 %s7, %s14
    %p16 = scmp.eq.s32.totalorder %s15, 0
    %s18 = sadd.s32 %s17, 1
    %s19 = scalar_select %p16, %s17, %s18
    %p22 = pneg %p16
    %p23 = scmp.eq.s32.totalorder %s7, 1
    %p24 = por %p22, %p23
    %p25 = scmp.ne.s32.totalorder %s17, %s20
    %p26 = scmp.eq.s32.totalorder %s7, 0
    %p27 = por %p25, %p26
    %p28 = scmp.ne.s32.totalorder %s17, %s20
    %p29 = scmp.eq.s32.totalorder %s12, 1
    %p30 = por %p28, %p29
    %p31 = scmp.ne.s32.totalorder %s20, %s21
    %p32 = scmp.eq.s32.totalorder %s12, 0
    %p33 = por %p31, %p32
    %p34 = scmp.ne.s32.totalorder %s20, %s21
    %p35 = scmp.eq.s32.totalorder %s13, 1
    %p36 = por %p34, %p35
    %p38 = scmp.ne.s32.totalorder %s21, %s37
    %p39 = scmp.eq.s32.totalorder %s13, 0
    %p40 = por %p38, %p39
    %s41 = ssub.s32 %s7, %s14
    %p42 = scmp.eq.s32.totalorder %s41, 0
    %s44 = sadd.s32 %s43, 1
    %s45 = scalar_select %p42, %s43, %s44
    %p48 = pneg %p42
    %p49 = scmp.eq.s32.totalorder %s7, 1
    %p50 = por %p48, %p49
    %p51 = scmp.ne.s32.totalorder %s43, %s46
    %p52 = scmp.eq.s32.totalorder %s7, 0
    %p53 = por %p51, %p52
    %p54 = scmp.ne.s32.totalorder %s43, %s46
    %p55 = scmp.eq.s32.totalorder %s12, 1
    %p56 = por %p54, %p55
    %p57 = scmp.ne.s32.totalorder %s46, %s47
    %p58 = scmp.eq.s32.totalorder %s12, 0
    %p59 = por %p57, %p58
    %p60 = scmp.ne.s32.totalorder %s46, %s47
    %p61 = scmp.eq.s32.totalorder %s13, 1
    %p62 = por %p60, %p61
    %p64 = scmp.ne.s32.totalorder %s47, %s63
    %p65 = scmp.eq.s32.totalorder %s13, 0
    %p66 = por %p64, %p65
    %p67 = scmp.le.s32.totalorder 1, %s7
    %p68 = scmp.lt.s32.totalorder %s7, 3
    %p69 = pnand %p67, %p68
    %p70 = pneg %p69
    // Predicated region
    $region9: #{_lambda_.31} parent=5 // pred_check
      _
    $region10: #{_lambda_.31} parent=5 // pred_check_branch
      %72 = sbr.rel (%p69) target = $region12
    $region11: #{_lambda_.31} parent=5 // pred_region
      %s73 = ssub.s32 %s7, 1
    $region12: #{_lambda_.31} parent=5 // pred_fallthru
      _
    %p74 = scmp.lt.s32.totalorder %s7, 2
    // Predicated region
    $region13: #{_lambda_.31} parent=5 // pred_check
      %p75 = pneg %p74
    $region14: #{_lambda_.31} parent=5 // pred_check_branch
      %77 = sbr.rel (%p75) target = $region16
    $region15: #{_lambda_.31} parent=5 // pred_region
      // Predicated region
      $region17: #{_lambda_.31} parent=15 // pred_check
        %p78 = pneg %p27
      $region18: #{_lambda_.31} parent=15 // pred_check_branch
        %80 = sbr.rel (%p78) target = $region20
      $region19: #{_lambda_.31} parent=15 // pred_region
        %p81 = scmp.lt.s32.totalorder %s7, 1
        %s82 = scalar_select %p81, %s7, 1
        %s83 = smul.addr %s82, 2
        %s84 = smul.addr %s83, 8
        %s85 = scalar_lea.vmem %s0, %s84
      $region20: #{_lambda_.31} parent=15 // pred_fallthru
        _
    $region16: #{_lambda_.31} parent=5 // pred_fallthru
      _
    %p86 = scmp.le.s32.totalorder 1, %s7
    %p87 = scmp.lt.s32.totalorder %s7, 3
    %p88 = pnand %p86, %p87
    %p89 = pneg %p88
    // Predicated region
    $region21: #{_lambda_.31} parent=5 // pred_check
      _
    $region22: #{_lambda_.31} parent=5 // pred_check_branch
      %91 = sbr.rel (%p88) target = $region24
    $region23: #{_lambda_.31} parent=5 // pred_region
      %s92 = ssub.s32 %s7, 1
      %p93 = scmp.lt.s32.totalorder %s12, 1
      %s94 = scalar_select %p93, %s12, 1
      %s95 = smul.addr %s94, 2
      %s96 = smul.addr %s95, 8
      %s97 = scalar_lea.vmem %s0, %s96
      %p98 = pneg %p33
      %p99 = pneg %p30
      %p100 = pneg %p59
      %p101 = pneg %p56
      %p102 = scmp.lt.s32.totalorder %s12, 1
      %s103 = scalar_select %p102, %s12, 1
      %s104 = smul.addr %s103, 2
      %s105 = smul.addr %s104, 8
      %s106 = scalar_lea.vmem %s1, %s105
      %p107 = scmp.lt.s32.totalorder %s12, 1
      %s108 = scalar_select %p107, %s12, 1
      %s109 = smul.addr %s108, 2
      %s110 = smul.addr %s109, 8
      %s111 = scalar_lea.vmem %s0, %s110
      %p112 = scmp.lt.s32.totalorder %s12, 1
      %s113 = scalar_select %p112, %s12, 1
      %s114 = smul.addr %s113, 2
      %s115 = smul.addr %s114, 8
      %s116 = scalar_lea.vmem %s1, %s115
      %v118 = vld [vmem:[%s111] sm:$0xff]
      %v119 = vld [vmem:[%s111 + $0x8] sm:$0xff]
      %v120 = vpack.c.bf16 %v119, %v118
      %122 = vrot.lane.b32.xlu0 %v120, 96
      %v123 = vpop.permute.xlu0 %122
      %vm124 = vcmask 64512
      %v126 = vsel %vm124, %v120, 0
      %v129 = vsel %vm124, %v123, 0
      %131 = vmatprep.subr.bf16.mxu0 0
      %132 = vmatpush1.bf16.xpose.msra.mxu0 %v129
      %133 = vmatprep.subr.bf16.mxu0 0
      %134 = vmatpush1.bf16.xpose.msra.mxu0 0
      %135 = vmatprep.subr.bf16.mxu0 0
      %136 = vmatpush1.bf16.xpose.msra.mxu0 0
      %137 = vmatprep.subr.bf16.mxu0 0
      %138 = vmatpush1.bf16.xpose.msra.mxu0 0
      %139 = vmatprep.subr.bf16.mxu0 0
      %140 = vmatpush1.bf16.xpose.msra.mxu0 0
      %141 = vmatprep.subr.bf16.mxu0 0
      %142 = vmatpush1.bf16.xpose.msra.mxu0 0
      %143 = vmatprep.subr.bf16.mxu0 0
      %144 = vmatpush1.bf16.xpose.msra.mxu0 0
      %145 = vmatprep.subr.bf16.mxu0 0
      %146 = vmatpush1.bf16.xpose.msra.mxu0 0
      %147 = vmatprep.subr.bf16.mxu0 0
      %148 = vmatpush1.bf16.xpose.msra.mxu0 0
      %149 = vmatprep.subr.bf16.mxu0 0
      %150 = vmatpush1.bf16.xpose.msra.mxu0 0
      %151 = vmatprep.subr.bf16.mxu0 0
      %152 = vmatpush1.bf16.xpose.msra.mxu0 0
      %153 = vmatprep.subr.bf16.mxu0 0
      %154 = vmatpush1.bf16.xpose.msra.mxu0 0
      %155 = vmatprep.subr.bf16.mxu0 0
      %156 = vmatpush1.bf16.xpose.msra.mxu0 0
      %157 = vmatprep.subr.bf16.mxu0 0
      %158 = vmatpush1.bf16.xpose.msra.mxu0 0
      %159 = vmatprep.subr.bf16.mxu0 0
      %160 = vmatpush1.bf16.xpose.msra.mxu0 0
      %161 = vmatprep.subr.bf16.mxu0 0
      %162 = vmatpush1.bf16.xpose.msra.mxu0 0
      %163 = vmatprep.mubr.bf16.mxu0 0
      %164 = vmatmul.mubr.bf16.gmra.mrb[0].mxu0 %v126
      %v165 = vpop.f32.mrb[0].mxu0
      %v166 = vadd.f32 0.0, %v165
      %v167 = vpop.f32.mrb[0].mxu0
      %v168 = vpop.f32.mrb[0].mxu0
      %v169 = vadd.f32 0.0, %v168
      %v170 = vpop.f32.mrb[0].mxu0
      %171 = vdwg.mxu0
      %v172 = vmul.f32 %v166, 0.35355338
      %v173 = vmul.f32 %v169, 0.35355338
      %vm174 = vcmask 130048
      %v175 = vsel %vm174, %v172, -inf
      %176 = vmax.xlane.f32.xlu0 %v175
      %v177 = vpop.xlane.xlu0 %176
      %v178 = vsel %vm174, %v173, -inf
      %179 = vmax.xlane.f32.xlu0 %v178
      %v180 = vpop.xlane.xlu0 %179
      %v181 = vsub.f32 %v172, %v177
      %v182 = vsub.f32 %v173, %v180
      %v183 = vmul.f32 %v181, 1.442695
      %v184 = vpow.pop %v183
      %v185 = vmul.f32 %v182, 1.442695
      %v186 = vpow.pop %v185
      %v187 = vsel %vm174, %v184, 0.0
      %188 = vadd.xlane.f32.xlu0 %v187
      %v189 = vpop.xlane.xlu0 %188
      %v190 = vsel %vm174, %v186, 0.0
      %191 = vadd.xlane.f32.xlu0 %v190
      %v192 = vpop.xlane.xlu0 %191
      %v193 = vrcp.pop %v189
      %v194 = vrcp.pop %v192
      %v195 = vmul.f32 %v184, %v193
      %v196 = vmul.f32 %v186, %v194
      %v197 = vpack.c.bf16 %v196, %v195
      %198 = vrot.lane.b32.xlu0 %v120, 64
      %v199 = vpop.permute.xlu0 %198
      %v202 = vsel %vm174, %v197, 0
      %204 = vmatprep.subr.bf16.mxu0 0
      %205 = vmatpush1.bf16.msra.mxu0 %v199
      %206 = vmatprep.subr.bf16.mxu0 0
      %207 = vmatpush1.bf16.msra.mxu0 0
      %208 = vmatprep.subr.bf16.mxu0 0
      %209 = vmatpush1.bf16.msra.mxu0 0
      %210 = vmatprep.subr.bf16.mxu0 0
      %211 = vmatpush1.bf16.msra.mxu0 0
      %212 = vmatprep.subr.bf16.mxu0 0
      %213 = vmatpush1.bf16.msra.mxu0 0
      %214 = vmatprep.subr.bf16.mxu0 0
      %215 = vmatpush1.bf16.msra.mxu0 0
      %216 = vmatprep.subr.bf16.mxu0 0
      %217 = vmatpush1.bf16.msra.mxu0 0
      %218 = vmatprep.subr.bf16.mxu0 0
      %219 = vmatpush1.bf16.msra.mxu0 0
      %220 = vmatprep.subr.bf16.mxu0 0
      %221 = vmatpush1.bf16.msra.mxu0 0
      %222 = vmatprep.subr.bf16.mxu0 0
      %223 = vmatpush1.bf16.msra.mxu0 0
      %224 = vmatprep.subr.bf16.mxu0 0
      %225 = vmatpush1.bf16.msra.mxu0 0
      %226 = vmatprep.subr.bf16.mxu0 0
      %227 = vmatpush1.bf16.msra.mxu0 0
      %228 = vmatprep.subr.bf16.mxu0 0
      %229 = vmatpush1.bf16.msra.mxu0 0
      %230 = vmatprep.subr.bf16.mxu0 0
      %231 = vmatpush1.bf16.msra.mxu0 0
      %232 = vmatprep.subr.bf16.mxu0 0
      %233 = vmatpush1.bf16.msra.mxu0 0
      %234 = vmatprep.subr.bf16.mxu0 0
      %235 = vmatpush1.bf16.msra.mxu0 0
      %236 = vmatprep.mubr.bf16.mxu0 0
      %237 = vmatmul.mubr.bf16.gmra.mrb[0].mxu0 %v202
      %v238 = vpop.f32.mrb[0].mxu0
      %v239 = vadd.f32 0.0, %v238
      %v240 = vpop.f32.mrb[0].mxu0
      %v241 = vpop.f32.mrb[0].mxu0
      %v242 = vadd.f32 0.0, %v241
      %v243 = vpop.f32.mrb[0].mxu0
      %244 = vdwg.mxu0
      %245 = vrot.lane.b32.xlu0 %v120, 120
      %v246 = vpop.permute.xlu0 %245
      %247 = vrot.lane.b32.xlu0 %v120, 88
      %v248 = vpop.permute.xlu0 %247
      %v250 = vsel %vm124, %v246, 0
      %v253 = vsel %vm124, %v248, 0
      %255 = vmatprep.subr.bf16.mxu0 0
      %256 = vmatpush1.bf16.xpose.msra.mxu0 %v253
      %257 = vmatprep.subr.bf16.mxu0 0
      %258 = vmatpush1.bf16.xpose.msra.mxu0 0
      %259 = vmatprep.subr.bf16.mxu0 0
      %260 = vmatpush1.bf16.xpose.msra.mxu0 0
      %261 = vmatprep.subr.bf16.mxu0 0
      %262 = vmatpush1.bf16.xpose.msra.mxu0 0
      %263 = vmatprep.subr.bf16.mxu0 0
      %264 = vmatpush1.bf16.xpose.msra.mxu0 0
      %265 = vmatprep.subr.bf16.mxu0 0
      %266 = vmatpush1.bf16.xpose.msra.mxu0 0
      %267 = vmatprep.subr.bf16.mxu0 0
      %268 = vmatpush1.bf16.xpose.msra.mxu0 0
      %269 = vmatprep.subr.bf16.mxu0 0
      %270 = vmatpush1.bf16.xpose.msra.mxu0 0
      %271 = vmatprep.subr.bf16.mxu0 0
      %272 = vmatpush1.bf16.xpose.msra.mxu0 0
      %273 = vmatprep.subr.bf16.mxu0 0
      %274 = vmatpush1.bf16.xpose.msra.mxu0 0
      %275 = vmatprep.subr.bf16.mxu0 0
      %276 = vmatpush1.bf16.xpose.msra.mxu0 0
      %277 = vmatprep.subr.bf16.mxu0 0
      %278 = vmatpush1.bf16.xpose.msra.mxu0 0
      %279 = vmatprep.subr.bf16.mxu0 0
      %280 = vmatpush1.bf16.xpose.msra.mxu0 0
      %281 = vmatprep.subr.bf16.mxu0 0
      %282 = vmatpush1.bf16.xpose.msra.mxu0 0
      %283 = vmatprep.subr.bf16.mxu0 0
      %284 = vmatpush1.bf16.xpose.msra.mxu0 0
      %285 = vmatprep.subr.bf16.mxu0 0
      %286 = vmatpush1.bf16.xpose.msra.mxu0 0
      %287 = vmatprep.mubr.bf16.mxu0 0
      %288 = vmatmul.mubr.bf16.gmra.mrb[0].mxu0 %v250
      %v289 = vpop.f32.mrb[0].mxu0
      %v290 = vadd.f32 0.0, %v289
      %v291 = vpop.f32.mrb[0].mxu0
      %v292 = vpop.f32.mrb[0].mxu0
      %v293 = vadd.f32 0.0, %v292
      %v294 = vpop.f32.mrb[0].mxu0
      %295 = vdwg.mxu0
      %v296 = vmul.f32 %v290, 0.35355338
      %v297 = vmul.f32 %v293, 0.35355338
      %v298 = vsel %vm174, %v296, -inf
      %299 = vmax.xlane.f32.xlu0 %v298
      %v300 = vpop.xlane.xlu0 %299
      %v301 = vsel %vm174, %v297, -inf
      %302 = vmax.xlane.f32.xlu0 %v301
      %v303 = vpop.xlane.xlu0 %302
      %v304 = vsub.f32 %v296, %v300
      %v305 = vsub.f32 %v297, %v303
      %v306 = vmul.f32 %v304, 1.442695
      %v307 = vpow.pop %v306
      %v308 = vmul.f32 %v305, 1.442695
      %v309 = vpow.pop %v308
      %v310 = vsel %vm174, %v307, 0.0
      %311 = vadd.xlane.f32.xlu0 %v310
      %v312 = vpop.xlane.xlu0 %311
      %v313 = vsel %vm174, %v309, 0.0
      %314 = vadd.xlane.f32.xlu0 %v313
      %v315 = vpop.xlane.xlu0 %314
      %v316 = vrcp.pop %v312
      %v317 = vrcp.pop %v315
      %v318 = vmul.f32 %v307, %v316
      %v319 = vmul.f32 %v309, %v317
      %v320 = vpack.c.bf16 %v319, %v318
      %321 = vrot.lane.b32.xlu0 %v120, 56
      %v322 = vpop.permute.xlu0 %321
      %v325 = vsel %vm174, %v320, 0
      %327 = vmatprep.subr.bf16.mxu0 0
      %328 = vmatpush1.bf16.msra.mxu0 %v322
      %329 = vmatprep.subr.bf16.mxu0 0
      %330 = vmatpush1.bf16.msra.mxu0 0
      %331 = vmatprep.subr.bf16.mxu0 0
      %332 = vmatpush1.bf16.msra.mxu0 0
      %333 = vmatprep.subr.bf16.mxu0 0
      %334 = vmatpush1.bf16.msra.mxu0 0
      %335 = vmatprep.subr.bf16.mxu0 0
      %336 = vmatpush1.bf16.msra.mxu0 0
      %337 = vmatprep.subr.bf16.mxu0 0
      %338 = vmatpush1.bf16.msra.mxu0 0
      %339 = vmatprep.subr.bf16.mxu0 0
      %340 = vmatpush1.bf16.msra.mxu0 0
      %341 = vmatprep.subr.bf16.mxu0 0
      %342 = vmatpush1.bf16.msra.mxu0 0
      %343 = vmatprep.subr.bf16.mxu0 0
      %344 = vmatpush1.bf16.msra.mxu0 0
      %345 = vmatprep.subr.bf16.mxu0 0
      %346 = vmatpush1.bf16.msra.mxu0 0
      %347 = vmatprep.subr.bf16.mxu0 0
      %348 = vmatpush1.bf16.msra.mxu0 0
      %349 = vmatprep.subr.bf16.mxu0 0
      %350 = vmatpush1.bf16.msra.mxu0 0
      %351 = vmatprep.subr.bf16.mxu0 0
      %352 = vmatpush1.bf16.msra.mxu0 0
      %353 = vmatprep.subr.bf16.mxu0 0
      %354 = vmatpush1.bf16.msra.mxu0 0
      %355 = vmatprep.subr.bf16.mxu0 0
      %356 = vmatpush1.bf16.msra.mxu0 0
      %357 = vmatprep.subr.bf16.mxu0 0
      %358 = vmatpush1.bf16.msra.mxu0 0
      %359 = vmatprep.mubr.bf16.mxu0 0
      %360 = vmatmul.mubr.bf16.gmra.mrb[0].mxu0 %v325
      %v361 = vpop.f32.mrb[0].mxu0
      %v362 = vadd.f32 0.0, %v361
      %v363 = vpop.f32.mrb[0].mxu0
      %v364 = vpop.f32.mrb[0].mxu0
      %v365 = vadd.f32 0.0, %v364
      %v366 = vpop.f32.mrb[0].mxu0
      %367 = vdwg.mxu0
      %368 = vrot.lane.b32.xlu0 %v120, 112
      %v369 = vpop.permute.xlu0 %368
      %370 = vrot.lane.b32.xlu0 %v120, 80
      %v371 = vpop.permute.xlu0 %370
      %v373 = vsel %vm124, %v369, 0
      %v376 = vsel %vm124, %v371, 0
      %378 = vmatprep.subr.bf16.mxu0 0
      %379 = vmatpush1.bf16.xpose.msra.mxu0 %v376
      %380 = vmatprep.subr.bf16.mxu0 0
      %381 = vmatpush1.bf16.xpose.msra.mxu0 0
      %382 = vmatprep.subr.bf16.mxu0 0
      %383 = vmatpush1.bf16.xpose.msra.mxu0 0
      %384 = vmatprep.subr.bf16.mxu0 0
      %385 = vmatpush1.bf16.xpose.msra.mxu0 0
      %386 = vmatprep.subr.bf16.mxu0 0
      %387 = vmatpush1.bf16.xpose.msra.mxu0 0
      %388 = vmatprep.subr.bf16.mxu0 0
      %389 = vmatpush1.bf16.xpose.msra.mxu0 0
      %390 = vmatprep.subr.bf16.mxu0 0
      %391 = vmatpush1.bf16.xpose.msra.mxu0 0
      %392 = vmatprep.subr.bf16.mxu0 0
      %393 = vmatpush1.bf16.xpose.msra.mxu0 0
      %394 = vmatprep.subr.bf16.mxu0 0
      %395 = vmatpush1.bf16.xpose.msra.mxu0 0
      %396 = vmatprep.subr.bf16.mxu0 0
      %397 = vmatpush1.bf16.xpose.msra.mxu0 0
      %398 = vmatprep.subr.bf16.mxu0 0
      %399 = vmatpush1.bf16.xpose.msra.mxu0 0
      %400 = vmatprep.subr.bf16.mxu0 0
      %401 = vmatpush1.bf16.xpose.msra.mxu0 0
      %402 = vmatprep.subr.bf16.mxu0 0
      %403 = vmatpush1.bf16.xpose.msra.mxu0 0
      %404 = vmatprep.subr.bf16.mxu0 0
      %405 = vmatpush1.bf16.xpose.msra.mxu0 0
      %406 = vmatprep.subr.bf16.mxu0 0
      %407 = vmatpush1.bf16.xpose.msra.mxu0 0
      %408 = vmatprep.subr.bf16.mxu0 0
      %409 = vmatpush1.bf16.xpose.msra.mxu0 0
      %410 = vmatprep.mubr.bf16.mxu0 0
      %411 = vmatmul.mubr.bf16.gmra.mrb[0].mxu0 %v373
      %v412 = vpop.f32.mrb[0].mxu0
      %v413 = vadd.f32 0.0, %v412
      %v414 = vpop.f32.mrb[0].mxu0
      %v415 = vpop.f32.mrb[0].mxu0
      %v416 = vadd.f32 0.0, %v415
      %v417 = vpop.f32.mrb[0].mxu0
      %418 = vdwg.mxu0
      %v419 = vmul.f32 %v413, 0.35355338
      %v420 = vmul.f32 %v416, 0.35355338
      %v421 = vsel %vm174, %v419, -inf
      %422 = vmax.xlane.f32.xlu0 %v421
      %v423 = vpop.xlane.xlu0 %422
      %v424 = vsel %vm174, %v420, -inf
      %425 = vmax.xlane.f32.xlu0 %v424
      %v426 = vpop.xlane.xlu0 %425
      %v427 = vsub.f32 %v419, %v423
      %v428 = vsub.f32 %v420, %v426
      %v429 = vmul.f32 %v427, 1.442695
      %v430 = vpow.pop %v429
      %v431 = vmul.f32 %v428, 1.442695
      %v432 = vpow.pop %v431
      %v433 = vsel %vm174, %v430, 0.0
      %434 = vadd.xlane.f32.xlu0 %v433
      %v435 = vpop.xlane.xlu0 %434
      %v436 = vsel %vm174, %v432, 0.0
      %437 = vadd.xlane.f32.xlu0 %v436
      %v438 = vpop.xlane.xlu0 %437
      %v439 = vrcp.pop %v435
      %v440 = vrcp.pop %v438
      %v441 = vmul.f32 %v430, %v439
      %v442 = vmul.f32 %v432, %v440
      %v443 = vpack.c.bf16 %v442, %v441
      %444 = vrot.lane.b32.xlu0 %v120, 48
      %v445 = vpop.permute.xlu0 %444
      %v448 = vsel %vm174, %v443, 0
      %450 = vmatprep.subr.bf16.mxu0 0
      %451 = vmatpush1.bf16.msra.mxu0 %v445
      %452 = vmatprep.subr.bf16.mxu0 0
      %453 = vmatpush1.bf16.msra.mxu0 0
      %454 = vmatprep.subr.bf16.mxu0 0
      %455 = vmatpush1.bf16.msra.mxu0 0
      %456 = vmatprep.subr.bf16.mxu0 0
      %457 = vmatpush1.bf16.msra.mxu0 0
      %458 = vmatprep.subr.bf16.mxu0 0
      %459 = vmatpush1.bf16.msra.mxu0 0
      %460 = vmatprep.subr.bf16.mxu0 0
      %461 = vmatpush1.bf16.msra.mxu0 0
      %462 = vmatprep.subr.bf16.mxu0 0
      %463 = vmatpush1.bf16.msra.mxu0 0
      %464 = vmatprep.subr.bf16.mxu0 0
      %465 = vmatpush1.bf16.msra.mxu0 0
      %466 = vmatprep.subr.bf16.mxu0 0
      %467 = vmatpush1.bf16.msra.mxu0 0
      %468 = vmatprep.subr.bf16.mxu0 0
      %469 = vmatpush1.bf16.msra.mxu0 0
      %470 = vmatprep.subr.bf16.mxu0 0
      %471 = vmatpush1.bf16.msra.mxu0 0
      %472 = vmatprep.subr.bf16.mxu0 0
      %473 = vmatpush1.bf16.msra.mxu0 0
      %474 = vmatprep.subr.bf16.mxu0 0
      %475 = vmatpush1.bf16.msra.mxu0 0
      %476 = vmatprep.subr.bf16.mxu0 0
      %477 = vmatpush1.bf16.msra.mxu0 0
      %478 = vmatprep.subr.bf16.mxu0 0
      %479 = vmatpush1.bf16.msra.mxu0 0
      %480 = vmatprep.subr.bf16.mxu0 0
      %481 = vmatpush1.bf16.msra.mxu0 0
      %482 = vmatprep.mubr.bf16.mxu0 0
      %483 = vmatmul.mubr.bf16.gmra.mrb[0].mxu0 %v448
      %v484 = vpop.f32.mrb[0].mxu0
      %v485 = vadd.f32 0.0, %v484
      %v486 = vpop.f32.mrb[0].mxu0
      %v487 = vpop.f32.mrb[0].mxu0
      %v488 = vadd.f32 0.0, %v487
      %v489 = vpop.f32.mrb[0].mxu0
      %490 = vdwg.mxu0
      %491 = vrot.lane.b32.xlu0 %v120, 104
      %v492 = vpop.permute.xlu0 %491
      %493 = vrot.lane.b32.xlu0 %v120, 72
      %v494 = vpop.permute.xlu0 %493
      %v496 = vsel %vm124, %v492, 0
      %v499 = vsel %vm124, %v494, 0
      %501 = vmatprep.subr.bf16.mxu0 0
      %502 = vmatpush1.bf16.xpose.msra.mxu0 %v499
      %503 = vmatprep.subr.bf16.mxu0 0
      %504 = vmatpush1.bf16.xpose.msra.mxu0 0
      %505 = vmatprep.subr.bf16.mxu0 0
      %506 = vmatpush1.bf16.xpose.msra.mxu0 0
      %507 = vmatprep.subr.bf16.mxu0 0
      %508 = vmatpush1.bf16.xpose.msra.mxu0 0
      %509 = vmatprep.subr.bf16.mxu0 0
      %510 = vmatpush1.bf16.xpose.msra.mxu0 0
      %511 = vmatprep.subr.bf16.mxu0 0
      %512 = vmatpush1.bf16.xpose.msra.mxu0 0
      %513 = vmatprep.subr.bf16.mxu0 0
      %514 = vmatpush1.bf16.xpose.msra.mxu0 0
      %515 = vmatprep.subr.bf16.mxu0 0
      %516 = vmatpush1.bf16.xpose.msra.mxu0 0
      %517 = vmatprep.subr.bf16.mxu0 0
      %518 = vmatpush1.bf16.xpose.msra.mxu0 0
      %519 = vmatprep.subr.bf16.mxu0 0
      %520 = vmatpush1.bf16.xpose.msra.mxu0 0
      %521 = vmatprep.subr.bf16.mxu0 0
      %522 = vmatpush1.bf16.xpose.msra.mxu0 0
      %523 = vmatprep.subr.bf16.mxu0 0
      %524 = vmatpush1.bf16.xpose.msra.mxu0 0
      %525 = vmatprep.subr.bf16.mxu0 0
      %526 = vmatpush1.bf16.xpose.msra.mxu0 0
      %527 = vmatprep.subr.bf16.mxu0 0
      %528 = vmatpush1.bf16.xpose.msra.mxu0 0
      %529 = vmatprep.subr.bf16.mxu0 0
      %530 = vmatpush1.bf16.xpose.msra.mxu0 0
      %531 = vmatprep.subr.bf16.mxu0 0
      %532 = vmatpush1.bf16.xpose.msra.mxu0 0
      %533 = vmatprep.mubr.bf16.mxu0 0
      %534 = vmatmul.mubr.bf16.gmra.mrb[0].mxu0 %v496
      %v535 = vpop.f32.mrb[0].mxu0
      %v536 = vadd.f32 0.0, %v535
      %v537 = vpop.f32.mrb[0].mxu0
      %v538 = vpop.f32.mrb[0].mxu0
      %v539 = vadd.f32 0.0, %v538
      %v540 = vpop.f32.mrb[0].mxu0
      %541 = vdwg.mxu0
      %v542 = vmul.f32 %v536, 0.35355338
      %v543 = vmul.f32 %v539, 0.35355338
      %v544 = vsel %vm174, %v542, -inf
      %545 = vmax.xlane.f32.xlu0 %v544
      %v546 = vpop.xlane.xlu0 %545
      %v547 = vsel %vm174, %v543, -inf
      %548 = vmax.xlane.f32.xlu0 %v547
      %v549 = vpop.xlane.xlu0 %548
      %v550 = vsub.f32 %v542, %v546
      %v551 = vsub.f32 %v543, %v549
      %v552 = vmul.f32 %v550, 1.442695
      %v553 = vpow.pop %v552
      %v554 = vmul.f32 %v551, 1.442695
      %v555 = vpow.pop %v554
      %v556 = vsel %vm174, %v553, 0.0
      %557 = vadd.xlane.f32.xlu0 %v556
      %v558 = vpop.xlane.xlu0 %557
      %v559 = vsel %vm174, %v555, 0.0
      %560 = vadd.xlane.f32.xlu0 %v559
      %v561 = vpop.xlane.xlu0 %560
      %v562 = vrcp.pop %v558
      %v563 = vrcp.pop %v561
      %v564 = vmul.f32 %v553, %v562
      %v565 = vmul.f32 %v555, %v563
      %v566 = vpack.c.bf16 %v565, %v564
      %567 = vrot.lane.b32.xlu0 %v120, 40
      %v568 = vpop.permute.xlu0 %567
      %v571 = vsel %vm174, %v566, 0
      %573 = vmatprep.subr.bf16.mxu0 0
      %574 = vmatpush1.bf16.msra.mxu0 %v568
      %575 = vmatprep.subr.bf16.mxu0 0
      %576 = vmatpush1.bf16.msra.mxu0 0
      %577 = vmatprep.subr.bf16.mxu0 0
      %578 = vmatpush1.bf16.msra.mxu0 0
      %579 = vmatprep.subr.bf16.mxu0 0
      %580 = vmatpush1.bf16.msra.mxu0 0
      %581 = vmatprep.subr.bf16.mxu0 0
      %582 = vmatpush1.bf16.msra.mxu0 0
      %583 = vmatprep.subr.bf16.mxu0 0
      %584 = vmatpush1.bf16.msra.mxu0 0
      %585 = vmatprep.subr.bf16.mxu0 0
      %586 = vmatpush1.bf16.msra.mxu0 0
      %587 = vmatprep.subr.bf16.mxu0 0
      %588 = vmatpush1.bf16.msra.mxu0 0
      %589 = vmatprep.subr.bf16.mxu0 0
      %590 = vmatpush1.bf16.msra.mxu0 0
      %591 = vmatprep.subr.bf16.mxu0 0
      %592 = vmatpush1.bf16.msra.mxu0 0
      %593 = vmatprep.subr.bf16.mxu0 0
      %594 = vmatpush1.bf16.msra.mxu0 0
      %595 = vmatprep.subr.bf16.mxu0 0
      %596 = vmatpush1.bf16.msra.mxu0 0
      %597 = vmatprep.subr.bf16.mxu0 0
      %598 = vmatpush1.bf16.msra.mxu0 0
      %599 = vmatprep.subr.bf16.mxu0 0
      %600 = vmatpush1.bf16.msra.mxu0 0
      %601 = vmatprep.subr.bf16.mxu0 0
      %602 = vmatpush1.bf16.msra.mxu0 0
      %603 = vmatprep.subr.bf16.mxu0 0
      %604 = vmatpush1.bf16.msra.mxu0 0
      %605 = vmatprep.mubr.bf16.mxu0 0
      %606 = vmatmul.mubr.bf16.gmra.mrb[0].mxu0 %v571
      %v607 = vpop.f32.mrb[0].mxu0
      %v608 = vadd.f32 0.0, %v607
      %v609 = vpop.f32.mrb[0].mxu0
      %v610 = vpop.f32.mrb[0].mxu0
      %v611 = vadd.f32 0.0, %v610
      %v612 = vpop.f32.mrb[0].mxu0
      %613 = vdwg.mxu0
      %616 = vrot.lane.b32.xlu0 %v362, 8
      %v617 = vpop.permute.xlu0 %616
      %618 = vrot.lane.b32.xlu0 %v365, 8
      %v619 = vpop.permute.xlu0 %618
      %624 = vrot.lane.b32.xlu0 %v485, 16
      %v625 = vpop.permute.xlu0 %624
      %626 = vrot.lane.b32.xlu0 %v488, 16
      %v627 = vpop.permute.xlu0 %626
      %632 = vrot.lane.b32.xlu0 %v608, 24
      %v633 = vpop.permute.xlu0 %632
      %634 = vrot.lane.b32.xlu0 %v611, 24
      %v635 = vpop.permute.xlu0 %634
      %v638 = vsel %vm124, %v239, %v617
      %v639 = vsel %vm124, %v242, %v619
      %v640 = vsel %vm174, %v638, %v625
      %v641 = vsel %vm174, %v639, %v627
      %vm642 = vcmask 195584
      %v643 = vsel %vm642, %v640, %v633
      %v644 = vsel %vm642, %v641, %v635
      %vm645 = vcmask 261120
      %646 = vst.msk [vmem:[%s116] sm:$0xff] %vm645, %v643
      %647 = vst.msk [vmem:[%s116 + $0x8] sm:$0xff] %vm645, %v644
      %p648 = scmp.lt.s32.totalorder %s12, 1
      %s649 = scalar_select %p648, %s12, 1
      %s650 = smul.addr %s649, 2
      %s651 = smul.addr %s650, 8
      %s652 = scalar_lea.vmem %s1, %s651
      // Predicated region
      $region25: #{_lambda_.31} parent=23 // pred_check
        %p653 = pneg %p56
      $region26: #{_lambda_.31} parent=23 // pred_check_branch
        %655 = sbr.rel (%p653) target = $region28
      $region27: #{_lambda_.31} parent=23 // pred_region
        _
      $region28: #{_lambda_.31} parent=23 // pred_fallthru
        _
    $region24: #{_lambda_.31} parent=5 // pred_fallthru
      _
    %p656 = scmp.le.s32.totalorder 2, %s7
    // Predicated region
    $region29: #{_lambda_.31} parent=5 // pred_check
      %p657 = pneg %p656
    $region30: #{_lambda_.31} parent=5 // pred_check_branch
      %659 = sbr.rel (%p657) target = $region32
    $region31: #{_lambda_.31} parent=5 // pred_region
      %s660 = ssub.s32 %s7, 2
      // Predicated region
      $region33: #{_lambda_.31} parent=31 // pred_check
        %p661 = pneg %p62
      $region34: #{_lambda_.31} parent=31 // pred_check_branch
        %663 = sbr.rel (%p661) target = $region36
      $region35: #{_lambda_.31} parent=31 // pred_region
        %p664 = scmp.lt.s32.totalorder %s13, 1
        %s665 = scalar_select %p664, %s13, 1
        %s666 = smul.addr %s665, 2
        %s667 = smul.addr %s666, 8
        %s668 = scalar_lea.vmem %s1, %s667
      $region36: #{_lambda_.31} parent=31 // pred_fallthru
        _
    $region32: #{_lambda_.31} parent=5 // pred_fallthru
      _
  $region6: #{_lambda_.31} parent=0 // loop_footer
    %s11 = sadd.s32 1, %s7
  $region7: #{_lambda_.31} parent=0 // loop_footer_branch
    %6 = sbr.rel target = $region3
  $region8: #{_lambda_.31} parent=0 // loop_exit
    _

// kernel: _lambda_.39
$region0: #{_lambda_.39}
  #allocation0 [shape = 'u32[]', space=smem, size = 0x4, offset = 0x4, fixed_abs, tag = 'smem constant byte address 0x4 - core index']
  #allocation1 [shape = 'u32[144,128]{1,0:T(1,128)}', space=vmem, size = 0x12000, scoped, tag = 'internal scratch']
  #allocation2 [shape = 'f32[32,64]{1,0:T(8,128)}', space=vmem, size = 0x4000, scoped, tag = 'scratch operand']
  %s0 = inlined_call_operand.vmem [shape: f32[32,32], index: 0, kind: input, shape index: {}]
  %s1 = inlined_call_operand.vmem [shape: bf16[32,64], index: 1, kind: input, shape index: {}]
  %s2 = inlined_call_operand.vmem [shape: f32[1,64], index: 2, kind: input, shape index: {}]
  %s3 = inlined_call_operand.vmem [shape: f32[32,64], index: 3, kind: output, shape index: {}]
  %s4 = sld [smem:[#allocation0]]
  $region30: #{_lambda_.39} parent=0
    _
  %s6 = ssub.s32 1, %s4
  %s7 = scalar_select 0, %s6, %s4
  // Predicated region
  $region2: #{_lambda_.39} parent=0 // pred_check
    _
  $region3: #{_lambda_.39} parent=0 // pred_check_branch
    %9 = sbr.rel (0) target = $region5
  $region4: #{_lambda_.39} parent=0 // pred_region
    _
  $region5: #{_lambda_.39} parent=0 // pred_fallthru
    _
  // Predicated region
  $region6: #{_lambda_.39} parent=0 // pred_check
    _
  $region7: #{_lambda_.39} parent=0 // pred_check_branch
    %11 = sbr.rel (0) target = $region9
  $region8: #{_lambda_.39} parent=0 // pred_region
    _
  $region9: #{_lambda_.39} parent=0 // pred_fallthru
    _
  // Predicated region
  $region10: #{_lambda_.39} parent=0 // pred_check
    _
  $region11: #{_lambda_.39} parent=0 // pred_check_branch
    %13 = sbr.rel (0) target = $region13
  $region12: #{_lambda_.39} parent=0 // pred_region
    _
  $region13: #{_lambda_.39} parent=0 // pred_fallthru
    _
  %p15 = scmp.eq.s32.totalorder 0, 0
  // Predicated region
  $region14: #{_lambda_.39} parent=0 // pred_check
    %p16 = pneg %p15
  $region15: #{_lambda_.39} parent=0 // pred_check_branch
    %18 = sbr.rel (%p16) target = $region17
  $region16: #{_lambda_.39} parent=0 // pred_region
    %vm19 = vcmask 523264
    %20 = vst.msk [vmem:[#allocation2] sm:$0xff] %vm19, 0.0
    %21 = vst.msk [vmem:[#allocation2 + $0x8] sm:$0xff] %vm19, 0.0
    %22 = vst.msk [vmem:[#allocation2 + $0x10] sm:$0xff] %vm19, 0.0
    %23 = vst.msk [vmem:[#allocation2 + $0x18] sm:$0xff] %vm19, 0.0
  $region17: #{_lambda_.39} parent=0 // pred_fallthru
    _
  %v24 = vld [vmem:[#allocation2] sm:$0xff]
  %v25 = vld [vmem:[#allocation2 + $0x8] sm:$0xff]
  %v26 = vld [vmem:[#allocation2 + $0x10] sm:$0xff]
  %v27 = vld [vmem:[#allocation2 + $0x18] sm:$0xff]
  %v28 = vld [vmem:[%s0] sm:$0xff]
  %v29 = vld [vmem:[%s0 + $0x8] sm:$0xff]
  %v30 = vld [vmem:[%s0 + $0x10] sm:$0xff]
  %v31 = vld [vmem:[%s0 + $0x18] sm:$0xff]
  %v32 = vpack.c.bf16 %v29, %v28
  %v33 = vpack.c.bf16 %v31, %v30
  %v34 = vld [vmem:[%s1] sm:$0xf]
  %v35 = vld [vmem:[%s1 + $0x4] sm:$0xf]
  %v36 = vld [vmem:[%s1 + $0x8] sm:$0xf]
  %v37 = vld [vmem:[%s1 + $0xc] sm:$0xf]
  %v42 = vunpack.c.l.b16 %v34
  %v43 = vunpack.c.l.b16 %v35
  %v44 = vunpack.c.l.b16 %v36
  %v45 = vunpack.c.l.b16 %v37
  %v46 = vpack.c.b16 %v43, %v42
  %v47 = vpack.c.b16 %v45, %v44
  %vm50 = vcmask 261120
  %v52 = vsel %vm50, %v32, 0
  %v55 = vsel %vm50, %v33, 0
  %57 = vmatprep.subr.bf16.mxu0 0
  %58 = vmatpush1.bf16.msra.mxu0 %v46
  %59 = vmatprep.subr.bf16.mxu0 0
  %60 = vmatpush1.bf16.msra.mxu0 %v47
  %61 = vmatprep.subr.bf16.mxu0 0
  %62 = vmatpush1.bf16.msra.mxu0 0
  %63 = vmatprep.subr.bf16.mxu0 0
  %64 = vmatpush1.bf16.msra.mxu0 0
  %65 = vmatprep.subr.bf16.mxu0 0
  %66 = vmatpush1.bf16.msra.mxu0 0
  %67 = vmatprep.subr.bf16.mxu0 0
  %68 = vmatpush1.bf16.msra.mxu0 0
  %69 = vmatprep.subr.bf16.mxu0 0
  %70 = vmatpush1.bf16.msra.mxu0 0
  %71 = vmatprep.subr.bf16.mxu0 0
  %72 = vmatpush1.bf16.msra.mxu0 0
  %73 = vmatprep.subr.bf16.mxu0 0
  %74 = vmatpush1.bf16.msra.mxu0 0
  %75 = vmatprep.subr.bf16.mxu0 0
  %76 = vmatpush1.bf16.msra.mxu0 0
  %77 = vmatprep.subr.bf16.mxu0 0
  %78 = vmatpush1.bf16.msra.mxu0 0
  %79 = vmatprep.subr.bf16.mxu0 0
  %80 = vmatpush1.bf16.msra.mxu0 0
  %81 = vmatprep.subr.bf16.mxu0 0
  %82 = vmatpush1.bf16.msra.mxu0 0
  %83 = vmatprep.subr.bf16.mxu0 0
  %84 = vmatpush1.bf16.msra.mxu0 0
  %85 = vmatprep.subr.bf16.mxu0 0
  %86 = vmatpush1.bf16.msra.mxu0 0
  %87 = vmatprep.subr.bf16.mxu0 0
  %88 = vmatpush1.bf16.msra.mxu0 0
  %89 = vmatprep.mubr.bf16.mxu0 0
  %90 = vmatmul.mubr.bf16.gmra.mrb[0].mxu0 %v52
  %v91 = vpop.f32.mrb[0].mxu0
  %v92 = vadd.f32 0.0, %v91
  %v93 = vpop.f32.mrb[0].mxu0
  %v94 = vpop.f32.mrb[0].mxu0
  %v95 = vadd.f32 0.0, %v94
  %v96 = vpop.f32.mrb[0].mxu0
  %97 = vmatprep.mubr.bf16.mxu0 0
  %98 = vmatmul.mubr.bf16.gmra.mrb[0].mxu0 %v55
  %v99 = vpop.f32.mrb[0].mxu0
  %v100 = vadd.f32 0.0, %v99
  %v101 = vpop.f32.mrb[0].mxu0
  %v102 = vpop.f32.mrb[0].mxu0
  %v103 = vadd.f32 0.0, %v102
  %v104 = vpop.f32.mrb[0].mxu0
  %105 = vdwg.mxu0
  %v106 = vadd.f32 %v24, %v92
  %v107 = vadd.f32 %v25, %v95
  %v108 = vadd.f32 %v26, %v100
  %v109 = vadd.f32 %v27, %v103
  %vm110 = vcmask 523264
  %111 = vst.msk [vmem:[#allocation2] sm:$0xff] %vm110, %v106
  %112 = vst.msk [vmem:[#allocation2 + $0x8] sm:$0xff] %vm110, %v107
  %113 = vst.msk [vmem:[#allocation2 + $0x10] sm:$0xff] %vm110, %v108
  %114 = vst.msk [vmem:[#allocation2 + $0x18] sm:$0xff] %vm110, %v109
  // Predicated region
  $region18: #{_lambda_.39} parent=0 // pred_check
    %p115 = pneg %p15
  $region19: #{_lambda_.39} parent=0 // pred_check_branch
    %117 = sbr.rel (%p115) target = $region21
  $region20: #{_lambda_.39} parent=0 // pred_region
    %v118 = vld [vmem:[#allocation2] sm:$0xff]
    %v119 = vld [vmem:[#allocation2 + $0x8] sm:$0xff]
    %v120 = vld [vmem:[#allocation2 + $0x10] sm:$0xff]
    %v121 = vld [vmem:[#allocation2 + $0x18] sm:$0xff]
    %v122 = vld [vmem:[%s2] sm:$0x1]
    %v124 = vlaneseq
    %v125 = vshrl.u32 %v124, 7
    %v126 = vsub.s32 0, %v125
    %v127 = vrot.slane %v122, %v126
    %v129 = vadd.f32 %v118, %v127
    %v130 = vadd.f32 %v119, %v127
    %v131 = vadd.f32 %v120, %v127
    %v132 = vadd.f32 %v121, %v127
    %133 = vst.msk [vmem:[%s3] sm:$0xff] %vm110, %v129
    %134 = vst.msk [vmem:[%s3 + $0x8] sm:$0xff] %vm110, %v130
    %135 = vst.msk [vmem:[%s3 + $0x10] sm:$0xff] %vm110, %v131
    %136 = vst.msk [vmem:[%s3 + $0x18] sm:$0xff] %vm110, %v132
  $region21: #{_lambda_.39} parent=0 // pred_fallthru
    _
  // Predicated region
  $region22: #{_lambda_.39} parent=0 // pred_check
    _
  $region23: #{_lambda_.39} parent=0 // pred_check_branch
    %138 = sbr.rel (0) target = $region25
  $region24: #{_lambda_.39} parent=0 // pred_region
    _
  $region25: #{_lambda_.39} parent=0 // pred_fallthru
    _
  // Predicated region
  $region26: #{_lambda_.39} parent=0 // pred_check
    _
  $region27: #{_lambda_.39} parent=0 // pred_check_branch
    %140 = sbr.rel (0) target = $region29
  $region28: #{_lambda_.39} parent=0 // pred_region
    _
  $region29: #{_lambda_.39} parent=0 // pred_fallthru
    _

// kernel: _lambda_.33
$region0: #{_lambda_.33}
  #allocation0 [shape = 'u32[]', space=smem, size = 0x4, offset = 0x4, fixed_abs, tag = 'smem constant byte address 0x4 - core index']
  #allocation1 [shape = 'u32[144,128]{1,0:T(1,128)}', space=vmem, size = 0x12000, scoped, tag = 'internal scratch']
  #allocation2 [shape = 'f32[32,32]{1,0:T(8,128)}', space=vmem, size = 0x4000, scoped, tag = 'scratch operand']
  %s0 = inlined_call_operand.vmem [shape: f32[32,32], index: 0, kind: input, shape index: {}]
  %s1 = inlined_call_operand.vmem [shape: bf16[32,64], index: 1, kind: input, shape index: {}]
  %s2 = inlined_call_operand.vmem [shape: f32[1,64], index: 2, kind: input, shape index: {}]
  %s3 = inlined_call_operand.vmem [shape: bf16[64,32], index: 3, kind: input, shape index: {}]
  %s4 = inlined_call_operand.vmem [shape: f32[1,32], index: 4, kind: input, shape index: {}, may-alias: {4,6}]
  %s5 = inlined_call_operand.vmem [shape: f32[1,32], index: 5, kind: input, shape index: {}]
  %s6 = inlined_call_operand.vmem [shape: f32[1,32], index: 6, kind: input, shape index: {}, may-alias: {4,6}]
  %s7 = inlined_call_operand.vmem [shape: f32[32,32], index: 7, kind: output, shape index: {}]
  %s8 = sld [smem:[#allocation0]]
  $region46: #{_lambda_.33} parent=0
    _
  %s10 = ssub.s32 1, %s8
  %s11 = scalar_select 0, %s10, %s8
  // Predicated region
  $region2: #{_lambda_.33} parent=0 // pred_check
    _
  $region3: #{_lambda_.33} parent=0 // pred_check_branch
    %13 = sbr.rel (0) target = $region5
  $region4: #{_lambda_.33} parent=0 // pred_region
    _
  $region5: #{_lambda_.33} parent=0 // pred_fallthru
    _
  // Predicated region
  $region6: #{_lambda_.33} parent=0 // pred_check
    _
  $region7: #{_lambda_.33} parent=0 // pred_check_branch
    %15 = sbr.rel (0) target = $region9
  $region8: #{_lambda_.33} parent=0 // pred_region
    _
  $region9: #{_lambda_.33} parent=0 // pred_fallthru
    _
  // Predicated region
  $region10: #{_lambda_.33} parent=0 // pred_check
    _
  $region11: #{_lambda_.33} parent=0 // pred_check_branch
    %17 = sbr.rel (0) target = $region13
  $region12: #{_lambda_.33} parent=0 // pred_region
    _
  $region13: #{_lambda_.33} parent=0 // pred_fallthru
    _
  // Predicated region
  $region14: #{_lambda_.33} parent=0 // pred_check
    _
  $region15: #{_lambda_.33} parent=0 // pred_check_branch
    %19 = sbr.rel (0) target = $region17
  $region16: #{_lambda_.33} parent=0 // pred_region
    _
  $region17: #{_lambda_.33} parent=0 // pred_fallthru
    _
  // Predicated region
  $region18: #{_lambda_.33} parent=0 // pred_check
    _
  $region19: #{_lambda_.33} parent=0 // pred_check_branch
    %21 = sbr.rel (0) target = $region21
  $region20: #{_lambda_.33} parent=0 // pred_region
    _
  $region21: #{_lambda_.33} parent=0 // pred_fallthru
    _
  // Predicated region
  $region22: #{_lambda_.33} parent=0 // pred_check
    _
  $region23: #{_lambda_.33} parent=0 // pred_check_branch
    %23 = sbr.rel (0) target = $region25
  $region24: #{_lambda_.33} parent=0 // pred_region
    _
  $region25: #{_lambda_.33} parent=0 // pred_fallthru
    _
  // Predicated region
  $region26: #{_lambda_.33} parent=0 // pred_check
    _
  $region27: #{_lambda_.33} parent=0 // pred_check_branch
    %25 = sbr.rel (0) target = $region29
  $region28: #{_lambda_.33} parent=0 // pred_region
    _
  $region29: #{_lambda_.33} parent=0 // pred_fallthru
    _
  %p27 = scmp.eq.s32.totalorder 0, 0
  // Predicated region
  $region30: #{_lambda_.33} parent=0 // pred_check
    %p28 = pneg %p27
  $region31: #{_lambda_.33} parent=0 // pred_check_branch
    %30 = sbr.rel (%p28) target = $region33
  $region32: #{_lambda_.33} parent=0 // pred_region
    %vm31 = vcmask 261120
    %32 = vst.msk [vmem:[#allocation2] sm:$0xff] %vm31, 0.0
    %33 = vst.msk [vmem:[#allocation2 + $0x8] sm:$0xff] %vm31, 0.0
    %34 = vst.msk [vmem:[#allocation2 + $0x10] sm:$0xff] %vm31, 0.0
    %35 = vst.msk [vmem:[#allocation2 + $0x18] sm:$0xff] %vm31, 0.0
  $region33: #{_lambda_.33} parent=0 // pred_fallthru
    _
  %v36 = vld [vmem:[%s0] sm:$0xff]
  %v37 = vld [vmem:[%s0 + $0x8] sm:$0xff]
  %v38 = vld [vmem:[%s0 + $0x10] sm:$0xff]
  %v39 = vld [vmem:[%s0 + $0x18] sm:$0xff]
  %v40 = vpack.c.bf16 %v37, %v36
  %v41 = vpack.c.bf16 %v39, %v38
  %v42 = vld [vmem:[%s1] sm:$0xf]
  %v43 = vld [vmem:[%s1 + $0x4] sm:$0xf]
  %v44 = vld [vmem:[%s1 + $0x8] sm:$0xf]
  %v45 = vld [vmem:[%s1 + $0xc] sm:$0xf]
  %v46 = vld [vmem:[%s2] sm:$0x1]
  %v48 = vlaneseq
  %v49 = vshrl.u32 %v48, 7
  %v50 = vsub.s32 0, %v49
  %v51 = vrot.slane %v46, %v50
  %v57 = vunpack.c.l.b16 %v42
  %v58 = vunpack.c.l.b16 %v43
  %v59 = vunpack.c.l.b16 %v44
  %v60 = vunpack.c.l.b16 %v45
  %v61 = vpack.c.b16 %v58, %v57
  %v62 = vpack.c.b16 %v60, %v59
  %vm65 = vcmask 261120
  %v67 = vsel %vm65, %v40, 0
  %v70 = vsel %vm65, %v41, 0
  %72 = vmatprep.subr.bf16.mxu0 0
  %73 = vmatpush1.bf16.msra.mxu0 %v61
  %74 = vmatprep.subr.bf16.mxu0 0
  %75 = vmatpush1.bf16.msra.mxu0 %v62
  %76 = vmatprep.subr.bf16.mxu0 0
  %77 = vmatpush1.bf16.msra.mxu0 0
  %78 = vmatprep.subr.bf16.mxu0 0
  %79 = vmatpush1.bf16.msra.mxu0 0
  %80 = vmatprep.subr.bf16.mxu0 0
  %81 = vmatpush1.bf16.msra.mxu0 0
  %82 = vmatprep.subr.bf16.mxu0 0
  %83 = vmatpush1.bf16.msra.mxu0 0
  %84 = vmatprep.subr.bf16.mxu0 0
  %85 = vmatpush1.bf16.msra.mxu0 0
  %86 = vmatprep.subr.bf16.mxu0 0
  %87 = vmatpush1.bf16.msra.mxu0 0
  %88 = vmatprep.subr.bf16.mxu0 0
  %89 = vmatpush1.bf16.msra.mxu0 0
  %90 = vmatprep.subr.bf16.mxu0 0
  %91 = vmatpush1.bf16.msra.mxu0 0
  %92 = vmatprep.subr.bf16.mxu0 0
  %93 = vmatpush1.bf16.msra.mxu0 0
  %94 = vmatprep.subr.bf16.mxu0 0
  %95 = vmatpush1.bf16.msra.mxu0 0
  %96 = vmatprep.subr.bf16.mxu0 0
  %97 = vmatpush1.bf16.msra.mxu0 0
  %98 = vmatprep.subr.bf16.mxu0 0
  %99 = vmatpush1.bf16.msra.mxu0 0
  %100 = vmatprep.subr.bf16.mxu0 0
  %101 = vmatpush1.bf16.msra.mxu0 0
  %102 = vmatprep.subr.bf16.mxu0 0
  %103 = vmatpush1.bf16.msra.mxu0 0
  %104 = vmatprep.mubr.bf16.mxu0 0
  %105 = vmatmul.mubr.bf16.gmra.mrb[0].mxu0 %v67
  %v106 = vpop.f32.mrb[0].mxu0
  %v107 = vadd.f32 %v51, %v106
  %v108 = vpop.f32.mrb[0].mxu0
  %v109 = vpop.f32.mrb[0].mxu0
  %v110 = vadd.f32 %v51, %v109
  %v111 = vpop.f32.mrb[0].mxu0
  %112 = vmatprep.mubr.bf16.mxu0 0
  %113 = vmatmul.mubr.bf16.gmra.mrb[0].mxu0 %v70
  %v114 = vpop.f32.mrb[0].mxu0
  %v115 = vadd.f32 %v51, %v114
  %v116 = vpop.f32.mrb[0].mxu0
  %v117 = vpop.f32.mrb[0].mxu0
  %v118 = vadd.f32 %v51, %v117
  %v119 = vpop.f32.mrb[0].mxu0
  %120 = vdwg.mxu0
  %v121 = vmax.f32 %v107, 0.0
  %v122 = vmax.f32 %v110, 0.0
  %v123 = vmax.f32 %v115, 0.0
  %v124 = vmax.f32 %v118, 0.0
  %v125 = vld [vmem:[#allocation2] sm:$0xff]
  %v126 = vld [vmem:[#allocation2 + $0x8] sm:$0xff]
  %v127 = vld [vmem:[#allocation2 + $0x10] sm:$0xff]
  %v128 = vld [vmem:[#allocation2 + $0x18] sm:$0xff]
  %v129 = vpack.c.bf16 %v122, %v121
  %v130 = vpack.c.bf16 %v124, %v123
  %v131 = vld [vmem:[%s3] sm:$0xf]
  %v132 = vld [vmem:[%s3 + $0x4] sm:$0xf]
  %v133 = vld [vmem:[%s3 + $0x8] sm:$0xf]
  %v134 = vld [vmem:[%s3 + $0xc] sm:$0xf]
  %v135 = vld [vmem:[%s3 + $0x10] sm:$0xf]
  %v136 = vld [vmem:[%s3 + $0x14] sm:$0xf]
  %v137 = vld [vmem:[%s3 + $0x18] sm:$0xf]
  %v138 = vld [vmem:[%s3 + $0x1c] sm:$0xf]
  %v147 = vunpack.c.l.b16 %v131
  %v148 = vunpack.c.l.b16 %v132
  %v149 = vunpack.c.l.b16 %v133
  %v150 = vunpack.c.l.b16 %v134
  %v151 = vunpack.c.l.b16 %v135
  %v152 = vunpack.c.l.b16 %v136
  %v153 = vunpack.c.l.b16 %v137
  %v154 = vunpack.c.l.b16 %v138
  %v155 = vpack.c.b16 %v148, %v147
  %v156 = vpack.c.b16 %v150, %v149
  %v157 = vpack.c.b16 %v152, %v151
  %v158 = vpack.c.b16 %v154, %v153
  %vm163 = vcmask 523264
  %v165 = vsel %vm163, %v129, 0
  %v168 = vsel %vm163, %v130, 0
  %170 = vmatprep.subr.bf16.mxu0 0
  %171 = vmatpush1.bf16.msra.mxu0 %v155
  %172 = vmatprep.subr.bf16.mxu0 0
  %173 = vmatpush1.bf16.msra.mxu0 %v156
  %174 = vmatprep.subr.bf16.mxu0 0
  %175 = vmatpush1.bf16.msra.mxu0 %v157
  %176 = vmatprep.subr.bf16.mxu0 0
  %177 = vmatpush1.bf16.msra.mxu0 %v158
  %178 = vmatprep.subr.bf16.mxu0 0
  %179 = vmatpush1.bf16.msra.mxu0 0
  %180 = vmatprep.subr.bf16.mxu0 0
  %181 = vmatpush1.bf16.msra.mxu0 0
  %182 = vmatprep.subr.bf16.mxu0 0
  %183 = vmatpush1.bf16.msra.mxu0 0
  %184 = vmatprep.subr.bf16.mxu0 0
  %185 = vmatpush1.bf16.msra.mxu0 0
  %186 = vmatprep.subr.bf16.mxu0 0
  %187 = vmatpush1.bf16.msra.mxu0 0
  %188 = vmatprep.subr.bf16.mxu0 0
  %189 = vmatpush1.bf16.msra.mxu0 0
  %190 = vmatprep.subr.bf16.mxu0 0
  %191 = vmatpush1.bf16.msra.mxu0 0
  %192 = vmatprep.subr.bf16.mxu0 0
  %193 = vmatpush1.bf16.msra.mxu0 0
  %194 = vmatprep.subr.bf16.mxu0 0
  %195 = vmatpush1.bf16.msra.mxu0 0
  %196 = vmatprep.subr.bf16.mxu0 0
  %197 = vmatpush1.bf16.msra.mxu0 0
  %198 = vmatprep.subr.bf16.mxu0 0
  %199 = vmatpush1.bf16.msra.mxu0 0
  %200 = vmatprep.subr.bf16.mxu0 0
  %201 = vmatpush1.bf16.msra.mxu0 0
  %202 = vmatprep.mubr.bf16.mxu0 0
  %203 = vmatmul.mubr.bf16.gmra.mrb[0].mxu0 %v165
  %v204 = vpop.f32.mrb[0].mxu0
  %v205 = vadd.f32 0.0, %v204
  %v206 = vpop.f32.mrb[0].mxu0
  %v207 = vpop.f32.mrb[0].mxu0
  %v208 = vadd.f32 0.0, %v207
  %v209 = vpop.f32.mrb[0].mxu0
  %210 = vmatprep.mubr.bf16.mxu0 0
  %211 = vmatmul.mubr.bf16.gmra.mrb[0].mxu0 %v168
  %v212 = vpop.f32.mrb[0].mxu0
  %v213 = vadd.f32 0.0, %v212
  %v214 = vpop.f32.mrb[0].mxu0
  %v215 = vpop.f32.mrb[0].mxu0
  %v216 = vadd.f32 0.0, %v215
  %v217 = vpop.f32.mrb[0].mxu0
  %218 = vdwg.mxu0
  %v219 = vadd.f32 %v125, %v205
  %v220 = vadd.f32 %v126, %v208
  %v221 = vadd.f32 %v127, %v213
  %v222 = vadd.f32 %v128, %v216
  %223 = vst.msk [vmem:[#allocation2] sm:$0xff] %vm65, %v219
  %224 = vst.msk [vmem:[#allocation2 + $0x8] sm:$0xff] %vm65, %v220
  %225 = vst.msk [vmem:[#allocation2 + $0x10] sm:$0xff] %vm65, %v221
  %226 = vst.msk [vmem:[#allocation2 + $0x18] sm:$0xff] %vm65, %v222
  // Predicated region
  $region34: #{_lambda_.33} parent=0 // pred_check
    %p227 = pneg %p27
  $region35: #{_lambda_.33} parent=0 // pred_check_branch
    %229 = sbr.rel (%p227) target = $region37
  $region36: #{_lambda_.33} parent=0 // pred_region
    %v230 = vld [vmem:[#allocation2] sm:$0xff]
    %v231 = vld [vmem:[#allocation2 + $0x8] sm:$0xff]
    %v232 = vld [vmem:[#allocation2 + $0x10] sm:$0xff]
    %v233 = vld [vmem:[#allocation2 + $0x18] sm:$0xff]
    %v234 = vld [vmem:[%s4] sm:$0x1]
    %v236 = vlaneseq
    %v237 = vshrl.u32 %v236, 7
    %v238 = vsub.s32 0, %v237
    %v239 = vrot.slane %v234, %v238
    %v241 = vadd.f32 %v230, %v239
    %v242 = vadd.f32 %v231, %v239
    %v243 = vadd.f32 %v232, %v239
    %v244 = vadd.f32 %v233, %v239
    %v245 = vld [vmem:[%s0] sm:$0xff]
    %v246 = vld [vmem:[%s0 + $0x8] sm:$0xff]
    %v247 = vld [vmem:[%s0 + $0x10] sm:$0xff]
    %v248 = vld [vmem:[%s0 + $0x18] sm:$0xff]
    %v249 = vadd.f32 %v241, %v245
    %v250 = vadd.f32 %v242, %v246
    %v251 = vadd.f32 %v243, %v247
    %v252 = vadd.f32 %v244, %v248
    %v253 = vld [vmem:[%s5] sm:$0x1]
    %v254 = vld [vmem:[%s6] sm:$0x1]
    %v255 = vsel %vm65, %v249, 0.0
    %256 = vadd.xlane.f32.xlu0 %v255
    %v257 = vpop.xlane.xlu0 %256
    %v258 = vsel %vm65, %v250, 0.0
    %259 = vadd.xlane.f32.xlu0 %v258
    %v260 = vpop.xlane.xlu0 %259
    %v261 = vsel %vm65, %v251, 0.0
    %262 = vadd.xlane.f32.xlu0 %v261
    %v263 = vpop.xlane.xlu0 %262
    %v264 = vsel %vm65, %v252, 0.0
    %265 = vadd.xlane.f32.xlu0 %v264
    %v266 = vpop.xlane.xlu0 %265
    %v267 = vmul.f32 %v249, %v249
    %v268 = vmul.f32 %v250, %v250
    %v269 = vmul.f32 %v251, %v251
    %v270 = vmul.f32 %v252, %v252
    %v271 = vsel %vm65, %v267, 0.0
    %272 = vadd.xlane.f32.xlu0 %v271
    %v273 = vpop.xlane.xlu0 %272
    %v274 = vsel %vm65, %v268, 0.0
    %275 = vadd.xlane.f32.xlu0 %v274
    %v276 = vpop.xlane.xlu0 %275
    %v277 = vsel %vm65, %v269, 0.0
    %278 = vadd.xlane.f32.xlu0 %v277
    %v279 = vpop.xlane.xlu0 %278
    %v280 = vsel %vm65, %v270, 0.0
    %281 = vadd.xlane.f32.xlu0 %v280
    %v282 = vpop.xlane.xlu0 %281
    %v283 = vmul.f32 %v257, 0.03125
    %v284 = vmul.f32 %v260, 0.03125
    %v285 = vmul.f32 %v263, 0.03125
    %v286 = vmul.f32 %v266, 0.03125
    %v287 = vmul.f32 %v273, 0.03125
    %v288 = vmul.f32 %v276, 0.03125
    %v289 = vmul.f32 %v279, 0.03125
    %v290 = vmul.f32 %v282, 0.03125
    %v291 = vmul.f32 %v283, %v283
    %v292 = vmul.f32 %v284, %v284
    %v293 = vmul.f32 %v285, %v285
    %v294 = vmul.f32 %v286, %v286
    %v295 = vsub.f32 %v287, %v291
    %v296 = vsub.f32 %v288, %v292
    %v297 = vsub.f32 %v289, %v293
    %v298 = vsub.f32 %v290, %v294
    %v299 = vadd.f32 %v295, 1e-05
    %v300 = vadd.f32 %v296, 1e-05
    %v301 = vadd.f32 %v297, 1e-05
    %v302 = vadd.f32 %v298, 1e-05
    %v303 = vrsqrt.pop %v299
    %v304 = vrsqrt.pop %v300
    %v305 = vrsqrt.pop %v301
    %v306 = vrsqrt.pop %v302
    %v307 = vsub.f32 %v249, %v283
    %v308 = vsub.f32 %v250, %v284
    %v309 = vsub.f32 %v251, %v285
    %v310 = vsub.f32 %v252, %v286
    %v311 = vmul.f32 %v307, %v303
    %v312 = vmul.f32 %v308, %v304
    %v313 = vmul.f32 %v309, %v305
    %v314 = vmul.f32 %v310, %v306
    %v316 = vlaneseq
    %v317 = vshrl.u32 %v316, 7
    %v318 = vsub.s32 0, %v317
    %v319 = vrot.slane %v253, %v318
    %v321 = vmul.f32 %v311, %v319
    %v322 = vmul.f32 %v312, %v319
    %v323 = vmul.f32 %v313, %v319
    %v324 = vmul.f32 %v314, %v319
    %v326 = vlaneseq
    %v327 = vshrl.u32 %v326, 7
    %v328 = vsub.s32 0, %v327
    %v329 = vrot.slane %v254, %v328
    %v331 = vadd.f32 %v321, %v329
    %v332 = vadd.f32 %v322, %v329
    %v333 = vadd.f32 %v323, %v329
    %v334 = vadd.f32 %v324, %v329
    %335 = vst.msk [vmem:[%s7] sm:$0xff] %vm65, %v331
    %336 = vst.msk [vmem:[%s7 + $0x8] sm:$0xff] %vm65, %v332
    %337 = vst.msk [vmem:[%s7 + $0x10] sm:$0xff] %vm65, %v333
    %338 = vst.msk [vmem:[%s7 + $0x18] sm:$0xff] %vm65, %v334
  $region37: #{_lambda_.33} parent=0 // pred_fallthru
    _
  // Predicated region
  $region38: #{_lambda_.33} parent=0 // pred_check
    _
  $region39: #{_lambda_.33} parent=0 // pred_check_branch
    %340 = sbr.rel (0) target = $region41
  $region40: #{_lambda_.33} parent=0 // pred_region
    _
  $region41: #{_lambda_.33} parent=0 // pred_fallthru
    _
  // Predicated region
  $region42: #{_lambda_.33} parent=0 // pred_check
    _
  $region43: #{_lambda_.33} parent=0 // pred_check_branch
    %342 = sbr.rel (0) target = $region45
  $region44: #{_lambda_.33} parent=0 // pred_region
    _
  $region45: #{_lambda_.33} parent=0 // pred_fallthru
    _

// kernel: _lambda_.40
$region0: #{_lambda_.40}
  #allocation0 [shape = 'u32[]', space=smem, size = 0x4, offset = 0x4, fixed_abs, tag = 'smem constant byte address 0x4 - core index']
  #allocation1 [shape = 'u32[144,128]{1,0:T(1,128)}', space=vmem, size = 0x12000, scoped, tag = 'internal scratch']
  %s0 = inlined_call_operand.vmem [shape: f32[2,8,32], index: 0, kind: input, shape index: {}]
  %s1 = inlined_call_operand.vmem [shape: f32[2,16,64], index: 1, kind: input, shape index: {}]
  %s2 = inlined_call_operand.vmem [shape: f32[2,8,32], index: 2, kind: output, shape index: {}]
  %s3 = sld [smem:[#allocation0]]
  $region41: #{_lambda_.40} parent=0
    _
  %s5 = ssub.s32 1, %s3
  %s6 = scalar_select 0, %s5, %s3
  loop: start=0, step=1, limit=4
  $region2: #{_lambda_.40} parent=0 // loop_pre_header
    _
  $region3: #{_lambda_.40} parent=0 // loop_header
    %s8 = sphi 0, %s12
    %p9 = scmp.ge.s32.totalorder %s8, 4
    %s18 = sphi 0, %s20
    %s21 = sphi 0, %s18
    %s22 = sphi 0, %s21
    %s38 = sphi 0, %s22
    %s44 = sphi 0, %s46
    %s47 = sphi 0, %s44
    %s48 = sphi 0, %s47
    %s64 = sphi 0, %s48
    %s70 = sphi 0, %s72
    %s73 = sphi 0, %s70
    %s74 = sphi 0, %s73
    %s90 = sphi 0, %s74
  $region4: #{_lambda_.40} parent=0 // loop_header_branch
    %11 = sbr.rel (%p9) target = $region8
  $region5: #{_lambda_.40} parent=0 // loop_body
    %s13 = ssub.s32 %s8, 1
    %s14 = ssub.s32 %s8, 2
    %s15 = sadd.s32 %s8, 1
    %s16 = ssub.s32 %s8, %s15
    %p17 = scmp.eq.s32.totalorder %s16, 0
    %s19 = sadd.s32 %s18, 1
    %s20 = scalar_select %p17, %s18, %s19
    %p23 = pneg %p17
    %p24 = scmp.eq.s32.totalorder %s8, 1
    %p25 = por %p23, %p24
    %p26 = scmp.ne.s32.totalorder %s18, %s21
    %p27 = scmp.eq.s32.totalorder %s8, 0
    %p28 = por %p26, %p27
    %p29 = scmp.ne.s32.totalorder %s18, %s21
    %p30 = scmp.eq.s32.totalorder %s13, 1
    %p31 = por %p29, %p30
    %p32 = scmp.ne.s32.totalorder %s21, %s22
    %p33 = scmp.eq.s32.totalorder %s13, 0
    %p34 = por %p32, %p33
    %p35 = scmp.ne.s32.totalorder %s21, %s22
    %p36 = scmp.eq.s32.totalorder %s14, 1
    %p37 = por %p35, %p36
    %p39 = scmp.ne.s32.totalorder %s22, %s38
    %p40 = scmp.eq.s32.totalorder %s14, 0
    %p41 = por %p39, %p40
    %s42 = ssub.s32 %s8, %s15
    %p43 = scmp.eq.s32.totalorder %s42, 0
    %s45 = sadd.s32 %s44, 1
    %s46 = scalar_select %p43, %s44, %s45
    %p49 = pneg %p43
    %p50 = scmp.eq.s32.totalorder %s8, 1
    %p51 = por %p49, %p50
    %p52 = scmp.ne.s32.totalorder %s44, %s47
    %p53 = scmp.eq.s32.totalorder %s8, 0
    %p54 = por %p52, %p53
    %p55 = scmp.ne.s32.totalorder %s44, %s47
    %p56 = scmp.eq.s32.totalorder %s13, 1
    %p57 = por %p55, %p56
    %p58 = scmp.ne.s32.totalorder %s47, %s48
    %p59 = scmp.eq.s32.totalorder %s13, 0
    %p60 = por %p58, %p59
    %p61 = scmp.ne.s32.totalorder %s47, %s48
    %p62 = scmp.eq.s32.totalorder %s14, 1
    %p63 = por %p61, %p62
    %p65 = scmp.ne.s32.totalorder %s48, %s64
    %p66 = scmp.eq.s32.totalorder %s14, 0
    %p67 = por %p65, %p66
    %s68 = ssub.s32 %s8, %s15
    %p69 = scmp.eq.s32.totalorder %s68, 0
    %s71 = sadd.s32 %s70, 1
    %s72 = scalar_select %p69, %s70, %s71
    %p75 = pneg %p69
    %p76 = scmp.eq.s32.totalorder %s8, 1
    %p77 = por %p75, %p76
    %p78 = scmp.ne.s32.totalorder %s70, %s73
    %p79 = scmp.eq.s32.totalorder %s8, 0
    %p80 = por %p78, %p79
    %p81 = scmp.ne.s32.totalorder %s70, %s73
    %p82 = scmp.eq.s32.totalorder %s13, 1
    %p83 = por %p81, %p82
    %p84 = scmp.ne.s32.totalorder %s73, %s74
    %p85 = scmp.eq.s32.totalorder %s13, 0
    %p86 = por %p84, %p85
    %p87 = scmp.ne.s32.totalorder %s73, %s74
    %p88 = scmp.eq.s32.totalorder %s14, 1
    %p89 = por %p87, %p88
    %p91 = scmp.ne.s32.totalorder %s74, %s90
    %p92 = scmp.eq.s32.totalorder %s14, 0
    %p93 = por %p91, %p92
    %p94 = scmp.le.s32.totalorder 1, %s8
    %p95 = scmp.lt.s32.totalorder %s8, 3
    %p96 = pnand %p94, %p95
    %p97 = pneg %p96
    // Predicated region
    $region9: #{_lambda_.40} parent=5 // pred_check
      _
    $region10: #{_lambda_.40} parent=5 // pred_check_branch
      %99 = sbr.rel (%p96) target = $region12
    $region11: #{_lambda_.40} parent=5 // pred_region
      %s100 = ssub.s32 %s8, 1
    $region12: #{_lambda_.40} parent=5 // pred_fallthru
      _
    %p101 = scmp.lt.s32.totalorder %s8, 2
    // Predicated region
    $region13: #{_lambda_.40} parent=5 // pred_check
      %p102 = pneg %p101
    $region14: #{_lambda_.40} parent=5 // pred_check_branch
      %104 = sbr.rel (%p102) target = $region16
    $region15: #{_lambda_.40} parent=5 // pred_region
      // Predicated region
      $region17: #{_lambda_.40} parent=15 // pred_check
        %p105 = pneg %p28
      $region18: #{_lambda_.40} parent=15 // pred_check_branch
        %107 = sbr.rel (%p105) target = $region20
      $region19: #{_lambda_.40} parent=15 // pred_region
        %p108 = scmp.lt.s32.totalorder %s8, 1
        %s109 = scalar_select %p108, %s8, 1
        %s110 = smul.addr %s109, 8
        %s111 = scalar_lea.vmem %s0, %s110
      $region20: #{_lambda_.40} parent=15 // pred_fallthru
        _
      // Predicated region
      $region21: #{_lambda_.40} parent=15 // pred_check
        %p112 = pneg %p54
      $region22: #{_lambda_.40} parent=15 // pred_check_branch
        %114 = sbr.rel (%p112) target = $region24
      $region23: #{_lambda_.40} parent=15 // pred_region
        %p115 = scmp.lt.s32.totalorder %s8, 1
        %s116 = scalar_select %p115, %s8, 1
        %s117 = smul.addr %s116, 2
        %s118 = smul.addr %s117, 8
        %s119 = scalar_lea.vmem %s1, %s118
      $region24: #{_lambda_.40} parent=15 // pred_fallthru
        _
    $region16: #{_lambda_.40} parent=5 // pred_fallthru
      _
    %p120 = scmp.le.s32.totalorder 1, %s8
    %p121 = scmp.lt.s32.totalorder %s8, 3
    %p122 = pnand %p120, %p121
    %p123 = pneg %p122
    // Predicated region
    $region25: #{_lambda_.40} parent=5 // pred_check
      _
    $region26: #{_lambda_.40} parent=5 // pred_check_branch
      %125 = sbr.rel (%p122) target = $region28
    $region27: #{_lambda_.40} parent=5 // pred_region
      %s126 = ssub.s32 %s8, 1
      %p127 = scmp.lt.s32.totalorder %s13, 1
      %s128 = scalar_select %p127, %s13, 1
      %s129 = smul.addr %s128, 8
      %s130 = scalar_lea.vmem %s0, %s129
      %p131 = pneg %p34
      %p132 = pneg %p31
      %p133 = scmp.lt.s32.totalorder %s13, 1
      %s134 = scalar_select %p133, %s13, 1
      %s135 = smul.addr %s134, 2
      %s136 = smul.addr %s135, 8
      %s137 = scalar_lea.vmem %s1, %s136
      %p138 = pneg %p60
      %p139 = pneg %p57
      %p140 = pneg %p86
      %p141 = pneg %p83
      %p142 = scmp.lt.s32.totalorder %s13, 1
      %s143 = scalar_select %p142, %s13, 1
      %s144 = smul.addr %s143, 8
      %s145 = scalar_lea.vmem %s2, %s144
      %p146 = scmp.lt.s32.totalorder %s13, 1
      %s147 = scalar_select %p146, %s13, 1
      %s148 = smul.addr %s147, 8
      %s149 = scalar_lea.vmem %s0, %s148
      %p150 = scmp.lt.s32.totalorder %s13, 1
      %s151 = scalar_select %p150, %s13, 1
      %s152 = smul.addr %s151, 2
      %s153 = smul.addr %s152, 8
      %s154 = scalar_lea.vmem %s1, %s153
      %p155 = scmp.lt.s32.totalorder %s13, 1
      %s156 = scalar_select %p155, %s13, 1
      %s157 = smul.addr %s156, 8
      %s158 = scalar_lea.vmem %s2, %s157
      %v160 = vld [vmem:[%s149] sm:$0xff]
      %v161 = vld [vmem:[%s154] sm:$0xff]
      %v162 = vld [vmem:[%s154 + $0x8] sm:$0xff]
      %v163 = vpack.c.bf16 %v160, %v160
      %v164 = vpack.c.bf16 %v162, %v161
      %vm165 = vcmask 64512
      %v167 = vsel %vm165, %v163, 0
      %v170 = vsel %vm165, %v164, 0
      %172 = vmatprep.subr.bf16.mxu0 0
      %173 = vmatpush1.bf16.xpose.msra.mxu0 %v170
      %174 = vmatprep.subr.bf16.mxu0 0
      %175 = vmatpush1.bf16.xpose.msra.mxu0 0
      %176 = vmatprep.subr.bf16.mxu0 0
      %177 = vmatpush1.bf16.xpose.msra.mxu0 0
      %178 = vmatprep.subr.bf16.mxu0 0
      %179 = vmatpush1.bf16.xpose.msra.mxu0 0
      %180 = vmatprep.subr.bf16.mxu0 0
      %181 = vmatpush1.bf16.xpose.msra.mxu0 0
      %182 = vmatprep.subr.bf16.mxu0 0
      %183 = vmatpush1.bf16.xpose.msra.mxu0 0
      %184 = vmatprep.subr.bf16.mxu0 0
      %185 = vmatpush1.bf16.xpose.msra.mxu0 0
      %186 = vmatprep.subr.bf16.mxu0 0
      %187 = vmatpush1.bf16.xpose.msra.mxu0 0
      %188 = vmatprep.subr.bf16.mxu0 0
      %189 = vmatpush1.bf16.xpose.msra.mxu0 0
      %190 = vmatprep.subr.bf16.mxu0 0
      %191 = vmatpush1.bf16.xpose.msra.mxu0 0
      %192 = vmatprep.subr.bf16.mxu0 0
      %193 = vmatpush1.bf16.xpose.msra.mxu0 0
      %194 = vmatprep.subr.bf16.mxu0 0
      %195 = vmatpush1.bf16.xpose.msra.mxu0 0
      %196 = vmatprep.subr.bf16.mxu0 0
      %197 = vmatpush1.bf16.xpose.msra.mxu0 0
      %198 = vmatprep.subr.bf16.mxu0 0
      %199 = vmatpush1.bf16.xpose.msra.mxu0 0
      %200 = vmatprep.subr.bf16.mxu0 0
      %201 = vmatpush1.bf16.xpose.msra.mxu0 0
      %202 = vmatprep.subr.bf16.mxu0 0
      %203 = vmatpush1.bf16.xpose.msra.mxu0 0
      %204 = vmatprep.mubr.bf16.mxu0 0
      %205 = vmatmul.mubr.bf16.gmra.mrb[0].mxu0 %v167
      %v206 = vpop.f32.mrb[0].mxu0
      %v207 = vadd.f32 0.0, %v206
      %v208 = vpop.f32.mrb[0].mxu0
      %v209 = vpop.f32.mrb[0].mxu0
      %v210 = vpop.f32.mrb[0].mxu0
      %211 = vdwg.mxu0
      %v212 = vmul.f32 %v207, 0.35355338
      %vm213 = vcmask 130048
      %v214 = vsel %vm213, %v212, -inf
      %215 = vmax.xlane.f32.xlu0 %v214
      %v216 = vpop.xlane.xlu0 %215
      %v217 = vsub.f32 %v212, %v216
      %v218 = vmul.f32 %v217, 1.442695
      %v219 = vpow.pop %v218
      %v220 = vsel %vm213, %v219, 0.0
      %221 = vadd.xlane.f32.xlu0 %v220
      %v222 = vpop.xlane.xlu0 %221
      %v223 = vrcp.pop %v222
      %v224 = vmul.f32 %v219, %v223
      %v225 = vpack.c.bf16 %v224, %v224
      %227 = vrot.lane.b32.xlu0 %v164, 96
      %v228 = vpop.permute.xlu0 %227
      %v231 = vsel %vm213, %v225, 0
      %233 = vmatprep.subr.bf16.mxu0 0
      %234 = vmatpush1.bf16.msra.mxu0 %v228
      %235 = vmatprep.subr.bf16.mxu0 0
      %236 = vmatpush1.bf16.msra.mxu0 0
      %237 = vmatprep.subr.bf16.mxu0 0
      %238 = vmatpush1.bf16.msra.mxu0 0
      %239 = vmatprep.subr.bf16.mxu0 0
      %240 = vmatpush1.bf16.msra.mxu0 0
      %241 = vmatprep.subr.bf16.mxu0 0
      %242 = vmatpush1.bf16.msra.mxu0 0
      %243 = vmatprep.subr.bf16.mxu0 0
      %244 = vmatpush1.bf16.msra.mxu0 0
      %245 = vmatprep.subr.bf16.mxu0 0
      %246 = vmatpush1.bf16.msra.mxu0 0
      %247 = vmatprep.subr.bf16.mxu0 0
      %248 = vmatpush1.bf16.msra.mxu0 0
      %249 = vmatprep.subr.bf16.mxu0 0
      %250 = vmatpush1.bf16.msra.mxu0 0
      %251 = vmatprep.subr.bf16.mxu0 0
      %252 = vmatpush1.bf16.msra.mxu0 0
      %253 = vmatprep.subr.bf16.mxu0 0
      %254 = vmatpush1.bf16.msra.mxu0 0
      %255 = vmatprep.subr.bf16.mxu0 0
      %256 = vmatpush1.bf16.msra.mxu0 0
      %257 = vmatprep.subr.bf16.mxu0 0
      %258 = vmatpush1.bf16.msra.mxu0 0
      %259 = vmatprep.subr.bf16.mxu0 0
      %260 = vmatpush1.bf16.msra.mxu0 0
      %261 = vmatprep.subr.bf16.mxu0 0
      %262 = vmatpush1.bf16.msra.mxu0 0
      %263 = vmatprep.subr.bf16.mxu0 0
      %264 = vmatpush1.bf16.msra.mxu0 0
      %265 = vmatprep.mubr.bf16.mxu0 0
      %266 = vmatmul.mubr.bf16.gmra.mrb[0].mxu0 %v231
      %v267 = vpop.f32.mrb[0].mxu0
      %v268 = vadd.f32 0.0, %v267
      %v269 = vpop.f32.mrb[0].mxu0
      %v270 = vpop.f32.mrb[0].mxu0
      %v271 = vpop.f32.mrb[0].mxu0
      %272 = vdwg.mxu0
      %274 = vrot.lane.b32.xlu0 %v163, 120
      %v275 = vpop.permute.xlu0 %274
      %276 = vrot.lane.b32.xlu0 %v164, 120
      %v277 = vpop.permute.xlu0 %276
      %v279 = vsel %vm165, %v275, 0
      %v282 = vsel %vm165, %v277, 0
      %284 = vmatprep.subr.bf16.mxu0 0
      %285 = vmatpush1.bf16.xpose.msra.mxu0 %v282
      %286 = vmatprep.subr.bf16.mxu0 0
      %287 = vmatpush1.bf16.xpose.msra.mxu0 0
      %288 = vmatprep.subr.bf16.mxu0 0
      %289 = vmatpush1.bf16.xpose.msra.mxu0 0
      %290 = vmatprep.subr.bf16.mxu0 0
      %291 = vmatpush1.bf16.xpose.msra.mxu0 0
      %292 = vmatprep.subr.bf16.mxu0 0
      %293 = vmatpush1.bf16.xpose.msra.mxu0 0
      %294 = vmatprep.subr.bf16.mxu0 0
      %295 = vmatpush1.bf16.xpose.msra.mxu0 0
      %296 = vmatprep.subr.bf16.mxu0 0
      %297 = vmatpush1.bf16.xpose.msra.mxu0 0
      %298 = vmatprep.subr.bf16.mxu0 0
      %299 = vmatpush1.bf16.xpose.msra.mxu0 0
      %300 = vmatprep.subr.bf16.mxu0 0
      %301 = vmatpush1.bf16.xpose.msra.mxu0 0
      %302 = vmatprep.subr.bf16.mxu0 0
      %303 = vmatpush1.bf16.xpose.msra.mxu0 0
      %304 = vmatprep.subr.bf16.mxu0 0
      %305 = vmatpush1.bf16.xpose.msra.mxu0 0
      %306 = vmatprep.subr.bf16.mxu0 0
      %307 = vmatpush1.bf16.xpose.msra.mxu0 0
      %308 = vmatprep.subr.bf16.mxu0 0
      %309 = vmatpush1.bf16.xpose.msra.mxu0 0
      %310 = vmatprep.subr.bf16.mxu0 0
      %311 = vmatpush1.bf16.xpose.msra.mxu0 0
      %312 = vmatprep.subr.bf16.mxu0 0
      %313 = vmatpush1.bf16.xpose.msra.mxu0 0
      %314 = vmatprep.subr.bf16.mxu0 0
      %315 = vmatpush1.bf16.xpose.msra.mxu0 0
      %316 = vmatprep.mubr.bf16.mxu0 0
      %317 = vmatmul.mubr.bf16.gmra.mrb[0].mxu0 %v279
      %v318 = vpop.f32.mrb[0].mxu0
      %v319 = vadd.f32 0.0, %v318
      %v320 = vpop.f32.mrb[0].mxu0
      %v321 = vpop.f32.mrb[0].mxu0
      %v322 = vpop.f32.mrb[0].mxu0
      %323 = vdwg.mxu0
      %v324 = vmul.f32 %v319, 0.35355338
      %v325 = vsel %vm213, %v324, -inf
      %326 = vmax.xlane.f32.xlu0 %v325
      %v327 = vpop.xlane.xlu0 %326
      %v328 = vsub.f32 %v324, %v327
      %v329 = vmul.f32 %v328, 1.442695
      %v330 = vpow.pop %v329
      %v331 = vsel %vm213, %v330, 0.0
      %332 = vadd.xlane.f32.xlu0 %v331
      %v333 = vpop.xlane.xlu0 %332
      %v334 = vrcp.pop %v333
      %v335 = vmul.f32 %v330, %v334
      %v336 = vpack.c.bf16 %v335, %v335
      %337 = vrot.lane.b32.xlu0 %v164, 88
      %v338 = vpop.permute.xlu0 %337
      %v341 = vsel %vm213, %v336, 0
      %343 = vmatprep.subr.bf16.mxu0 0
      %344 = vmatpush1.bf16.msra.mxu0 %v338
      %345 = vmatprep.subr.bf16.mxu0 0
      %346 = vmatpush1.bf16.msra.mxu0 0
      %347 = vmatprep.subr.bf16.mxu0 0
      %348 = vmatpush1.bf16.msra.mxu0 0
      %349 = vmatprep.subr.bf16.mxu0 0
      %350 = vmatpush1.bf16.msra.mxu0 0
      %351 = vmatprep.subr.bf16.mxu0 0
      %352 = vmatpush1.bf16.msra.mxu0 0
      %353 = vmatprep.subr.bf16.mxu0 0
      %354 = vmatpush1.bf16.msra.mxu0 0
      %355 = vmatprep.subr.bf16.mxu0 0
      %356 = vmatpush1.bf16.msra.mxu0 0
      %357 = vmatprep.subr.bf16.mxu0 0
      %358 = vmatpush1.bf16.msra.mxu0 0
      %359 = vmatprep.subr.bf16.mxu0 0
      %360 = vmatpush1.bf16.msra.mxu0 0
      %361 = vmatprep.subr.bf16.mxu0 0
      %362 = vmatpush1.bf16.msra.mxu0 0
      %363 = vmatprep.subr.bf16.mxu0 0
      %364 = vmatpush1.bf16.msra.mxu0 0
      %365 = vmatprep.subr.bf16.mxu0 0
      %366 = vmatpush1.bf16.msra.mxu0 0
      %367 = vmatprep.subr.bf16.mxu0 0
      %368 = vmatpush1.bf16.msra.mxu0 0
      %369 = vmatprep.subr.bf16.mxu0 0
      %370 = vmatpush1.bf16.msra.mxu0 0
      %371 = vmatprep.subr.bf16.mxu0 0
      %372 = vmatpush1.bf16.msra.mxu0 0
      %373 = vmatprep.subr.bf16.mxu0 0
      %374 = vmatpush1.bf16.msra.mxu0 0
      %375 = vmatprep.mubr.bf16.mxu0 0
      %376 = vmatmul.mubr.bf16.gmra.mrb[0].mxu0 %v341
      %v377 = vpop.f32.mrb[0].mxu0
      %v378 = vadd.f32 0.0, %v377
      %v379 = vpop.f32.mrb[0].mxu0
      %v380 = vpop.f32.mrb[0].mxu0
      %v381 = vpop.f32.mrb[0].mxu0
      %382 = vdwg.mxu0
      %383 = vrot.lane.b32.xlu0 %v163, 112
      %v384 = vpop.permute.xlu0 %383
      %385 = vrot.lane.b32.xlu0 %v164, 112
      %v386 = vpop.permute.xlu0 %385
      %v388 = vsel %vm165, %v384, 0
      %v391 = vsel %vm165, %v386, 0
      %393 = vmatprep.subr.bf16.mxu0 0
      %394 = vmatpush1.bf16.xpose.msra.mxu0 %v391
      %395 = vmatprep.subr.bf16.mxu0 0
      %396 = vmatpush1.bf16.xpose.msra.mxu0 0
      %397 = vmatprep.subr.bf16.mxu0 0
      %398 = vmatpush1.bf16.xpose.msra.mxu0 0
      %399 = vmatprep.subr.bf16.mxu0 0
      %400 = vmatpush1.bf16.xpose.msra.mxu0 0
      %401 = vmatprep.subr.bf16.mxu0 0
      %402 = vmatpush1.bf16.xpose.msra.mxu0 0
      %403 = vmatprep.subr.bf16.mxu0 0
      %404 = vmatpush1.bf16.xpose.msra.mxu0 0
      %405 = vmatprep.subr.bf16.mxu0 0
      %406 = vmatpush1.bf16.xpose.msra.mxu0 0
      %407 = vmatprep.subr.bf16.mxu0 0
      %408 = vmatpush1.bf16.xpose.msra.mxu0 0
      %409 = vmatprep.subr.bf16.mxu0 0
      %410 = vmatpush1.bf16.xpose.msra.mxu0 0
      %411 = vmatprep.subr.bf16.mxu0 0
      %412 = vmatpush1.bf16.xpose.msra.mxu0 0
      %413 = vmatprep.subr.bf16.mxu0 0
      %414 = vmatpush1.bf16.xpose.msra.mxu0 0
      %415 = vmatprep.subr.bf16.mxu0 0
      %416 = vmatpush1.bf16.xpose.msra.mxu0 0
      %417 = vmatprep.subr.bf16.mxu0 0
      %418 = vmatpush1.bf16.xpose.msra.mxu0 0
      %419 = vmatprep.subr.bf16.mxu0 0
      %420 = vmatpush1.bf16.xpose.msra.mxu0 0
      %421 = vmatprep.subr.bf16.mxu0 0
      %422 = vmatpush1.bf16.xpose.msra.mxu0 0
      %423 = vmatprep.subr.bf16.mxu0 0
      %424 = vmatpush1.bf16.xpose.msra.mxu0 0
      %425 = vmatprep.mubr.bf16.mxu0 0
      %426 = vmatmul.mubr.bf16.gmra.mrb[0].mxu0 %v388
      %v427 = vpop.f32.mrb[0].mxu0
      %v428 = vadd.f32 0.0, %v427
      %v429 = vpop.f32.mrb[0].mxu0
      %v430 = vpop.f32.mrb[0].mxu0
      %v431 = vpop.f32.mrb[0].mxu0
      %432 = vdwg.mxu0
      %v433 = vmul.f32 %v428, 0.35355338
      %v434 = vsel %vm213, %v433, -inf
      %435 = vmax.xlane.f32.xlu0 %v434
      %v436 = vpop.xlane.xlu0 %435
      %v437 = vsub.f32 %v433, %v436
      %v438 = vmul.f32 %v437, 1.442695
      %v439 = vpow.pop %v438
      %v440 = vsel %vm213, %v439, 0.0
      %441 = vadd.xlane.f32.xlu0 %v440
      %v442 = vpop.xlane.xlu0 %441
      %v443 = vrcp.pop %v442
      %v444 = vmul.f32 %v439, %v443
      %v445 = vpack.c.bf16 %v444, %v444
      %446 = vrot.lane.b32.xlu0 %v164, 80
      %v447 = vpop.permute.xlu0 %446
      %v450 = vsel %vm213, %v445, 0
      %452 = vmatprep.subr.bf16.mxu0 0
      %453 = vmatpush1.bf16.msra.mxu0 %v447
      %454 = vmatprep.subr.bf16.mxu0 0
      %455 = vmatpush1.bf16.msra.mxu0 0
      %456 = vmatprep.subr.bf16.mxu0 0
      %457 = vmatpush1.bf16.msra.mxu0 0
      %458 = vmatprep.subr.bf16.mxu0 0
      %459 = vmatpush1.bf16.msra.mxu0 0
      %460 = vmatprep.subr.bf16.mxu0 0
      %461 = vmatpush1.bf16.msra.mxu0 0
      %462 = vmatprep.subr.bf16.mxu0 0
      %463 = vmatpush1.bf16.msra.mxu0 0
      %464 = vmatprep.subr.bf16.mxu0 0
      %465 = vmatpush1.bf16.msra.mxu0 0
      %466 = vmatprep.subr.bf16.mxu0 0
      %467 = vmatpush1.bf16.msra.mxu0 0
      %468 = vmatprep.subr.bf16.mxu0 0
      %469 = vmatpush1.bf16.msra.mxu0 0
      %470 = vmatprep.subr.bf16.mxu0 0
      %471 = vmatpush1.bf16.msra.mxu0 0
      %472 = vmatprep.subr.bf16.mxu0 0
      %473 = vmatpush1.bf16.msra.mxu0 0
      %474 = vmatprep.subr.bf16.mxu0 0
      %475 = vmatpush1.bf16.msra.mxu0 0
      %476 = vmatprep.subr.bf16.mxu0 0
      %477 = vmatpush1.bf16.msra.mxu0 0
      %478 = vmatprep.subr.bf16.mxu0 0
      %479 = vmatpush1.bf16.msra.mxu0 0
      %480 = vmatprep.subr.bf16.mxu0 0
      %481 = vmatpush1.bf16.msra.mxu0 0
      %482 = vmatprep.subr.bf16.mxu0 0
      %483 = vmatpush1.bf16.msra.mxu0 0
      %484 = vmatprep.mubr.bf16.mxu0 0
      %485 = vmatmul.mubr.bf16.gmra.mrb[0].mxu0 %v450
      %v486 = vpop.f32.mrb[0].mxu0
      %v487 = vadd.f32 0.0, %v486
      %v488 = vpop.f32.mrb[0].mxu0
      %v489 = vpop.f32.mrb[0].mxu0
      %v490 = vpop.f32.mrb[0].mxu0
      %491 = vdwg.mxu0
      %492 = vrot.lane.b32.xlu0 %v163, 104
      %v493 = vpop.permute.xlu0 %492
      %494 = vrot.lane.b32.xlu0 %v164, 104
      %v495 = vpop.permute.xlu0 %494
      %v497 = vsel %vm165, %v493, 0
      %v500 = vsel %vm165, %v495, 0
      %502 = vmatprep.subr.bf16.mxu0 0
      %503 = vmatpush1.bf16.xpose.msra.mxu0 %v500
      %504 = vmatprep.subr.bf16.mxu0 0
      %505 = vmatpush1.bf16.xpose.msra.mxu0 0
      %506 = vmatprep.subr.bf16.mxu0 0
      %507 = vmatpush1.bf16.xpose.msra.mxu0 0
      %508 = vmatprep.subr.bf16.mxu0 0
      %509 = vmatpush1.bf16.xpose.msra.mxu0 0
      %510 = vmatprep.subr.bf16.mxu0 0
      %511 = vmatpush1.bf16.xpose.msra.mxu0 0
      %512 = vmatprep.subr.bf16.mxu0 0
      %513 = vmatpush1.bf16.xpose.msra.mxu0 0
      %514 = vmatprep.subr.bf16.mxu0 0
      %515 = vmatpush1.bf16.xpose.msra.mxu0 0
      %516 = vmatprep.subr.bf16.mxu0 0
      %517 = vmatpush1.bf16.xpose.msra.mxu0 0
      %518 = vmatprep.subr.bf16.mxu0 0
      %519 = vmatpush1.bf16.xpose.msra.mxu0 0
      %520 = vmatprep.subr.bf16.mxu0 0
      %521 = vmatpush1.bf16.xpose.msra.mxu0 0
      %522 = vmatprep.subr.bf16.mxu0 0
      %523 = vmatpush1.bf16.xpose.msra.mxu0 0
      %524 = vmatprep.subr.bf16.mxu0 0
      %525 = vmatpush1.bf16.xpose.msra.mxu0 0
      %526 = vmatprep.subr.bf16.mxu0 0
      %527 = vmatpush1.bf16.xpose.msra.mxu0 0
      %528 = vmatprep.subr.bf16.mxu0 0
      %529 = vmatpush1.bf16.xpose.msra.mxu0 0
      %530 = vmatprep.subr.bf16.mxu0 0
      %531 = vmatpush1.bf16.xpose.msra.mxu0 0
      %532 = vmatprep.subr.bf16.mxu0 0
      %533 = vmatpush1.bf16.xpose.msra.mxu0 0
      %534 = vmatprep.mubr.bf16.mxu0 0
      %535 = vmatmul.mubr.bf16.gmra.mrb[0].mxu0 %v497
      %v536 = vpop.f32.mrb[0].mxu0
      %v537 = vadd.f32 0.0, %v536
      %v538 = vpop.f32.mrb[0].mxu0
      %v539 = vpop.f32.mrb[0].mxu0
      %v540 = vpop.f32.mrb[0].mxu0
      %541 = vdwg.mxu0
      %v542 = vmul.f32 %v537, 0.35355338
      %v543 = vsel %vm213, %v542, -inf
      %544 = vmax.xlane.f32.xlu0 %v543
      %v545 = vpop.xlane.xlu0 %544
      %v546 = vsub.f32 %v542, %v545
      %v547 = vmul.f32 %v546, 1.442695
      %v548 = vpow.pop %v547
      %v549 = vsel %vm213, %v548, 0.0
      %550 = vadd.xlane.f32.xlu0 %v549
      %v551 = vpop.xlane.xlu0 %550
      %v552 = vrcp.pop %v551
      %v553 = vmul.f32 %v548, %v552
      %v554 = vpack.c.bf16 %v553, %v553
      %555 = vrot.lane.b32.xlu0 %v164, 72
      %v556 = vpop.permute.xlu0 %555
      %v559 = vsel %vm213, %v554, 0
      %561 = vmatprep.subr.bf16.mxu0 0
      %562 = vmatpush1.bf16.msra.mxu0 %v556
      %563 = vmatprep.subr.bf16.mxu0 0
      %564 = vmatpush1.bf16.msra.mxu0 0
      %565 = vmatprep.subr.bf16.mxu0 0
      %566 = vmatpush1.bf16.msra.mxu0 0
      %567 = vmatprep.subr.bf16.mxu0 0
      %568 = vmatpush1.bf16.msra.mxu0 0
      %569 = vmatprep.subr.bf16.mxu0 0
      %570 = vmatpush1.bf16.msra.mxu0 0
      %571 = vmatprep.subr.bf16.mxu0 0
      %572 = vmatpush1.bf16.msra.mxu0 0
      %573 = vmatprep.subr.bf16.mxu0 0
      %574 = vmatpush1.bf16.msra.mxu0 0
      %575 = vmatprep.subr.bf16.mxu0 0
      %576 = vmatpush1.bf16.msra.mxu0 0
      %577 = vmatprep.subr.bf16.mxu0 0
      %578 = vmatpush1.bf16.msra.mxu0 0
      %579 = vmatprep.subr.bf16.mxu0 0
      %580 = vmatpush1.bf16.msra.mxu0 0
      %581 = vmatprep.subr.bf16.mxu0 0
      %582 = vmatpush1.bf16.msra.mxu0 0
      %583 = vmatprep.subr.bf16.mxu0 0
      %584 = vmatpush1.bf16.msra.mxu0 0
      %585 = vmatprep.subr.bf16.mxu0 0
      %586 = vmatpush1.bf16.msra.mxu0 0
      %587 = vmatprep.subr.bf16.mxu0 0
      %588 = vmatpush1.bf16.msra.mxu0 0
      %589 = vmatprep.subr.bf16.mxu0 0
      %590 = vmatpush1.bf16.msra.mxu0 0
      %591 = vmatprep.subr.bf16.mxu0 0
      %592 = vmatpush1.bf16.msra.mxu0 0
      %593 = vmatprep.mubr.bf16.mxu0 0
      %594 = vmatmul.mubr.bf16.gmra.mrb[0].mxu0 %v559
      %v595 = vpop.f32.mrb[0].mxu0
      %v596 = vadd.f32 0.0, %v595
      %v597 = vpop.f32.mrb[0].mxu0
      %v598 = vpop.f32.mrb[0].mxu0
      %v599 = vpop.f32.mrb[0].mxu0
      %600 = vdwg.mxu0
      %602 = vrot.lane.b32.xlu0 %v378, 8
      %v603 = vpop.permute.xlu0 %602
      %606 = vrot.lane.b32.xlu0 %v487, 16
      %v607 = vpop.permute.xlu0 %606
      %610 = vrot.lane.b32.xlu0 %v596, 24
      %v611 = vpop.permute.xlu0 %610
      %v613 = vsel %vm165, %v268, %v603
      %v614 = vsel %vm213, %v613, %v607
      %vm615 = vcmask 195584
      %v616 = vsel %vm615, %v614, %v611
      %vm617 = vcmask 261120
      %618 = vst.msk [vmem:[%s158] sm:$0xff] %vm617, %v616
      %p619 = scmp.lt.s32.totalorder %s13, 1
      %s620 = scalar_select %p619, %s13, 1
      %s621 = smul.addr %s620, 8
      %s622 = scalar_lea.vmem %s2, %s621
      // Predicated region
      $region29: #{_lambda_.40} parent=27 // pred_check
        %p623 = pneg %p83
      $region30: #{_lambda_.40} parent=27 // pred_check_branch
        %625 = sbr.rel (%p623) target = $region32
      $region31: #{_lambda_.40} parent=27 // pred_region
        _
      $region32: #{_lambda_.40} parent=27 // pred_fallthru
        _
    $region28: #{_lambda_.40} parent=5 // pred_fallthru
      _
    %p626 = scmp.le.s32.totalorder 2, %s8
    // Predicated region
    $region33: #{_lambda_.40} parent=5 // pred_check
      %p627 = pneg %p626
    $region34: #{_lambda_.40} parent=5 // pred_check_branch
      %629 = sbr.rel (%p627) target = $region36
    $region35: #{_lambda_.40} parent=5 // pred_region
      %s630 = ssub.s32 %s8, 2
      // Predicated region
      $region37: #{_lambda_.40} parent=35 // pred_check
        %p631 = pneg %p89
      $region38: #{_lambda_.40} parent=35 // pred_check_branch
        %633 = sbr.rel (%p631) target = $region40
      $region39: #{_lambda_.40} parent=35 // pred_region
        %p634 = scmp.lt.s32.totalorder %s14, 1
        %s635 = scalar_select %p634, %s14, 1
        %s636 = smul.addr %s635, 8
        %s637 = scalar_lea.vmem %s2, %s636
      $region40: #{_lambda_.40} parent=35 // pred_fallthru
        _
    $region36: #{_lambda_.40} parent=5 // pred_fallthru
      _
  $region6: #{_lambda_.40} parent=0 // loop_footer
    %s12 = sadd.s32 1, %s8
  $region7: #{_lambda_.40} parent=0 // loop_footer_branch
    %7 = sbr.rel target = $region3
  $region8: #{_lambda_.40} parent=0 // loop_exit
    _

// kernel: _lambda_.38
$region0: #{_lambda_.38}
  #allocation0 [shape = 'u32[]', space=smem, size = 0x4, offset = 0x4, fixed_abs, tag = 'smem constant byte address 0x4 - core index']
  #allocation1 [shape = 'u32[144,128]{1,0:T(1,128)}', space=vmem, size = 0x12000, scoped, tag = 'internal scratch']
  #allocation2 [shape = 'f32[16,32]{1,0:T(8,128)}', space=vmem, size = 0x2000, scoped, tag = 'scratch operand']
  %s0 = inlined_call_operand.vmem [shape: f32[16,32], index: 0, kind: input, shape index: {}]
  %s1 = inlined_call_operand.vmem [shape: bf16[32,32], index: 1, kind: input, shape index: {}]
  %s2 = inlined_call_operand.vmem [shape: f32[1,32], index: 2, kind: input, shape index: {}]
  %s3 = inlined_call_operand.vmem [shape: f32[16,32], index: 3, kind: output, shape index: {}]
  %s4 = sld [smem:[#allocation0]]
  $region30: #{_lambda_.38} parent=0
    _
  %s6 = ssub.s32 1, %s4
  %s7 = scalar_select 0, %s6, %s4
  // Predicated region
  $region2: #{_lambda_.38} parent=0 // pred_check
    _
  $region3: #{_lambda_.38} parent=0 // pred_check_branch
    %9 = sbr.rel (0) target = $region5
  $region4: #{_lambda_.38} parent=0 // pred_region
    _
  $region5: #{_lambda_.38} parent=0 // pred_fallthru
    _
  // Predicated region
  $region6: #{_lambda_.38} parent=0 // pred_check
    _
  $region7: #{_lambda_.38} parent=0 // pred_check_branch
    %11 = sbr.rel (0) target = $region9
  $region8: #{_lambda_.38} parent=0 // pred_region
    _
  $region9: #{_lambda_.38} parent=0 // pred_fallthru
    _
  // Predicated region
  $region10: #{_lambda_.38} parent=0 // pred_check
    _
  $region11: #{_lambda_.38} parent=0 // pred_check_branch
    %13 = sbr.rel (0) target = $region13
  $region12: #{_lambda_.38} parent=0 // pred_region
    _
  $region13: #{_lambda_.38} parent=0 // pred_fallthru
    _
  %p15 = scmp.eq.s32.totalorder 0, 0
  // Predicated region
  $region14: #{_lambda_.38} parent=0 // pred_check
    %p16 = pneg %p15
  $region15: #{_lambda_.38} parent=0 // pred_check_branch
    %18 = sbr.rel (%p16) target = $region17
  $region16: #{_lambda_.38} parent=0 // pred_region
    %vm19 = vcmask 261120
    %20 = vst.msk [vmem:[#allocation2] sm:$0xff] %vm19, 0.0
    %21 = vst.msk [vmem:[#allocation2 + $0x8] sm:$0xff] %vm19, 0.0
  $region17: #{_lambda_.38} parent=0 // pred_fallthru
    _
  %v22 = vld [vmem:[#allocation2] sm:$0xff]
  %v23 = vld [vmem:[#allocation2 + $0x8] sm:$0xff]
  %v24 = vld [vmem:[%s0] sm:$0xff]
  %v25 = vld [vmem:[%s0 + $0x8] sm:$0xff]
  %v26 = vpack.c.bf16 %v25, %v24
  %v27 = vld [vmem:[%s1] sm:$0xf]
  %v28 = vld [vmem:[%s1 + $0x4] sm:$0xf]
  %v29 = vld [vmem:[%s1 + $0x8] sm:$0xf]
  %v30 = vld [vmem:[%s1 + $0xc] sm:$0xf]
  %v35 = vunpack.c.l.b16 %v27
  %v36 = vunpack.c.l.b16 %v28
  %v37 = vunpack.c.l.b16 %v29
  %v38 = vunpack.c.l.b16 %v30
  %v39 = vpack.c.b16 %v36, %v35
  %v40 = vpack.c.b16 %v38, %v37
  %vm43 = vcmask 261120
  %v45 = vsel %vm43, %v26, 0
  %47 = vmatprep.subr.bf16.mxu0 0
  %48 = vmatpush1.bf16.msra.mxu0 %v39
  %49 = vmatprep.subr.bf16.mxu0 0
  %50 = vmatpush1.bf16.msra.mxu0 %v40
  %51 = vmatprep.subr.bf16.mxu0 0
  %52 = vmatpush1.bf16.msra.mxu0 0
  %53 = vmatprep.subr.bf16.mxu0 0
  %54 = vmatpush1.bf16.msra.mxu0 0
  %55 = vmatprep.subr.bf16.mxu0 0
  %56 = vmatpush1.bf16.msra.mxu0 0
  %57 = vmatprep.subr.bf16.mxu0 0
  %58 = vmatpush1.bf16.msra.mxu0 0
  %59 = vmatprep.subr.bf16.mxu0 0
  %60 = vmatpush1.bf16.msra.mxu0 0
  %61 = vmatprep.subr.bf16.mxu0 0
  %62 = vmatpush1.bf16.msra.mxu0 0
  %63 = vmatprep.subr.bf16.mxu0 0
  %64 = vmatpush1.bf16.msra.mxu0 0
  %65 = vmatprep.subr.bf16.mxu0 0
  %66 = vmatpush1.bf16.msra.mxu0 0
  %67 = vmatprep.subr.bf16.mxu0 0
  %68 = vmatpush1.bf16.msra.mxu0 0
  %69 = vmatprep.subr.bf16.mxu0 0
  %70 = vmatpush1.bf16.msra.mxu0 0
  %71 = vmatprep.subr.bf16.mxu0 0
  %72 = vmatpush1.bf16.msra.mxu0 0
  %73 = vmatprep.subr.bf16.mxu0 0
  %74 = vmatpush1.bf16.msra.mxu0 0
  %75 = vmatprep.subr.bf16.mxu0 0
  %76 = vmatpush1.bf16.msra.mxu0 0
  %77 = vmatprep.subr.bf16.mxu0 0
  %78 = vmatpush1.bf16.msra.mxu0 0
  %79 = vmatprep.mubr.bf16.mxu0 0
  %80 = vmatmul.mubr.bf16.gmra.mrb[0].mxu0 %v45
  %v81 = vpop.f32.mrb[0].mxu0
  %v82 = vadd.f32 0.0, %v81
  %v83 = vpop.f32.mrb[0].mxu0
  %v84 = vpop.f32.mrb[0].mxu0
  %v85 = vadd.f32 0.0, %v84
  %v86 = vpop.f32.mrb[0].mxu0
  %87 = vdwg.mxu0
  %v88 = vadd.f32 %v22, %v82
  %v89 = vadd.f32 %v23, %v85
  %90 = vst.msk [vmem:[#allocation2] sm:$0xff] %vm43, %v88
  %91 = vst.msk [vmem:[#allocation2 + $0x8] sm:$0xff] %vm43, %v89
  // Predicated region
  $region18: #{_lambda_.38} parent=0 // pred_check
    %p92 = pneg %p15
  $region19: #{_lambda_.38} parent=0 // pred_check_branch
    %94 = sbr.rel (%p92) target = $region21
  $region20: #{_lambda_.38} parent=0 // pred_region
    %v95 = vld [vmem:[#allocation2] sm:$0xff]
    %v96 = vld [vmem:[#allocation2 + $0x8] sm:$0xff]
    %v97 = vld [vmem:[%s2] sm:$0x1]
    %v99 = vlaneseq
    %v100 = vshrl.u32 %v99, 7
    %v101 = vsub.s32 0, %v100
    %v102 = vrot.slane %v97, %v101
    %v104 = vadd.f32 %v95, %v102
    %v105 = vadd.f32 %v96, %v102
    %106 = vst.msk [vmem:[%s3] sm:$0xff] %vm43, %v104
    %107 = vst.msk [vmem:[%s3 + $0x8] sm:$0xff] %vm43, %v105
  $region21: #{_lambda_.38} parent=0 // pred_fallthru
    _
  // Predicated region
  $region22: #{_lambda_.38} parent=0 // pred_check
    _
  $region23: #{_lambda_.38} parent=0 // pred_check_branch
    %109 = sbr.rel (0) target = $region25
  $region24: #{_lambda_.38} parent=0 // pred_region
    _
  $region25: #{_lambda_.38} parent=0 // pred_fallthru
    _
  // Predicated region
  $region26: #{_lambda_.38} parent=0 // pred_check
    _
  $region27: #{_lambda_.38} parent=0 // pred_check_branch
    %111 = sbr.rel (0) target = $region29
  $region28: #{_lambda_.38} parent=0 // pred_region
    _
  $region29: #{_lambda_.38} parent=0 // pred_fallthru
    _

// kernel: _lambda_.41
$region0: #{_lambda_.41}
  #allocation0 [shape = 'u32[]', space=smem, size = 0x4, offset = 0x4, fixed_abs, tag = 'smem constant byte address 0x4 - core index']
  #allocation1 [shape = 'u32[144,128]{1,0:T(1,128)}', space=vmem, size = 0x12000, scoped, tag = 'internal scratch']
  %s0 = inlined_call_operand.vmem [shape: f32[16,32], index: 0, kind: input, shape index: {}]
  %s1 = inlined_call_operand.vmem [shape: bf16[32,32], index: 1, kind: input, shape index: {}]
  %s2 = inlined_call_operand.vmem [shape: f32[1,32], index: 2, kind: input, shape index: {}, may-alias: {2,5}]
  %s3 = inlined_call_operand.vmem [shape: f32[16,32], index: 3, kind: input, shape index: {}]
  %s4 = inlined_call_operand.vmem [shape: f32[1,32], index: 4, kind: input, shape index: {}]
  %s5 = inlined_call_operand.vmem [shape: f32[1,32], index: 5, kind: input, shape index: {}, may-alias: {2,5}]
  %s6 = inlined_call_operand.vmem [shape: f32[16,32], index: 6, kind: output, shape index: {}]
  %s7 = sld [smem:[#allocation0]]
  $region34: #{_lambda_.41} parent=0
    _
  %s9 = ssub.s32 1, %s7
  %s10 = scalar_select 0, %s9, %s7
  // Predicated region
  $region2: #{_lambda_.41} parent=0 // pred_check
    _
  $region3: #{_lambda_.41} parent=0 // pred_check_branch
    %12 = sbr.rel (0) target = $region5
  $region4: #{_lambda_.41} parent=0 // pred_region
    _
  $region5: #{_lambda_.41} parent=0 // pred_fallthru
    _
  // Predicated region
  $region6: #{_lambda_.41} parent=0 // pred_check
    _
  $region7: #{_lambda_.41} parent=0 // pred_check_branch
    %14 = sbr.rel (0) target = $region9
  $region8: #{_lambda_.41} parent=0 // pred_region
    _
  $region9: #{_lambda_.41} parent=0 // pred_fallthru
    _
  // Predicated region
  $region10: #{_lambda_.41} parent=0 // pred_check
    _
  $region11: #{_lambda_.41} parent=0 // pred_check_branch
    %16 = sbr.rel (0) target = $region13
  $region12: #{_lambda_.41} parent=0 // pred_region
    _
  $region13: #{_lambda_.41} parent=0 // pred_fallthru
    _
  // Predicated region
  $region14: #{_lambda_.41} parent=0 // pred_check
    _
  $region15: #{_lambda_.41} parent=0 // pred_check_branch
    %18 = sbr.rel (0) target = $region17
  $region16: #{_lambda_.41} parent=0 // pred_region
    _
  $region17: #{_lambda_.41} parent=0 // pred_fallthru
    _
  // Predicated region
  $region18: #{_lambda_.41} parent=0 // pred_check
    _
  $region19: #{_lambda_.41} parent=0 // pred_check_branch
    %20 = sbr.rel (0) target = $region21
  $region20: #{_lambda_.41} parent=0 // pred_region
    _
  $region21: #{_lambda_.41} parent=0 // pred_fallthru
    _
  // Predicated region
  $region22: #{_lambda_.41} parent=0 // pred_check
    _
  $region23: #{_lambda_.41} parent=0 // pred_check_branch
    %22 = sbr.rel (0) target = $region25
  $region24: #{_lambda_.41} parent=0 // pred_region
    _
  $region25: #{_lambda_.41} parent=0 // pred_fallthru
    _
  %v24 = vld [vmem:[%s0] sm:$0xff]
  %v25 = vld [vmem:[%s0 + $0x8] sm:$0xff]
  %v26 = vpack.c.bf16 %v25, %v24
  %v27 = vld [vmem:[%s1] sm:$0xf]
  %v28 = vld [vmem:[%s1 + $0x4] sm:$0xf]
  %v29 = vld [vmem:[%s1 + $0x8] sm:$0xf]
  %v30 = vld [vmem:[%s1 + $0xc] sm:$0xf]
  %v31 = vld [vmem:[%s2] sm:$0x1]
  %v33 = vlaneseq
  %v34 = vshrl.u32 %v33, 7
  %v35 = vsub.s32 0, %v34
  %v36 = vrot.slane %v31, %v35
  %v42 = vunpack.c.l.b16 %v27
  %v43 = vunpack.c.l.b16 %v28
  %v44 = vunpack.c.l.b16 %v29
  %v45 = vunpack.c.l.b16 %v30
  %v46 = vpack.c.b16 %v43, %v42
  %v47 = vpack.c.b16 %v45, %v44
  %vm50 = vcmask 261120
  %v52 = vsel %vm50, %v26, 0
  %54 = vmatprep.subr.bf16.mxu0 0
  %55 = vmatpush1.bf16.msra.mxu0 %v46
  %56 = vmatprep.subr.bf16.mxu0 0
  %57 = vmatpush1.bf16.msra.mxu0 %v47
  %58 = vmatprep.subr.bf16.mxu0 0
  %59 = vmatpush1.bf16.msra.mxu0 0
  %60 = vmatprep.subr.bf16.mxu0 0
  %61 = vmatpush1.bf16.msra.mxu0 0
  %62 = vmatprep.subr.bf16.mxu0 0
  %63 = vmatpush1.bf16.msra.mxu0 0
  %64 = vmatprep.subr.bf16.mxu0 0
  %65 = vmatpush1.bf16.msra.mxu0 0
  %66 = vmatprep.subr.bf16.mxu0 0
  %67 = vmatpush1.bf16.msra.mxu0 0
  %68 = vmatprep.subr.bf16.mxu0 0
  %69 = vmatpush1.bf16.msra.mxu0 0
  %70 = vmatprep.subr.bf16.mxu0 0
  %71 = vmatpush1.bf16.msra.mxu0 0
  %72 = vmatprep.subr.bf16.mxu0 0
  %73 = vmatpush1.bf16.msra.mxu0 0
  %74 = vmatprep.subr.bf16.mxu0 0
  %75 = vmatpush1.bf16.msra.mxu0 0
  %76 = vmatprep.subr.bf16.mxu0 0
  %77 = vmatpush1.bf16.msra.mxu0 0
  %78 = vmatprep.subr.bf16.mxu0 0
  %79 = vmatpush1.bf16.msra.mxu0 0
  %80 = vmatprep.subr.bf16.mxu0 0
  %81 = vmatpush1.bf16.msra.mxu0 0
  %82 = vmatprep.subr.bf16.mxu0 0
  %83 = vmatpush1.bf16.msra.mxu0 0
  %84 = vmatprep.subr.bf16.mxu0 0
  %85 = vmatpush1.bf16.msra.mxu0 0
  %86 = vmatprep.mubr.bf16.mxu0 0
  %87 = vmatmul.mubr.bf16.gmra.mrb[0].mxu0 %v52
  %v88 = vpop.f32.mrb[0].mxu0
  %v89 = vadd.f32 %v36, %v88
  %v90 = vpop.f32.mrb[0].mxu0
  %v91 = vpop.f32.mrb[0].mxu0
  %v92 = vadd.f32 %v36, %v91
  %v93 = vpop.f32.mrb[0].mxu0
  %94 = vdwg.mxu0
  %v95 = vld [vmem:[%s3] sm:$0xff]
  %v96 = vld [vmem:[%s3 + $0x8] sm:$0xff]
  %v97 = vadd.f32 %v89, %v95
  %v98 = vadd.f32 %v92, %v96
  %v99 = vld [vmem:[%s4] sm:$0x1]
  %v100 = vld [vmem:[%s5] sm:$0x1]
  %v101 = vsel %vm50, %v97, 0.0
  %102 = vadd.xlane.f32.xlu0 %v101
  %v103 = vpop.xlane.xlu0 %102
  %v104 = vsel %vm50, %v98, 0.0
  %105 = vadd.xlane.f32.xlu0 %v104
  %v106 = vpop.xlane.xlu0 %105
  %v107 = vmul.f32 %v97, %v97
  %v108 = vmul.f32 %v98, %v98
  %v109 = vsel %vm50, %v107, 0.0
  %110 = vadd.xlane.f32.xlu0 %v109
  %v111 = vpop.xlane.xlu0 %110
  %v112 = vsel %vm50, %v108, 0.0
  %113 = vadd.xlane.f32.xlu0 %v112
  %v114 = vpop.xlane.xlu0 %113
  %v115 = vmul.f32 %v103, 0.03125
  %v116 = vmul.f32 %v106, 0.03125
  %v117 = vmul.f32 %v111, 0.03125
  %v118 = vmul.f32 %v114, 0.03125
  %v119 = vmul.f32 %v115, %v115
  %v120 = vmul.f32 %v116, %v116
  %v121 = vsub.f32 %v117, %v119
  %v122 = vsub.f32 %v118, %v120
  %v123 = vadd.f32 %v121, 1e-05
  %v124 = vadd.f32 %v122, 1e-05
  %v125 = vrsqrt.pop %v123
  %v126 = vrsqrt.pop %v124
  %v127 = vsub.f32 %v97, %v115
  %v128 = vsub.f32 %v98, %v116
  %v129 = vmul.f32 %v127, %v125
  %v130 = vmul.f32 %v128, %v126
  %v132 = vlaneseq
  %v133 = vshrl.u32 %v132, 7
  %v134 = vsub.s32 0, %v133
  %v135 = vrot.slane %v99, %v134
  %v137 = vmul.f32 %v129, %v135
  %v138 = vmul.f32 %v130, %v135
  %v140 = vlaneseq
  %v141 = vshrl.u32 %v140, 7
  %v142 = vsub.s32 0, %v141
  %v143 = vrot.slane %v100, %v142
  %v145 = vadd.f32 %v137, %v143
  %v146 = vadd.f32 %v138, %v143
  %147 = vst.msk [vmem:[%s6] sm:$0xff] %vm50, %v145
  %148 = vst.msk [vmem:[%s6 + $0x8] sm:$0xff] %vm50, %v146
  // Predicated region
  $region26: #{_lambda_.41} parent=0 // pred_check
    _
  $region27: #{_lambda_.41} parent=0 // pred_check_branch
    %150 = sbr.rel (0) target = $region29
  $region28: #{_lambda_.41} parent=0 // pred_region
    _
  $region29: #{_lambda_.41} parent=0 // pred_fallthru
    _
  // Predicated region
  $region30: #{_lambda_.41} parent=0 // pred_check
    _
  $region31: #{_lambda_.41} parent=0 // pred_check_branch
    %152 = sbr.rel (0) target = $region33
  $region32: #{_lambda_.41} parent=0 // pred_region
    _
  $region33: #{_lambda_.41} parent=0 // pred_fallthru
    _

// kernel: _lambda_.42
$region0: #{_lambda_.42}
  #allocation0 [shape = 'u32[]', space=smem, size = 0x4, offset = 0x4, fixed_abs, tag = 'smem constant byte address 0x4 - core index']
  #allocation1 [shape = 'u32[144,128]{1,0:T(1,128)}', space=vmem, size = 0x12000, scoped, tag = 'internal scratch']
  #allocation2 [shape = 'f32[16,96]{1,0:T(8,128)}', space=vmem, size = 0x2000, scoped, tag = 'scratch operand']
  %s0 = inlined_call_operand.vmem [shape: f32[16,32], index: 0, kind: input, shape index: {}]
  %s1 = inlined_call_operand.vmem [shape: bf16[32,96], index: 1, kind: input, shape index: {}]
  %s2 = inlined_call_operand.vmem [shape: f32[1,96], index: 2, kind: input, shape index: {}]
  %s3 = inlined_call_operand.vmem [shape: f32[16,96], index: 3, kind: output, shape index: {}]
  %s4 = sld [smem:[#allocation0]]
  $region30: #{_lambda_.42} parent=0
    _
  %s6 = ssub.s32 1, %s4
  %s7 = scalar_select 0, %s6, %s4
  // Predicated region
  $region2: #{_lambda_.42} parent=0 // pred_check
    _
  $region3: #{_lambda_.42} parent=0 // pred_check_branch
    %9 = sbr.rel (0) target = $region5
  $region4: #{_lambda_.42} parent=0 // pred_region
    _
  $region5: #{_lambda_.42} parent=0 // pred_fallthru
    _
  // Predicated region
  $region6: #{_lambda_.42} parent=0 // pred_check
    _
  $region7: #{_lambda_.42} parent=0 // pred_check_branch
    %11 = sbr.rel (0) target = $region9
  $region8: #{_lambda_.42} parent=0 // pred_region
    _
  $region9: #{_lambda_.42} parent=0 // pred_fallthru
    _
  // Predicated region
  $region10: #{_lambda_.42} parent=0 // pred_check
    _
  $region11: #{_lambda_.42} parent=0 // pred_check_branch
    %13 = sbr.rel (0) target = $region13
  $region12: #{_lambda_.42} parent=0 // pred_region
    _
  $region13: #{_lambda_.42} parent=0 // pred_fallthru
    _
  %p15 = scmp.eq.s32.totalorder 0, 0
  // Predicated region
  $region14: #{_lambda_.42} parent=0 // pred_check
    %p16 = pneg %p15
  $region15: #{_lambda_.42} parent=0 // pred_check_branch
    %18 = sbr.rel (%p16) target = $region17
  $region16: #{_lambda_.42} parent=0 // pred_region
    %vm19 = vcmask 785408
    %20 = vst.msk [vmem:[#allocation2] sm:$0xff] %vm19, 0.0
    %21 = vst.msk [vmem:[#allocation2 + $0x8] sm:$0xff] %vm19, 0.0
  $region17: #{_lambda_.42} parent=0 // pred_fallthru
    _
  %v22 = vld [vmem:[#allocation2] sm:$0xff]
  %v23 = vld [vmem:[#allocation2 + $0x8] sm:$0xff]
  %v24 = vld [vmem:[%s0] sm:$0xff]
  %v25 = vld [vmem:[%s0 + $0x8] sm:$0xff]
  %v26 = vpack.c.bf16 %v25, %v24
  %v27 = vld [vmem:[%s1] sm:$0xf]
  %v28 = vld [vmem:[%s1 + $0x4] sm:$0xf]
  %v29 = vld [vmem:[%s1 + $0x8] sm:$0xf]
  %v30 = vld [vmem:[%s1 + $0xc] sm:$0xf]
  %v35 = vunpack.c.l.b16 %v27
  %v36 = vunpack.c.l.b16 %v28
  %v37 = vunpack.c.l.b16 %v29
  %v38 = vunpack.c.l.b16 %v30
  %v39 = vpack.c.b16 %v36, %v35
  %v40 = vpack.c.b16 %v38, %v37
  %vm43 = vcmask 261120
  %v45 = vsel %vm43, %v26, 0
  %47 = vmatprep.subr.bf16.mxu0 0
  %48 = vmatpush1.bf16.msra.mxu0 %v39
  %49 = vmatprep.subr.bf16.mxu0 0
  %50 = vmatpush1.bf16.msra.mxu0 %v40
  %51 = vmatprep.subr.bf16.mxu0 0
  %52 = vmatpush1.bf16.msra.mxu0 0
  %53 = vmatprep.subr.bf16.mxu0 0
  %54 = vmatpush1.bf16.msra.mxu0 0
  %55 = vmatprep.subr.bf16.mxu0 0
  %56 = vmatpush1.bf16.msra.mxu0 0
  %57 = vmatprep.subr.bf16.mxu0 0
  %58 = vmatpush1.bf16.msra.mxu0 0
  %59 = vmatprep.subr.bf16.mxu0 0
  %60 = vmatpush1.bf16.msra.mxu0 0
  %61 = vmatprep.subr.bf16.mxu0 0
  %62 = vmatpush1.bf16.msra.mxu0 0
  %63 = vmatprep.subr.bf16.mxu0 0
  %64 = vmatpush1.bf16.msra.mxu0 0
  %65 = vmatprep.subr.bf16.mxu0 0
  %66 = vmatpush1.bf16.msra.mxu0 0
  %67 = vmatprep.subr.bf16.mxu0 0
  %68 = vmatpush1.bf16.msra.mxu0 0
  %69 = vmatprep.subr.bf16.mxu0 0
  %70 = vmatpush1.bf16.msra.mxu0 0
  %71 = vmatprep.subr.bf16.mxu0 0
  %72 = vmatpush1.bf16.msra.mxu0 0
  %73 = vmatprep.subr.bf16.mxu0 0
  %74 = vmatpush1.bf16.msra.mxu0 0
  %75 = vmatprep.subr.bf16.mxu0 0
  %76 = vmatpush1.bf16.msra.mxu0 0
  %77 = vmatprep.subr.bf16.mxu0 0
  %78 = vmatpush1.bf16.msra.mxu0 0
  %79 = vmatprep.mubr.bf16.mxu0 0
  %80 = vmatmul.mubr.bf16.gmra.mrb[0].mxu0 %v45
  %v81 = vpop.f32.mrb[0].mxu0
  %v82 = vadd.f32 0.0, %v81
  %v83 = vpop.f32.mrb[0].mxu0
  %v84 = vpop.f32.mrb[0].mxu0
  %v85 = vadd.f32 0.0, %v84
  %v86 = vpop.f32.mrb[0].mxu0
  %87 = vdwg.mxu0
  %v88 = vadd.f32 %v22, %v82
  %v89 = vadd.f32 %v23, %v85
  %vm90 = vcmask 785408
  %91 = vst.msk [vmem:[#allocation2] sm:$0xff] %vm90, %v88
  %92 = vst.msk [vmem:[#allocation2 + $0x8] sm:$0xff] %vm90, %v89
  // Predicated region
  $region18: #{_lambda_.42} parent=0 // pred_check
    %p93 = pneg %p15
  $region19: #{_lambda_.42} parent=0 // pred_check_branch
    %95 = sbr.rel (%p93) target = $region21
  $region20: #{_lambda_.42} parent=0 // pred_region
    %v96 = vld [vmem:[#allocation2] sm:$0xff]
    %v97 = vld [vmem:[#allocation2 + $0x8] sm:$0xff]
    %v98 = vld [vmem:[%s2] sm:$0x1]
    %v100 = vlaneseq
    %v101 = vshrl.u32 %v100, 7
    %v102 = vsub.s32 0, %v101
    %v103 = vrot.slane %v98, %v102
    %v105 = vadd.f32 %v96, %v103
    %v106 = vadd.f32 %v97, %v103
    %107 = vst.msk [vmem:[%s3] sm:$0xff] %vm90, %v105
    %108 = vst.msk [vmem:[%s3 + $0x8] sm:$0xff] %vm90, %v106
  $region21: #{_lambda_.42} parent=0 // pred_fallthru
    _
  // Predicated region
  $region22: #{_lambda_.42} parent=0 // pred_check
    _
  $region23: #{_lambda_.42} parent=0 // pred_check_branch
    %110 = sbr.rel (0) target = $region25
  $region24: #{_lambda_.42} parent=0 // pred_region
    _
  $region25: #{_lambda_.42} parent=0 // pred_fallthru
    _
  // Predicated region
  $region26: #{_lambda_.42} parent=0 // pred_check
    _
  $region27: #{_lambda_.42} parent=0 // pred_check_branch
    %112 = sbr.rel (0) target = $region29
  $region28: #{_lambda_.42} parent=0 // pred_region
    _
  $region29: #{_lambda_.42} parent=0 // pred_fallthru
    _

// kernel: _lambda_.43
$region0: #{_lambda_.43}
  #allocation0 [shape = 'u32[]', space=smem, size = 0x4, offset = 0x4, fixed_abs, tag = 'smem constant byte address 0x4 - core index']
  #allocation1 [shape = 'u32[144,128]{1,0:T(1,128)}', space=vmem, size = 0x12000, scoped, tag = 'internal scratch']
  %s0 = inlined_call_operand.vmem [shape: f32[2,8,96], index: 0, kind: input, shape index: {}]
  %s1 = inlined_call_operand.vmem [shape: f32[2,8,32], index: 1, kind: output, shape index: {}]
  %s2 = sld [smem:[#allocation0]]
  $region37: #{_lambda_.43} parent=0
    _
  %s4 = ssub.s32 1, %s2
  %s5 = scalar_select 0, %s4, %s2
  loop: start=0, step=1, limit=4
  $region2: #{_lambda_.43} parent=0 // loop_pre_header
    _
  $region3: #{_lambda_.43} parent=0 // loop_header
    %s7 = sphi 0, %s11
    %p8 = scmp.ge.s32.totalorder %s7, 4
    %s17 = sphi 0, %s19
    %s20 = sphi 0, %s17
    %s21 = sphi 0, %s20
    %s37 = sphi 0, %s21
    %s43 = sphi 0, %s45
    %s46 = sphi 0, %s43
    %s47 = sphi 0, %s46
    %s63 = sphi 0, %s47
  $region4: #{_lambda_.43} parent=0 // loop_header_branch
    %10 = sbr.rel (%p8) target = $region8
  $region5: #{_lambda_.43} parent=0 // loop_body
    %s12 = ssub.s32 %s7, 1
    %s13 = ssub.s32 %s7, 2
    %s14 = sadd.s32 %s7, 1
    %s15 = ssub.s32 %s7, %s14
    %p16 = scmp.eq.s32.totalorder %s15, 0
    %s18 = sadd.s32 %s17, 1
    %s19 = scalar_select %p16, %s17, %s18
    %p22 = pneg %p16
    %p23 = scmp.eq.s32.totalorder %s7, 1
    %p24 = por %p22, %p23
    %p25 = scmp.ne.s32.totalorder %s17, %s20
    %p26 = scmp.eq.s32.totalorder %s7, 0
    %p27 = por %p25, %p26
    %p28 = scmp.ne.s32.totalorder %s17, %s20
    %p29 = scmp.eq.s32.totalorder %s12, 1
    %p30 = por %p28, %p29
    %p31 = scmp.ne.s32.totalorder %s20, %s21
    %p32 = scmp.eq.s32.totalorder %s12, 0
    %p33 = por %p31, %p32
    %p34 = scmp.ne.s32.totalorder %s20, %s21
    %p35 = scmp.eq.s32.totalorder %s13, 1
    %p36 = por %p34, %p35
    %p38 = scmp.ne.s32.totalorder %s21, %s37
    %p39 = scmp.eq.s32.totalorder %s13, 0
    %p40 = por %p38, %p39
    %s41 = ssub.s32 %s7, %s14
    %p42 = scmp.eq.s32.totalorder %s41, 0
    %s44 = sadd.s32 %s43, 1
    %s45 = scalar_select %p42, %s43, %s44
    %p48 = pneg %p42
    %p49 = scmp.eq.s32.totalorder %s7, 1
    %p50 = por %p48, %p49
    %p51 = scmp.ne.s32.totalorder %s43, %s46
    %p52 = scmp.eq.s32.totalorder %s7, 0
    %p53 = por %p51, %p52
    %p54 = scmp.ne.s32.totalorder %s43, %s46
    %p55 = scmp.eq.s32.totalorder %s12, 1
    %p56 = por %p54, %p55
    %p57 = scmp.ne.s32.totalorder %s46, %s47
    %p58 = scmp.eq.s32.totalorder %s12, 0
    %p59 = por %p57, %p58
    %p60 = scmp.ne.s32.totalorder %s46, %s47
    %p61 = scmp.eq.s32.totalorder %s13, 1
    %p62 = por %p60, %p61
    %p64 = scmp.ne.s32.totalorder %s47, %s63
    %p65 = scmp.eq.s32.totalorder %s13, 0
    %p66 = por %p64, %p65
    %p67 = scmp.le.s32.totalorder 1, %s7
    %p68 = scmp.lt.s32.totalorder %s7, 3
    %p69 = pnand %p67, %p68
    %p70 = pneg %p69
    // Predicated region
    $region9: #{_lambda_.43} parent=5 // pred_check
      _
    $region10: #{_lambda_.43} parent=5 // pred_check_branch
      %72 = sbr.rel (%p69) target = $region12
    $region11: #{_lambda_.43} parent=5 // pred_region
      %s73 = ssub.s32 %s7, 1
    $region12: #{_lambda_.43} parent=5 // pred_fallthru
      _
    %p74 = scmp.lt.s32.totalorder %s7, 2
    // Predicated region
    $region13: #{_lambda_.43} parent=5 // pred_check
      %p75 = pneg %p74
    $region14: #{_lambda_.43} parent=5 // pred_check_branch
      %77 = sbr.rel (%p75) target = $region16
    $region15: #{_lambda_.43} parent=5 // pred_region
      // Predicated region
      $region17: #{_lambda_.43} parent=15 // pred_check
        %p78 = pneg %p27
      $region18: #{_lambda_.43} parent=15 // pred_check_branch
        %80 = sbr.rel (%p78) target = $region20
      $region19: #{_lambda_.43} parent=15 // pred_region
        %p81 = scmp.lt.s32.totalorder %s7, 1
        %s82 = scalar_select %p81, %s7, 1
        %s83 = smul.addr %s82, 8
        %s84 = scalar_lea.vmem %s0, %s83
      $region20: #{_lambda_.43} parent=15 // pred_fallthru
        _
    $region16: #{_lambda_.43} parent=5 // pred_fallthru
      _
    %p85 = scmp.le.s32.totalorder 1, %s7
    %p86 = scmp.lt.s32.totalorder %s7, 3
    %p87 = pnand %p85, %p86
    %p88 = pneg %p87
    // Predicated region
    $region21: #{_lambda_.43} parent=5 // pred_check
      _
    $region22: #{_lambda_.43} parent=5 // pred_check_branch
      %90 = sbr.rel (%p87) target = $region24
    $region23: #{_lambda_.43} parent=5 // pred_region
      %s91 = ssub.s32 %s7, 1
      %p92 = scmp.lt.s32.totalorder %s12, 1
      %s93 = scalar_select %p92, %s12, 1
      %s94 = smul.addr %s93, 8
      %s95 = scalar_lea.vmem %s0, %s94
      %p96 = pneg %p33
      %p97 = pneg %p30
      %p98 = pneg %p59
      %p99 = pneg %p56
      %p100 = scmp.lt.s32.totalorder %s12, 1
      %s101 = scalar_select %p100, %s12, 1
      %s102 = smul.addr %s101, 8
      %s103 = scalar_lea.vmem %s1, %s102
      %p104 = scmp.lt.s32.totalorder %s12, 1
      %s105 = scalar_select %p104, %s12, 1
      %s106 = smul.addr %s105, 8
      %s107 = scalar_lea.vmem %s0, %s106
      %p108 = scmp.lt.s32.totalorder %s12, 1
      %s109 = scalar_select %p108, %s12, 1
      %s110 = smul.addr %s109, 8
      %s111 = scalar_lea.vmem %s1, %s110
      %v113 = vld [vmem:[%s107] sm:$0xff]
      %v114 = vpack.c.bf16 %v113, %v113
      %116 = vrot.lane.b32.xlu0 %v114, 96
      %v117 = vpop.permute.xlu0 %116
      %vm118 = vcmask 64512
      %v120 = vsel %vm118, %v114, 0
      %v123 = vsel %vm118, %v117, 0
      %125 = vmatprep.subr.bf16.mxu0 0
      %126 = vmatpush1.bf16.xpose.msra.mxu0 %v123
      %127 = vmatprep.subr.bf16.mxu0 0
      %128 = vmatpush1.bf16.xpose.msra.mxu0 0
      %129 = vmatprep.subr.bf16.mxu0 0
      %130 = vmatpush1.bf16.xpose.msra.mxu0 0
      %131 = vmatprep.subr.bf16.mxu0 0
      %132 = vmatpush1.bf16.xpose.msra.mxu0 0
      %133 = vmatprep.subr.bf16.mxu0 0
      %134 = vmatpush1.bf16.xpose.msra.mxu0 0
      %135 = vmatprep.subr.bf16.mxu0 0
      %136 = vmatpush1.bf16.xpose.msra.mxu0 0
      %137 = vmatprep.subr.bf16.mxu0 0
      %138 = vmatpush1.bf16.xpose.msra.mxu0 0
      %139 = vmatprep.subr.bf16.mxu0 0
      %140 = vmatpush1.bf16.xpose.msra.mxu0 0
      %141 = vmatprep.subr.bf16.mxu0 0
      %142 = vmatpush1.bf16.xpose.msra.mxu0 0
      %143 = vmatprep.subr.bf16.mxu0 0
      %144 = vmatpush1.bf16.xpose.msra.mxu0 0
      %145 = vmatprep.subr.bf16.mxu0 0
      %146 = vmatpush1.bf16.xpose.msra.mxu0 0
      %147 = vmatprep.subr.bf16.mxu0 0
      %148 = vmatpush1.bf16.xpose.msra.mxu0 0
      %149 = vmatprep.subr.bf16.mxu0 0
      %150 = vmatpush1.bf16.xpose.msra.mxu0 0
      %151 = vmatprep.subr.bf16.mxu0 0
      %152 = vmatpush1.bf16.xpose.msra.mxu0 0
      %153 = vmatprep.subr.bf16.mxu0 0
      %154 = vmatpush1.bf16.xpose.msra.mxu0 0
      %155 = vmatprep.subr.bf16.mxu0 0
      %156 = vmatpush1.bf16.xpose.msra.mxu0 0
      %157 = vmatprep.mubr.bf16.mxu0 0
      %158 = vmatmul.mubr.bf16.gmra.mrb[0].mxu0 %v120
      %v159 = vpop.f32.mrb[0].mxu0
      %v160 = vadd.f32 0.0, %v159
      %v161 = vpop.f32.mrb[0].mxu0
      %v162 = vpop.f32.mrb[0].mxu0
      %v163 = vpop.f32.mrb[0].mxu0
      %164 = vdwg.mxu0
      %v165 = vmul.f32 %v160, 0.35355338
      %v166 = vsel %vm118, %v165, -inf
      %167 = vmax.xlane.f32.xlu0 %v166
      %v168 = vpop.xlane.xlu0 %167
      %v169 = vsub.f32 %v165, %v168
      %v170 = vmul.f32 %v169, 1.442695
      %v171 = vpow.pop %v170
      %v172 = vsel %vm118, %v171, 0.0
      %173 = vadd.xlane.f32.xlu0 %v172
      %v174 = vpop.xlane.xlu0 %173
      %v175 = vrcp.pop %v174
      %v176 = vmul.f32 %v171, %v175
      %v177 = vpack.c.bf16 %v176, %v176
      %178 = vrot.lane.b32.xlu0 %v114, 64
      %v179 = vpop.permute.xlu0 %178
      %v181 = vsel %vm118, %v177, 0
      %vm183 = vcmask 1043456
      %v185 = vsel %vm183, %v179, 0
      %187 = vmatprep.subr.bf16.mxu0 0
      %188 = vmatpush1.bf16.msra.mxu0 %v185
      %189 = vmatprep.subr.bf16.mxu0 0
      %190 = vmatpush1.bf16.msra.mxu0 0
      %191 = vmatprep.subr.bf16.mxu0 0
      %192 = vmatpush1.bf16.msra.mxu0 0
      %193 = vmatprep.subr.bf16.mxu0 0
      %194 = vmatpush1.bf16.msra.mxu0 0
      %195 = vmatprep.subr.bf16.mxu0 0
      %196 = vmatpush1.bf16.msra.mxu0 0
      %197 = vmatprep.subr.bf16.mxu0 0
      %198 = vmatpush1.bf16.msra.mxu0 0
      %199 = vmatprep.subr.bf16.mxu0 0
      %200 = vmatpush1.bf16.msra.mxu0 0
      %201 = vmatprep.subr.bf16.mxu0 0
      %202 = vmatpush1.bf16.msra.mxu0 0
      %203 = vmatprep.subr.bf16.mxu0 0
      %204 = vmatpush1.bf16.msra.mxu0 0
      %205 = vmatprep.subr.bf16.mxu0 0
      %206 = vmatpush1.bf16.msra.mxu0 0
      %207 = vmatprep.subr.bf16.mxu0 0
      %208 = vmatpush1.bf16.msra.mxu0 0
      %209 = vmatprep.subr.bf16.mxu0 0
      %210 = vmatpush1.bf16.msra.mxu0 0
      %211 = vmatprep.subr.bf16.mxu0 0
      %212 = vmatpush1.bf16.msra.mxu0 0
      %213 = vmatprep.subr.bf16.mxu0 0
      %214 = vmatpush1.bf16.msra.mxu0 0
      %215 = vmatprep.subr.bf16.mxu0 0
      %216 = vmatpush1.bf16.msra.mxu0 0
      %217 = vmatprep.subr.bf16.mxu0 0
      %218 = vmatpush1.bf16.msra.mxu0 0
      %219 = vmatprep.mubr.bf16.mxu0 0
      %220 = vmatmul.mubr.bf16.gmra.mrb[0].mxu0 %v181
      %v221 = vpop.f32.mrb[0].mxu0
      %v222 = vadd.f32 0.0, %v221
      %v223 = vpop.f32.mrb[0].mxu0
      %v224 = vpop.f32.mrb[0].mxu0
      %v225 = vpop.f32.mrb[0].mxu0
      %226 = vdwg.mxu0
      %227 = vrot.lane.b32.xlu0 %v114, 120
      %v228 = vpop.permute.xlu0 %227
      %229 = vrot.lane.b32.xlu0 %v114, 88
      %v230 = vpop.permute.xlu0 %229
      %v232 = vsel %vm118, %v228, 0
      %v235 = vsel %vm118, %v230, 0
      %237 = vmatprep.subr.bf16.mxu0 0
      %238 = vmatpush1.bf16.xpose.msra.mxu0 %v235
      %239 = vmatprep.subr.bf16.mxu0 0
      %240 = vmatpush1.bf16.xpose.msra.mxu0 0
      %241 = vmatprep.subr.bf16.mxu0 0
      %242 = vmatpush1.bf16.xpose.msra.mxu0 0
      %243 = vmatprep.subr.bf16.mxu0 0
      %244 = vmatpush1.bf16.xpose.msra.mxu0 0
      %245 = vmatprep.subr.bf16.mxu0 0
      %246 = vmatpush1.bf16.xpose.msra.mxu0 0
      %247 = vmatprep.subr.bf16.mxu0 0
      %248 = vmatpush1.bf16.xpose.msra.mxu0 0
      %249 = vmatprep.subr.bf16.mxu0 0
      %250 = vmatpush1.bf16.xpose.msra.mxu0 0
      %251 = vmatprep.subr.bf16.mxu0 0
      %252 = vmatpush1.bf16.xpose.msra.mxu0 0
      %253 = vmatprep.subr.bf16.mxu0 0
      %254 = vmatpush1.bf16.xpose.msra.mxu0 0
      %255 = vmatprep.subr.bf16.mxu0 0
      %256 = vmatpush1.bf16.xpose.msra.mxu0 0
      %257 = vmatprep.subr.bf16.mxu0 0
      %258 = vmatpush1.bf16.xpose.msra.mxu0 0
      %259 = vmatprep.subr.bf16.mxu0 0
      %260 = vmatpush1.bf16.xpose.msra.mxu0 0
      %261 = vmatprep.subr.bf16.mxu0 0
      %262 = vmatpush1.bf16.xpose.msra.mxu0 0
      %263 = vmatprep.subr.bf16.mxu0 0
      %264 = vmatpush1.bf16.xpose.msra.mxu0 0
      %265 = vmatprep.subr.bf16.mxu0 0
      %266 = vmatpush1.bf16.xpose.msra.mxu0 0
      %267 = vmatprep.subr.bf16.mxu0 0
      %268 = vmatpush1.bf16.xpose.msra.mxu0 0
      %269 = vmatprep.mubr.bf16.mxu0 0
      %270 = vmatmul.mubr.bf16.gmra.mrb[0].mxu0 %v232
      %v271 = vpop.f32.mrb[0].mxu0
      %v272 = vadd.f32 0.0, %v271
      %v273 = vpop.f32.mrb[0].mxu0
      %v274 = vpop.f32.mrb[0].mxu0
      %v275 = vpop.f32.mrb[0].mxu0
      %276 = vdwg.mxu0
      %v277 = vmul.f32 %v272, 0.35355338
      %v278 = vsel %vm118, %v277, -inf
      %279 = vmax.xlane.f32.xlu0 %v278
      %v280 = vpop.xlane.xlu0 %279
      %v281 = vsub.f32 %v277, %v280
      %v282 = vmul.f32 %v281, 1.442695
      %v283 = vpow.pop %v282
      %v284 = vsel %vm118, %v283, 0.0
      %285 = vadd.xlane.f32.xlu0 %v284
      %v286 = vpop.xlane.xlu0 %285
      %v287 = vrcp.pop %v286
      %v288 = vmul.f32 %v283, %v287
      %v289 = vpack.c.bf16 %v288, %v288
      %290 = vrot.lane.b32.xlu0 %v114, 56
      %v291 = vpop.permute.xlu0 %290
      %v293 = vsel %vm118, %v289, 0
      %v296 = vsel %vm183, %v291, 0
      %298 = vmatprep.subr.bf16.mxu0 0
      %299 = vmatpush1.bf16.msra.mxu0 %v296
      %300 = vmatprep.subr.bf16.mxu0 0
      %301 = vmatpush1.bf16.msra.mxu0 0
      %302 = vmatprep.subr.bf16.mxu0 0
      %303 = vmatpush1.bf16.msra.mxu0 0
      %304 = vmatprep.subr.bf16.mxu0 0
      %305 = vmatpush1.bf16.msra.mxu0 0
      %306 = vmatprep.subr.bf16.mxu0 0
      %307 = vmatpush1.bf16.msra.mxu0 0
      %308 = vmatprep.subr.bf16.mxu0 0
      %309 = vmatpush1.bf16.msra.mxu0 0
      %310 = vmatprep.subr.bf16.mxu0 0
      %311 = vmatpush1.bf16.msra.mxu0 0
      %312 = vmatprep.subr.bf16.mxu0 0
      %313 = vmatpush1.bf16.msra.mxu0 0
      %314 = vmatprep.subr.bf16.mxu0 0
      %315 = vmatpush1.bf16.msra.mxu0 0
      %316 = vmatprep.subr.bf16.mxu0 0
      %317 = vmatpush1.bf16.msra.mxu0 0
      %318 = vmatprep.subr.bf16.mxu0 0
      %319 = vmatpush1.bf16.msra.mxu0 0
      %320 = vmatprep.subr.bf16.mxu0 0
      %321 = vmatpush1.bf16.msra.mxu0 0
      %322 = vmatprep.subr.bf16.mxu0 0
      %323 = vmatpush1.bf16.msra.mxu0 0
      %324 = vmatprep.subr.bf16.mxu0 0
      %325 = vmatpush1.bf16.msra.mxu0 0
      %326 = vmatprep.subr.bf16.mxu0 0
      %327 = vmatpush1.bf16.msra.mxu0 0
      %328 = vmatprep.subr.bf16.mxu0 0
      %329 = vmatpush1.bf16.msra.mxu0 0
      %330 = vmatprep.mubr.bf16.mxu0 0
      %331 = vmatmul.mubr.bf16.gmra.mrb[0].mxu0 %v293
      %v332 = vpop.f32.mrb[0].mxu0
      %v333 = vadd.f32 0.0, %v332
      %v334 = vpop.f32.mrb[0].mxu0
      %v335 = vpop.f32.mrb[0].mxu0
      %v336 = vpop.f32.mrb[0].mxu0
      %337 = vdwg.mxu0
      %338 = vrot.lane.b32.xlu0 %v114, 112
      %v339 = vpop.permute.xlu0 %338
      %340 = vrot.lane.b32.xlu0 %v114, 80
      %v341 = vpop.permute.xlu0 %340
      %v343 = vsel %vm118, %v339, 0
      %v346 = vsel %vm118, %v341, 0
      %348 = vmatprep.subr.bf16.mxu0 0
      %349 = vmatpush1.bf16.xpose.msra.mxu0 %v346
      %350 = vmatprep.subr.bf16.mxu0 0
      %351 = vmatpush1.bf16.xpose.msra.mxu0 0
      %352 = vmatprep.subr.bf16.mxu0 0
      %353 = vmatpush1.bf16.xpose.msra.mxu0 0
      %354 = vmatprep.subr.bf16.mxu0 0
      %355 = vmatpush1.bf16.xpose.msra.mxu0 0
      %356 = vmatprep.subr.bf16.mxu0 0
      %357 = vmatpush1.bf16.xpose.msra.mxu0 0
      %358 = vmatprep.subr.bf16.mxu0 0
      %359 = vmatpush1.bf16.xpose.msra.mxu0 0
      %360 = vmatprep.subr.bf16.mxu0 0
      %361 = vmatpush1.bf16.xpose.msra.mxu0 0
      %362 = vmatprep.subr.bf16.mxu0 0
      %363 = vmatpush1.bf16.xpose.msra.mxu0 0
      %364 = vmatprep.subr.bf16.mxu0 0
      %365 = vmatpush1.bf16.xpose.msra.mxu0 0
      %366 = vmatprep.subr.bf16.mxu0 0
      %367 = vmatpush1.bf16.xpose.msra.mxu0 0
      %368 = vmatprep.subr.bf16.mxu0 0
      %369 = vmatpush1.bf16.xpose.msra.mxu0 0
      %370 = vmatprep.subr.bf16.mxu0 0
      %371 = vmatpush1.bf16.xpose.msra.mxu0 0
      %372 = vmatprep.subr.bf16.mxu0 0
      %373 = vmatpush1.bf16.xpose.msra.mxu0 0
      %374 = vmatprep.subr.bf16.mxu0 0
      %375 = vmatpush1.bf16.xpose.msra.mxu0 0
      %376 = vmatprep.subr.bf16.mxu0 0
      %377 = vmatpush1.bf16.xpose.msra.mxu0 0
      %378 = vmatprep.subr.bf16.mxu0 0
      %379 = vmatpush1.bf16.xpose.msra.mxu0 0
      %380 = vmatprep.mubr.bf16.mxu0 0
      %381 = vmatmul.mubr.bf16.gmra.mrb[0].mxu0 %v343
      %v382 = vpop.f32.mrb[0].mxu0
      %v383 = vadd.f32 0.0, %v382
      %v384 = vpop.f32.mrb[0].mxu0
      %v385 = vpop.f32.mrb[0].mxu0
      %v386 = vpop.f32.mrb[0].mxu0
      %387 = vdwg.mxu0
      %v388 = vmul.f32 %v383, 0.35355338
      %v389 = vsel %vm118, %v388, -inf
      %390 = vmax.xlane.f32.xlu0 %v389
      %v391 = vpop.xlane.xlu0 %390
      %v392 = vsub.f32 %v388, %v391
      %v393 = vmul.f32 %v392, 1.442695
      %v394 = vpow.pop %v393
      %v395 = vsel %vm118, %v394, 0.0
      %396 = vadd.xlane.f32.xlu0 %v395
      %v397 = vpop.xlane.xlu0 %396
      %v398 = vrcp.pop %v397
      %v399 = vmul.f32 %v394, %v398
      %v400 = vpack.c.bf16 %v399, %v399
      %401 = vrot.lane.b32.xlu0 %v114, 48
      %v402 = vpop.permute.xlu0 %401
      %v404 = vsel %vm118, %v400, 0
      %v407 = vsel %vm183, %v402, 0
      %409 = vmatprep.subr.bf16.mxu0 0
      %410 = vmatpush1.bf16.msra.mxu0 %v407
      %411 = vmatprep.subr.bf16.mxu0 0
      %412 = vmatpush1.bf16.msra.mxu0 0
      %413 = vmatprep.subr.bf16.mxu0 0
      %414 = vmatpush1.bf16.msra.mxu0 0
      %415 = vmatprep.subr.bf16.mxu0 0
      %416 = vmatpush1.bf16.msra.mxu0 0
      %417 = vmatprep.subr.bf16.mxu0 0
      %418 = vmatpush1.bf16.msra.mxu0 0
      %419 = vmatprep.subr.bf16.mxu0 0
      %420 = vmatpush1.bf16.msra.mxu0 0
      %421 = vmatprep.subr.bf16.mxu0 0
      %422 = vmatpush1.bf16.msra.mxu0 0
      %423 = vmatprep.subr.bf16.mxu0 0
      %424 = vmatpush1.bf16.msra.mxu0 0
      %425 = vmatprep.subr.bf16.mxu0 0
      %426 = vmatpush1.bf16.msra.mxu0 0
      %427 = vmatprep.subr.bf16.mxu0 0
      %428 = vmatpush1.bf16.msra.mxu0 0
      %429 = vmatprep.subr.bf16.mxu0 0
      %430 = vmatpush1.bf16.msra.mxu0 0
      %431 = vmatprep.subr.bf16.mxu0 0
      %432 = vmatpush1.bf16.msra.mxu0 0
      %433 = vmatprep.subr.bf16.mxu0 0
      %434 = vmatpush1.bf16.msra.mxu0 0
      %435 = vmatprep.subr.bf16.mxu0 0
      %436 = vmatpush1.bf16.msra.mxu0 0
      %437 = vmatprep.subr.bf16.mxu0 0
      %438 = vmatpush1.bf16.msra.mxu0 0
      %439 = vmatprep.subr.bf16.mxu0 0
      %440 = vmatpush1.bf16.msra.mxu0 0
      %441 = vmatprep.mubr.bf16.mxu0 0
      %442 = vmatmul.mubr.bf16.gmra.mrb[0].mxu0 %v404
      %v443 = vpop.f32.mrb[0].mxu0
      %v444 = vadd.f32 0.0, %v443
      %v445 = vpop.f32.mrb[0].mxu0
      %v446 = vpop.f32.mrb[0].mxu0
      %v447 = vpop.f32.mrb[0].mxu0
      %448 = vdwg.mxu0
      %449 = vrot.lane.b32.xlu0 %v114, 104
      %v450 = vpop.permute.xlu0 %449
      %451 = vrot.lane.b32.xlu0 %v114, 72
      %v452 = vpop.permute.xlu0 %451
      %v454 = vsel %vm118, %v450, 0
      %v457 = vsel %vm118, %v452, 0
      %459 = vmatprep.subr.bf16.mxu0 0
      %460 = vmatpush1.bf16.xpose.msra.mxu0 %v457
      %461 = vmatprep.subr.bf16.mxu0 0
      %462 = vmatpush1.bf16.xpose.msra.mxu0 0
      %463 = vmatprep.subr.bf16.mxu0 0
      %464 = vmatpush1.bf16.xpose.msra.mxu0 0
      %465 = vmatprep.subr.bf16.mxu0 0
      %466 = vmatpush1.bf16.xpose.msra.mxu0 0
      %467 = vmatprep.subr.bf16.mxu0 0
      %468 = vmatpush1.bf16.xpose.msra.mxu0 0
      %469 = vmatprep.subr.bf16.mxu0 0
      %470 = vmatpush1.bf16.xpose.msra.mxu0 0
      %471 = vmatprep.subr.bf16.mxu0 0
      %472 = vmatpush1.bf16.xpose.msra.mxu0 0
      %473 = vmatprep.subr.bf16.mxu0 0
      %474 = vmatpush1.bf16.xpose.msra.mxu0 0
      %475 = vmatprep.subr.bf16.mxu0 0
      %476 = vmatpush1.bf16.xpose.msra.mxu0 0
      %477 = vmatprep.subr.bf16.mxu0 0
      %478 = vmatpush1.bf16.xpose.msra.mxu0 0
      %479 = vmatprep.subr.bf16.mxu0 0
      %480 = vmatpush1.bf16.xpose.msra.mxu0 0
      %481 = vmatprep.subr.bf16.mxu0 0
      %482 = vmatpush1.bf16.xpose.msra.mxu0 0
      %483 = vmatprep.subr.bf16.mxu0 0
      %484 = vmatpush1.bf16.xpose.msra.mxu0 0
      %485 = vmatprep.subr.bf16.mxu0 0
      %486 = vmatpush1.bf16.xpose.msra.mxu0 0
      %487 = vmatprep.subr.bf16.mxu0 0
      %488 = vmatpush1.bf16.xpose.msra.mxu0 0
      %489 = vmatprep.subr.bf16.mxu0 0
      %490 = vmatpush1.bf16.xpose.msra.mxu0 0
      %491 = vmatprep.mubr.bf16.mxu0 0
      %492 = vmatmul.mubr.bf16.gmra.mrb[0].mxu0 %v454
      %v493 = vpop.f32.mrb[0].mxu0
      %v494 = vadd.f32 0.0, %v493
      %v495 = vpop.f32.mrb[0].mxu0
      %v496 = vpop.f32.mrb[0].mxu0
      %v497 = vpop.f32.mrb[0].mxu0
      %498 = vdwg.mxu0
      %v499 = vmul.f32 %v494, 0.35355338
      %v500 = vsel %vm118, %v499, -inf
      %501 = vmax.xlane.f32.xlu0 %v500
      %v502 = vpop.xlane.xlu0 %501
      %v503 = vsub.f32 %v499, %v502
      %v504 = vmul.f32 %v503, 1.442695
      %v505 = vpow.pop %v504
      %v506 = vsel %vm118, %v505, 0.0
      %507 = vadd.xlane.f32.xlu0 %v506
      %v508 = vpop.xlane.xlu0 %507
      %v509 = vrcp.pop %v508
      %v510 = vmul.f32 %v505, %v509
      %v511 = vpack.c.bf16 %v510, %v510
      %512 = vrot.lane.b32.xlu0 %v114, 40
      %v513 = vpop.permute.xlu0 %512
      %v515 = vsel %vm118, %v511, 0
      %v518 = vsel %vm183, %v513, 0
      %520 = vmatprep.subr.bf16.mxu0 0
      %521 = vmatpush1.bf16.msra.mxu0 %v518
      %522 = vmatprep.subr.bf16.mxu0 0
      %523 = vmatpush1.bf16.msra.mxu0 0
      %524 = vmatprep.subr.bf16.mxu0 0
      %525 = vmatpush1.bf16.msra.mxu0 0
      %526 = vmatprep.subr.bf16.mxu0 0
      %527 = vmatpush1.bf16.msra.mxu0 0
      %528 = vmatprep.subr.bf16.mxu0 0
      %529 = vmatpush1.bf16.msra.mxu0 0
      %530 = vmatprep.subr.bf16.mxu0 0
      %531 = vmatpush1.bf16.msra.mxu0 0
      %532 = vmatprep.subr.bf16.mxu0 0
      %533 = vmatpush1.bf16.msra.mxu0 0
      %534 = vmatprep.subr.bf16.mxu0 0
      %535 = vmatpush1.bf16.msra.mxu0 0
      %536 = vmatprep.subr.bf16.mxu0 0
      %537 = vmatpush1.bf16.msra.mxu0 0
      %538 = vmatprep.subr.bf16.mxu0 0
      %539 = vmatpush1.bf16.msra.mxu0 0
      %540 = vmatprep.subr.bf16.mxu0 0
      %541 = vmatpush1.bf16.msra.mxu0 0
      %542 = vmatprep.subr.bf16.mxu0 0
      %543 = vmatpush1.bf16.msra.mxu0 0
      %544 = vmatprep.subr.bf16.mxu0 0
      %545 = vmatpush1.bf16.msra.mxu0 0
      %546 = vmatprep.subr.bf16.mxu0 0
      %547 = vmatpush1.bf16.msra.mxu0 0
      %548 = vmatprep.subr.bf16.mxu0 0
      %549 = vmatpush1.bf16.msra.mxu0 0
      %550 = vmatprep.subr.bf16.mxu0 0
      %551 = vmatpush1.bf16.msra.mxu0 0
      %552 = vmatprep.mubr.bf16.mxu0 0
      %553 = vmatmul.mubr.bf16.gmra.mrb[0].mxu0 %v515
      %v554 = vpop.f32.mrb[0].mxu0
      %v555 = vadd.f32 0.0, %v554
      %v556 = vpop.f32.mrb[0].mxu0
      %v557 = vpop.f32.mrb[0].mxu0
      %v558 = vpop.f32.mrb[0].mxu0
      %559 = vdwg.mxu0
      %561 = vrot.lane.b32.xlu0 %v333, 8
      %v562 = vpop.permute.xlu0 %561
      %565 = vrot.lane.b32.xlu0 %v444, 16
      %v566 = vpop.permute.xlu0 %565
      %569 = vrot.lane.b32.xlu0 %v555, 24
      %v570 = vpop.permute.xlu0 %569
      %v572 = vsel %vm118, %v222, %v562
      %vm573 = vcmask 130048
      %v574 = vsel %vm573, %v572, %v566
      %vm575 = vcmask 195584
      %v576 = vsel %vm575, %v574, %v570
      %vm577 = vcmask 261120
      %578 = vst.msk [vmem:[%s111] sm:$0xff] %vm577, %v576
      %p579 = scmp.lt.s32.totalorder %s12, 1
      %s580 = scalar_select %p579, %s12, 1
      %s581 = smul.addr %s580, 8
      %s582 = scalar_lea.vmem %s1, %s581
      // Predicated region
      $region25: #{_lambda_.43} parent=23 // pred_check
        %p583 = pneg %p56
      $region26: #{_lambda_.43} parent=23 // pred_check_branch
        %585 = sbr.rel (%p583) target = $region28
      $region27: #{_lambda_.43} parent=23 // pred_region
        _
      $region28: #{_lambda_.43} parent=23 // pred_fallthru
        _
    $region24: #{_lambda_.43} parent=5 // pred_fallthru
      _
    %p586 = scmp.le.s32.totalorder 2, %s7
    // Predicated region
    $region29: #{_lambda_.43} parent=5 // pred_check
      %p587 = pneg %p586
    $region30: #{_lambda_.43} parent=5 // pred_check_branch
      %589 = sbr.rel (%p587) target = $region32
    $region31: #{_lambda_.43} parent=5 // pred_region
      %s590 = ssub.s32 %s7, 2
      // Predicated region
      $region33: #{_lambda_.43} parent=31 // pred_check
        %p591 = pneg %p62
      $region34: #{_lambda_.43} parent=31 // pred_check_branch
        %593 = sbr.rel (%p591) target = $region36
      $region35: #{_lambda_.43} parent=31 // pred_region
        %p594 = scmp.lt.s32.totalorder %s13, 1
        %s595 = scalar_select %p594, %s13, 1
        %s596 = smul.addr %s595, 8
        %s597 = scalar_lea.vmem %s1, %s596
      $region36: #{_lambda_.43} parent=31 // pred_fallthru
        _
    $region32: #{_lambda_.43} parent=5 // pred_fallthru
      _
  $region6: #{_lambda_.43} parent=0 // loop_footer
    %s11 = sadd.s32 1, %s7
  $region7: #{_lambda_.43} parent=0 // loop_footer_branch
    %6 = sbr.rel target = $region3
  $region8: #{_lambda_.43} parent=0 // loop_exit
    _

// kernel: _lambda_.49
$region0: #{_lambda_.49}
  #allocation0 [shape = 'u32[]', space=smem, size = 0x4, offset = 0x4, fixed_abs, tag = 'smem constant byte address 0x4 - core index']
  #allocation1 [shape = 'u32[144,128]{1,0:T(1,128)}', space=vmem, size = 0x12000, scoped, tag = 'internal scratch']
  #allocation2 [shape = 'f32[16,32]{1,0:T(8,128)}', space=vmem, size = 0x2000, scoped, tag = 'scratch operand']
  %s0 = inlined_call_operand.vmem [shape: f32[16,32], index: 0, kind: input, shape index: {}]
  %s1 = inlined_call_operand.vmem [shape: bf16[32,64], index: 1, kind: input, shape index: {}]
  %s2 = inlined_call_operand.vmem [shape: f32[1,64], index: 2, kind: input, shape index: {}]
  %s3 = inlined_call_operand.vmem [shape: bf16[64,32], index: 3, kind: input, shape index: {}]
  %s4 = inlined_call_operand.vmem [shape: f32[1,32], index: 4, kind: input, shape index: {}, may-alias: {4,6}]
  %s5 = inlined_call_operand.vmem [shape: f32[1,32], index: 5, kind: input, shape index: {}]
  %s6 = inlined_call_operand.vmem [shape: f32[1,32], index: 6, kind: input, shape index: {}, may-alias: {4,6}]
  %s7 = inlined_call_operand.vmem [shape: f32[16,32], index: 7, kind: output, shape index: {}]
  %s8 = sld [smem:[#allocation0]]
  $region46: #{_lambda_.49} parent=0
    _
  %s10 = ssub.s32 1, %s8
  %s11 = scalar_select 0, %s10, %s8
  // Predicated region
  $region2: #{_lambda_.49} parent=0 // pred_check
    _
  $region3: #{_lambda_.49} parent=0 // pred_check_branch
    %13 = sbr.rel (0) target = $region5
  $region4: #{_lambda_.49} parent=0 // pred_region
    _
  $region5: #{_lambda_.49} parent=0 // pred_fallthru
    _
  // Predicated region
  $region6: #{_lambda_.49} parent=0 // pred_check
    _
  $region7: #{_lambda_.49} parent=0 // pred_check_branch
    %15 = sbr.rel (0) target = $region9
  $region8: #{_lambda_.49} parent=0 // pred_region
    _
  $region9: #{_lambda_.49} parent=0 // pred_fallthru
    _
  // Predicated region
  $region10: #{_lambda_.49} parent=0 // pred_check
    _
  $region11: #{_lambda_.49} parent=0 // pred_check_branch
    %17 = sbr.rel (0) target = $region13
  $region12: #{_lambda_.49} parent=0 // pred_region
    _
  $region13: #{_lambda_.49} parent=0 // pred_fallthru
    _
  // Predicated region
  $region14: #{_lambda_.49} parent=0 // pred_check
    _
  $region15: #{_lambda_.49} parent=0 // pred_check_branch
    %19 = sbr.rel (0) target = $region17
  $region16: #{_lambda_.49} parent=0 // pred_region
    _
  $region17: #{_lambda_.49} parent=0 // pred_fallthru
    _
  // Predicated region
  $region18: #{_lambda_.49} parent=0 // pred_check
    _
  $region19: #{_lambda_.49} parent=0 // pred_check_branch
    %21 = sbr.rel (0) target = $region21
  $region20: #{_lambda_.49} parent=0 // pred_region
    _
  $region21: #{_lambda_.49} parent=0 // pred_fallthru
    _
  // Predicated region
  $region22: #{_lambda_.49} parent=0 // pred_check
    _
  $region23: #{_lambda_.49} parent=0 // pred_check_branch
    %23 = sbr.rel (0) target = $region25
  $region24: #{_lambda_.49} parent=0 // pred_region
    _
  $region25: #{_lambda_.49} parent=0 // pred_fallthru
    _
  // Predicated region
  $region26: #{_lambda_.49} parent=0 // pred_check
    _
  $region27: #{_lambda_.49} parent=0 // pred_check_branch
    %25 = sbr.rel (0) target = $region29
  $region28: #{_lambda_.49} parent=0 // pred_region
    _
  $region29: #{_lambda_.49} parent=0 // pred_fallthru
    _
  %p27 = scmp.eq.s32.totalorder 0, 0
  // Predicated region
  $region30: #{_lambda_.49} parent=0 // pred_check
    %p28 = pneg %p27
  $region31: #{_lambda_.49} parent=0 // pred_check_branch
    %30 = sbr.rel (%p28) target = $region33
  $region32: #{_lambda_.49} parent=0 // pred_region
    %vm31 = vcmask 261120
    %32 = vst.msk [vmem:[#allocation2] sm:$0xff] %vm31, 0.0
    %33 = vst.msk [vmem:[#allocation2 + $0x8] sm:$0xff] %vm31, 0.0
  $region33: #{_lambda_.49} parent=0 // pred_fallthru
    _
  %v34 = vld [vmem:[%s0] sm:$0xff]
  %v35 = vld [vmem:[%s0 + $0x8] sm:$0xff]
  %v36 = vpack.c.bf16 %v35, %v34
  %v37 = vld [vmem:[%s1] sm:$0xf]
  %v38 = vld [vmem:[%s1 + $0x4] sm:$0xf]
  %v39 = vld [vmem:[%s1 + $0x8] sm:$0xf]
  %v40 = vld [vmem:[%s1 + $0xc] sm:$0xf]
  %v41 = vld [vmem:[%s2] sm:$0x1]
  %v43 = vlaneseq
  %v44 = vshrl.u32 %v43, 7
  %v45 = vsub.s32 0, %v44
  %v46 = vrot.slane %v41, %v45
  %v52 = vunpack.c.l.b16 %v37
  %v53 = vunpack.c.l.b16 %v38
  %v54 = vunpack.c.l.b16 %v39
  %v55 = vunpack.c.l.b16 %v40
  %v56 = vpack.c.b16 %v53, %v52
  %v57 = vpack.c.b16 %v55, %v54
  %vm60 = vcmask 261120
  %v62 = vsel %vm60, %v36, 0
  %64 = vmatprep.subr.bf16.mxu0 0
  %65 = vmatpush1.bf16.msra.mxu0 %v56
  %66 = vmatprep.subr.bf16.mxu0 0
  %67 = vmatpush1.bf16.msra.mxu0 %v57
  %68 = vmatprep.subr.bf16.mxu0 0
  %69 = vmatpush1.bf16.msra.mxu0 0
  %70 = vmatprep.subr.bf16.mxu0 0
  %71 = vmatpush1.bf16.msra.mxu0 0
  %72 = vmatprep.subr.bf16.mxu0 0
  %73 = vmatpush1.bf16.msra.mxu0 0
  %74 = vmatprep.subr.bf16.mxu0 0
  %75 = vmatpush1.bf16.msra.mxu0 0
  %76 = vmatprep.subr.bf16.mxu0 0
  %77 = vmatpush1.bf16.msra.mxu0 0
  %78 = vmatprep.subr.bf16.mxu0 0
  %79 = vmatpush1.bf16.msra.mxu0 0
  %80 = vmatprep.subr.bf16.mxu0 0
  %81 = vmatpush1.bf16.msra.mxu0 0
  %82 = vmatprep.subr.bf16.mxu0 0
  %83 = vmatpush1.bf16.msra.mxu0 0
  %84 = vmatprep.subr.bf16.mxu0 0
  %85 = vmatpush1.bf16.msra.mxu0 0
  %86 = vmatprep.subr.bf16.mxu0 0
  %87 = vmatpush1.bf16.msra.mxu0 0
  %88 = vmatprep.subr.bf16.mxu0 0
  %89 = vmatpush1.bf16.msra.mxu0 0
  %90 = vmatprep.subr.bf16.mxu0 0
  %91 = vmatpush1.bf16.msra.mxu0 0
  %92 = vmatprep.subr.bf16.mxu0 0
  %93 = vmatpush1.bf16.msra.mxu0 0
  %94 = vmatprep.subr.bf16.mxu0 0
  %95 = vmatpush1.bf16.msra.mxu0 0
  %96 = vmatprep.mubr.bf16.mxu0 0
  %97 = vmatmul.mubr.bf16.gmra.mrb[0].mxu0 %v62
  %v98 = vpop.f32.mrb[0].mxu0
  %v99 = vadd.f32 %v46, %v98
  %v100 = vpop.f32.mrb[0].mxu0
  %v101 = vpop.f32.mrb[0].mxu0
  %v102 = vadd.f32 %v46, %v101
  %v103 = vpop.f32.mrb[0].mxu0
  %104 = vdwg.mxu0
  %v105 = vmax.f32 %v99, 0.0
  %v106 = vmax.f32 %v102, 0.0
  %v107 = vld [vmem:[#allocation2] sm:$0xff]
  %v108 = vld [vmem:[#allocation2 + $0x8] sm:$0xff]
  %v109 = vpack.c.bf16 %v106, %v105
  %v110 = vld [vmem:[%s3] sm:$0xf]
  %v111 = vld [vmem:[%s3 + $0x4] sm:$0xf]
  %v112 = vld [vmem:[%s3 + $0x8] sm:$0xf]
  %v113 = vld [vmem:[%s3 + $0xc] sm:$0xf]
  %v114 = vld [vmem:[%s3 + $0x10] sm:$0xf]
  %v115 = vld [vmem:[%s3 + $0x14] sm:$0xf]
  %v116 = vld [vmem:[%s3 + $0x18] sm:$0xf]
  %v117 = vld [vmem:[%s3 + $0x1c] sm:$0xf]
  %v126 = vunpack.c.l.b16 %v110
  %v127 = vunpack.c.l.b16 %v111
  %v128 = vunpack.c.l.b16 %v112
  %v129 = vunpack.c.l.b16 %v113
  %v130 = vunpack.c.l.b16 %v114
  %v131 = vunpack.c.l.b16 %v115
  %v132 = vunpack.c.l.b16 %v116
  %v133 = vunpack.c.l.b16 %v117
  %v134 = vpack.c.b16 %v127, %v126
  %v135 = vpack.c.b16 %v129, %v128
  %v136 = vpack.c.b16 %v131, %v130
  %v137 = vpack.c.b16 %v133, %v132
  %vm142 = vcmask 523264
  %v144 = vsel %vm142, %v109, 0
  %146 = vmatprep.subr.bf16.mxu0 0
  %147 = vmatpush1.bf16.msra.mxu0 %v134
  %148 = vmatprep.subr.bf16.mxu0 0
  %149 = vmatpush1.bf16.msra.mxu0 %v135
  %150 = vmatprep.subr.bf16.mxu0 0
  %151 = vmatpush1.bf16.msra.mxu0 %v136
  %152 = vmatprep.subr.bf16.mxu0 0
  %153 = vmatpush1.bf16.msra.mxu0 %v137
  %154 = vmatprep.subr.bf16.mxu0 0
  %155 = vmatpush1.bf16.msra.mxu0 0
  %156 = vmatprep.subr.bf16.mxu0 0
  %157 = vmatpush1.bf16.msra.mxu0 0
  %158 = vmatprep.subr.bf16.mxu0 0
  %159 = vmatpush1.bf16.msra.mxu0 0
  %160 = vmatprep.subr.bf16.mxu0 0
  %161 = vmatpush1.bf16.msra.mxu0 0
  %162 = vmatprep.subr.bf16.mxu0 0
  %163 = vmatpush1.bf16.msra.mxu0 0
  %164 = vmatprep.subr.bf16.mxu0 0
  %165 = vmatpush1.bf16.msra.mxu0 0
  %166 = vmatprep.subr.bf16.mxu0 0
  %167 = vmatpush1.bf16.msra.mxu0 0
  %168 = vmatprep.subr.bf16.mxu0 0
  %169 = vmatpush1.bf16.msra.mxu0 0
  %170 = vmatprep.subr.bf16.mxu0 0
  %171 = vmatpush1.bf16.msra.mxu0 0
  %172 = vmatprep.subr.bf16.mxu0 0
  %173 = vmatpush1.bf16.msra.mxu0 0
  %174 = vmatprep.subr.bf16.mxu0 0
  %175 = vmatpush1.bf16.msra.mxu0 0
  %176 = vmatprep.subr.bf16.mxu0 0
  %177 = vmatpush1.bf16.msra.mxu0 0
  %178 = vmatprep.mubr.bf16.mxu0 0
  %179 = vmatmul.mubr.bf16.gmra.mrb[0].mxu0 %v144
  %v180 = vpop.f32.mrb[0].mxu0
  %v181 = vadd.f32 0.0, %v180
  %v182 = vpop.f32.mrb[0].mxu0
  %v183 = vpop.f32.mrb[0].mxu0
  %v184 = vadd.f32 0.0, %v183
  %v185 = vpop.f32.mrb[0].mxu0
  %186 = vdwg.mxu0
  %v187 = vadd.f32 %v107, %v181
  %v188 = vadd.f32 %v108, %v184
  %189 = vst.msk [vmem:[#allocation2] sm:$0xff] %vm60, %v187
  %190 = vst.msk [vmem:[#allocation2 + $0x8] sm:$0xff] %vm60, %v188
  // Predicated region
  $region34: #{_lambda_.49} parent=0 // pred_check
    %p191 = pneg %p27
  $region35: #{_lambda_.49} parent=0 // pred_check_branch
    %193 = sbr.rel (%p191) target = $region37
  $region36: #{_lambda_.49} parent=0 // pred_region
    %v194 = vld [vmem:[#allocation2] sm:$0xff]
    %v195 = vld [vmem:[#allocation2 + $0x8] sm:$0xff]
    %v196 = vld [vmem:[%s4] sm:$0x1]
    %v198 = vlaneseq
    %v199 = vshrl.u32 %v198, 7
    %v200 = vsub.s32 0, %v199
    %v201 = vrot.slane %v196, %v200
    %v203 = vadd.f32 %v194, %v201
    %v204 = vadd.f32 %v195, %v201
    %v205 = vld [vmem:[%s0] sm:$0xff]
    %v206 = vld [vmem:[%s0 + $0x8] sm:$0xff]
    %v207 = vadd.f32 %v203, %v205
    %v208 = vadd.f32 %v204, %v206
    %v209 = vld [vmem:[%s5] sm:$0x1]
    %v210 = vld [vmem:[%s6] sm:$0x1]
    %v211 = vsel %vm60, %v207, 0.0
    %212 = vadd.xlane.f32.xlu0 %v211
    %v213 = vpop.xlane.xlu0 %212
    %v214 = vsel %vm60, %v208, 0.0
    %215 = vadd.xlane.f32.xlu0 %v214
    %v216 = vpop.xlane.xlu0 %215
    %v217 = vmul.f32 %v207, %v207
    %v218 = vmul.f32 %v208, %v208
    %v219 = vsel %vm60, %v217, 0.0
    %220 = vadd.xlane.f32.xlu0 %v219
    %v221 = vpop.xlane.xlu0 %220
    %v222 = vsel %vm60, %v218, 0.0
    %223 = vadd.xlane.f32.xlu0 %v222
    %v224 = vpop.xlane.xlu0 %223
    %v225 = vmul.f32 %v213, 0.03125
    %v226 = vmul.f32 %v216, 0.03125
    %v227 = vmul.f32 %v221, 0.03125
    %v228 = vmul.f32 %v224, 0.03125
    %v229 = vmul.f32 %v225, %v225
    %v230 = vmul.f32 %v226, %v226
    %v231 = vsub.f32 %v227, %v229
    %v232 = vsub.f32 %v228, %v230
    %v233 = vadd.f32 %v231, 1e-05
    %v234 = vadd.f32 %v232, 1e-05
    %v235 = vrsqrt.pop %v233
    %v236 = vrsqrt.pop %v234
    %v237 = vsub.f32 %v207, %v225
    %v238 = vsub.f32 %v208, %v226
    %v239 = vmul.f32 %v237, %v235
    %v240 = vmul.f32 %v238, %v236
    %v242 = vlaneseq
    %v243 = vshrl.u32 %v242, 7
    %v244 = vsub.s32 0, %v243
    %v245 = vrot.slane %v209, %v244
    %v247 = vmul.f32 %v239, %v245
    %v248 = vmul.f32 %v240, %v245
    %v250 = vlaneseq
    %v251 = vshrl.u32 %v250, 7
    %v252 = vsub.s32 0, %v251
    %v253 = vrot.slane %v210, %v252
    %v255 = vadd.f32 %v247, %v253
    %v256 = vadd.f32 %v248, %v253
    %257 = vst.msk [vmem:[%s7] sm:$0xff] %vm60, %v255
    %258 = vst.msk [vmem:[%s7 + $0x8] sm:$0xff] %vm60, %v256
  $region37: #{_lambda_.49} parent=0 // pred_fallthru
    _
  // Predicated region
  $region38: #{_lambda_.49} parent=0 // pred_check
    _
  $region39: #{_lambda_.49} parent=0 // pred_check_branch
    %260 = sbr.rel (0) target = $region41
  $region40: #{_lambda_.49} parent=0 // pred_region
    _
  $region41: #{_lambda_.49} parent=0 // pred_fallthru
    _
  // Predicated region
  $region42: #{_lambda_.49} parent=0 // pred_check
    _
  $region43: #{_lambda_.49} parent=0 // pred_check_branch
    %262 = sbr.rel (0) target = $region45
  $region44: #{_lambda_.49} parent=0 // pred_region
    _
  $region45: #{_lambda_.49} parent=0 // pred_fallthru
    _

// kernel: _lambda_.57
$region0: #{_lambda_.57}
  #allocation0 [shape = 'u32[]', space=smem, size = 0x4, offset = 0x4, fixed_abs, tag = 'smem constant byte address 0x4 - core index']
  #allocation1 [shape = 'u32[144,128]{1,0:T(1,128)}', space=vmem, size = 0x12000, scoped, tag = 'internal scratch']
  #allocation2 [shape = 'f32[16,32]{1,0:T(8,128)}', space=vmem, size = 0x2000, scoped, tag = 'scratch operand']
  %s0 = inlined_call_operand.vmem [shape: f32[16,32], index: 0, kind: input, shape index: {}]
  %s1 = inlined_call_operand.vmem [shape: bf16[32,64], index: 1, kind: input, shape index: {}]
  %s2 = inlined_call_operand.vmem [shape: f32[1,64], index: 2, kind: input, shape index: {}]
  %s3 = inlined_call_operand.vmem [shape: bf16[64,32], index: 3, kind: input, shape index: {}]
  %s4 = inlined_call_operand.vmem [shape: f32[1,32], index: 4, kind: input, shape index: {}, may-alias: {4,6}]
  %s5 = inlined_call_operand.vmem [shape: f32[1,32], index: 5, kind: input, shape index: {}]
  %s6 = inlined_call_operand.vmem [shape: f32[1,32], index: 6, kind: input, shape index: {}, may-alias: {4,6}]
  %s7 = inlined_call_operand.hbm [shape: f32[16,32], index: 7, kind: output, shape index: {}]
  %s8 = sld [smem:[#allocation0]]
  $region46: #{_lambda_.57} parent=0
    _
  %s10 = ssub.s32 1, %s8
  %s11 = scalar_select 0, %s10, %s8
  $region1: #{_lambda_.57} parent=0
    #allocation3 [shape = 'u8[8192]{0}', space=vmem, size = 0x2000, scoped, tag = 'output window, operand 0, single buffered']
    #allocation4 [shape = 's32[1]{0}', space=sflag, size = 0x4, scoped, tag = 'scoped memory for _lambda_.57']
    %12 = vsyncpa [#allocation4], 0
    // Predicated region
    $region2: #{_lambda_.57} parent=1 // pred_check
      _
    $region3: #{_lambda_.57} parent=1 // pred_check_branch
      %14 = sbr.rel (0) target = $region5
    $region4: #{_lambda_.57} parent=1 // pred_region
      _
    $region5: #{_lambda_.57} parent=1 // pred_fallthru
      _
    // Predicated region
    $region6: #{_lambda_.57} parent=1 // pred_check
      _
    $region7: #{_lambda_.57} parent=1 // pred_check_branch
      %16 = sbr.rel (0) target = $region9
    $region8: #{_lambda_.57} parent=1 // pred_region
      _
    $region9: #{_lambda_.57} parent=1 // pred_fallthru
      _
    // Predicated region
    $region10: #{_lambda_.57} parent=1 // pred_check
      _
    $region11: #{_lambda_.57} parent=1 // pred_check_branch
      %18 = sbr.rel (0) target = $region13
    $region12: #{_lambda_.57} parent=1 // pred_region
      _
    $region13: #{_lambda_.57} parent=1 // pred_fallthru
      _
    // Predicated region
    $region14: #{_lambda_.57} parent=1 // pred_check
      _
    $region15: #{_lambda_.57} parent=1 // pred_check_branch
      %20 = sbr.rel (0) target = $region17
    $region16: #{_lambda_.57} parent=1 // pred_region
      _
    $region17: #{_lambda_.57} parent=1 // pred_fallthru
      _
    // Predicated region
    $region18: #{_lambda_.57} parent=1 // pred_check
      _
    $region19: #{_lambda_.57} parent=1 // pred_check_branch
      %22 = sbr.rel (0) target = $region21
    $region20: #{_lambda_.57} parent=1 // pred_region
      _
    $region21: #{_lambda_.57} parent=1 // pred_fallthru
      _
    // Predicated region
    $region22: #{_lambda_.57} parent=1 // pred_check
      _
    $region23: #{_lambda_.57} parent=1 // pred_check_branch
      %24 = sbr.rel (0) target = $region25
    $region24: #{_lambda_.57} parent=1 // pred_region
      _
    $region25: #{_lambda_.57} parent=1 // pred_fallthru
      _
    // Predicated region
    $region26: #{_lambda_.57} parent=1 // pred_check
      _
    $region27: #{_lambda_.57} parent=1 // pred_check_branch
      %26 = sbr.rel (0) target = $region29
    $region28: #{_lambda_.57} parent=1 // pred_region
      _
    $region29: #{_lambda_.57} parent=1 // pred_fallthru
      _
    %p28 = scmp.eq.s32.totalorder 0, 0
    // Predicated region
    $region30: #{_lambda_.57} parent=1 // pred_check
      %p29 = pneg %p28
    $region31: #{_lambda_.57} parent=1 // pred_check_branch
      %31 = sbr.rel (%p29) target = $region33
    $region32: #{_lambda_.57} parent=1 // pred_region
      %vm32 = vcmask 261120
      %33 = vst.msk [vmem:[#allocation2] sm:$0xff] %vm32, 0.0
      %34 = vst.msk [vmem:[#allocation2 + $0x8] sm:$0xff] %vm32, 0.0
    $region33: #{_lambda_.57} parent=1 // pred_fallthru
      _
    %v35 = vld [vmem:[%s0] sm:$0xff]
    %v36 = vld [vmem:[%s0 + $0x8] sm:$0xff]
    %v37 = vpack.c.bf16 %v36, %v35
    %v38 = vld [vmem:[%s1] sm:$0xf]
    %v39 = vld [vmem:[%s1 + $0x4] sm:$0xf]
    %v40 = vld [vmem:[%s1 + $0x8] sm:$0xf]
    %v41 = vld [vmem:[%s1 + $0xc] sm:$0xf]
    %v42 = vld [vmem:[%s2] sm:$0x1]
    %v44 = vlaneseq
    %v45 = vshrl.u32 %v44, 7
    %v46 = vsub.s32 0, %v45
    %v47 = vrot.slane %v42, %v46
    %v53 = vunpack.c.l.b16 %v38
    %v54 = vunpack.c.l.b16 %v39
    %v55 = vunpack.c.l.b16 %v40
    %v56 = vunpack.c.l.b16 %v41
    %v57 = vpack.c.b16 %v54, %v53
    %v58 = vpack.c.b16 %v56, %v55
    %vm61 = vcmask 261120
    %v63 = vsel %vm61, %v37, 0
    %65 = vmatprep.subr.bf16.mxu0 0
    %66 = vmatpush1.bf16.msra.mxu0 %v57
    %67 = vmatprep.subr.bf16.mxu0 0
    %68 = vmatpush1.bf16.msra.mxu0 %v58
    %69 = vmatprep.subr.bf16.mxu0 0
    %70 = vmatpush1.bf16.msra.mxu0 0
    %71 = vmatprep.subr.bf16.mxu0 0
    %72 = vmatpush1.bf16.msra.mxu0 0
    %73 = vmatprep.subr.bf16.mxu0 0
    %74 = vmatpush1.bf16.msra.mxu0 0
    %75 = vmatprep.subr.bf16.mxu0 0
    %76 = vmatpush1.bf16.msra.mxu0 0
    %77 = vmatprep.subr.bf16.mxu0 0
    %78 = vmatpush1.bf16.msra.mxu0 0
    %79 = vmatprep.subr.bf16.mxu0 0
    %80 = vmatpush1.bf16.msra.mxu0 0
    %81 = vmatprep.subr.bf16.mxu0 0
    %82 = vmatpush1.bf16.msra.mxu0 0
    %83 = vmatprep.subr.bf16.mxu0 0
    %84 = vmatpush1.bf16.msra.mxu0 0
    %85 = vmatprep.subr.bf16.mxu0 0
    %86 = vmatpush1.bf16.msra.mxu0 0
    %87 = vmatprep.subr.bf16.mxu0 0
    %88 = vmatpush1.bf16.msra.mxu0 0
    %89 = vmatprep.subr.bf16.mxu0 0
    %90 = vmatpush1.bf16.msra.mxu0 0
    %91 = vmatprep.subr.bf16.mxu0 0
    %92 = vmatpush1.bf16.msra.mxu0 0
    %93 = vmatprep.subr.bf16.mxu0 0
    %94 = vmatpush1.bf16.msra.mxu0 0
    %95 = vmatprep.subr.bf16.mxu0 0
    %96 = vmatpush1.bf16.msra.mxu0 0
    %97 = vmatprep.mubr.bf16.mxu0 0
    %98 = vmatmul.mubr.bf16.gmra.mrb[0].mxu0 %v63
    %v99 = vpop.f32.mrb[0].mxu0
    %v100 = vadd.f32 %v47, %v99
    %v101 = vpop.f32.mrb[0].mxu0
    %v102 = vpop.f32.mrb[0].mxu0
    %v103 = vadd.f32 %v47, %v102
    %v104 = vpop.f32.mrb[0].mxu0
    %105 = vdwg.mxu0
    %v106 = vmax.f32 %v100, 0.0
    %v107 = vmax.f32 %v103, 0.0
    %v108 = vld [vmem:[#allocation2] sm:$0xff]
    %v109 = vld [vmem:[#allocation2 + $0x8] sm:$0xff]
    %v110 = vpack.c.bf16 %v107, %v106
    %v111 = vld [vmem:[%s3] sm:$0xf]
    %v112 = vld [vmem:[%s3 + $0x4] sm:$0xf]
    %v113 = vld [vmem:[%s3 + $0x8] sm:$0xf]
    %v114 = vld [vmem:[%s3 + $0xc] sm:$0xf]
    %v115 = vld [vmem:[%s3 + $0x10] sm:$0xf]
    %v116 = vld [vmem:[%s3 + $0x14] sm:$0xf]
    %v117 = vld [vmem:[%s3 + $0x18] sm:$0xf]
    %v118 = vld [vmem:[%s3 + $0x1c] sm:$0xf]
    %v127 = vunpack.c.l.b16 %v111
    %v128 = vunpack.c.l.b16 %v112
    %v129 = vunpack.c.l.b16 %v113
    %v130 = vunpack.c.l.b16 %v114
    %v131 = vunpack.c.l.b16 %v115
    %v132 = vunpack.c.l.b16 %v116
    %v133 = vunpack.c.l.b16 %v117
    %v134 = vunpack.c.l.b16 %v118
    %v135 = vpack.c.b16 %v128, %v127
    %v136 = vpack.c.b16 %v130, %v129
    %v137 = vpack.c.b16 %v132, %v131
    %v138 = vpack.c.b16 %v134, %v133
    %vm143 = vcmask 523264
    %v145 = vsel %vm143, %v110, 0
    %147 = vmatprep.subr.bf16.mxu0 0
    %148 = vmatpush1.bf16.msra.mxu0 %v135
    %149 = vmatprep.subr.bf16.mxu0 0
    %150 = vmatpush1.bf16.msra.mxu0 %v136
    %151 = vmatprep.subr.bf16.mxu0 0
    %152 = vmatpush1.bf16.msra.mxu0 %v137
    %153 = vmatprep.subr.bf16.mxu0 0
    %154 = vmatpush1.bf16.msra.mxu0 %v138
    %155 = vmatprep.subr.bf16.mxu0 0
    %156 = vmatpush1.bf16.msra.mxu0 0
    %157 = vmatprep.subr.bf16.mxu0 0
    %158 = vmatpush1.bf16.msra.mxu0 0
    %159 = vmatprep.subr.bf16.mxu0 0
    %160 = vmatpush1.bf16.msra.mxu0 0
    %161 = vmatprep.subr.bf16.mxu0 0
    %162 = vmatpush1.bf16.msra.mxu0 0
    %163 = vmatprep.subr.bf16.mxu0 0
    %164 = vmatpush1.bf16.msra.mxu0 0
    %165 = vmatprep.subr.bf16.mxu0 0
    %166 = vmatpush1.bf16.msra.mxu0 0
    %167 = vmatprep.subr.bf16.mxu0 0
    %168 = vmatpush1.bf16.msra.mxu0 0
    %169 = vmatprep.subr.bf16.mxu0 0
    %170 = vmatpush1.bf16.msra.mxu0 0
    %171 = vmatprep.subr.bf16.mxu0 0
    %172 = vmatpush1.bf16.msra.mxu0 0
    %173 = vmatprep.subr.bf16.mxu0 0
    %174 = vmatpush1.bf16.msra.mxu0 0
    %175 = vmatprep.subr.bf16.mxu0 0
    %176 = vmatpush1.bf16.msra.mxu0 0
    %177 = vmatprep.subr.bf16.mxu0 0
    %178 = vmatpush1.bf16.msra.mxu0 0
    %179 = vmatprep.mubr.bf16.mxu0 0
    %180 = vmatmul.mubr.bf16.gmra.mrb[0].mxu0 %v145
    %v181 = vpop.f32.mrb[0].mxu0
    %v182 = vadd.f32 0.0, %v181
    %v183 = vpop.f32.mrb[0].mxu0
    %v184 = vpop.f32.mrb[0].mxu0
    %v185 = vadd.f32 0.0, %v184
    %v186 = vpop.f32.mrb[0].mxu0
    %187 = vdwg.mxu0
    %v188 = vadd.f32 %v108, %v182
    %v189 = vadd.f32 %v109, %v185
    %190 = vst.msk [vmem:[#allocation2] sm:$0xff] %vm61, %v188
    %191 = vst.msk [vmem:[#allocation2 + $0x8] sm:$0xff] %vm61, %v189
    // Predicated region
    $region34: #{_lambda_.57} parent=1 // pred_check
      %p192 = pneg %p28
    $region35: #{_lambda_.57} parent=1 // pred_check_branch
      %194 = sbr.rel (%p192) target = $region37
    $region36: #{_lambda_.57} parent=1 // pred_region
      %v195 = vld [vmem:[#allocation2] sm:$0xff]
      %v196 = vld [vmem:[#allocation2 + $0x8] sm:$0xff]
      %v197 = vld [vmem:[%s4] sm:$0x1]
      %v199 = vlaneseq
      %v200 = vshrl.u32 %v199, 7
      %v201 = vsub.s32 0, %v200
      %v202 = vrot.slane %v197, %v201
      %v204 = vadd.f32 %v195, %v202
      %v205 = vadd.f32 %v196, %v202
      %v206 = vld [vmem:[%s0] sm:$0xff]
      %v207 = vld [vmem:[%s0 + $0x8] sm:$0xff]
      %v208 = vadd.f32 %v204, %v206
      %v209 = vadd.f32 %v205, %v207
      %v210 = vld [vmem:[%s5] sm:$0x1]
      %v211 = vld [vmem:[%s6] sm:$0x1]
      %v212 = vsel %vm61, %v208, 0.0
      %213 = vadd.xlane.f32.xlu0 %v212
      %v214 = vpop.xlane.xlu0 %213
      %v215 = vsel %vm61, %v209, 0.0
      %216 = vadd.xlane.f32.xlu0 %v215
      %v217 = vpop.xlane.xlu0 %216
      %v218 = vmul.f32 %v208, %v208
      %v219 = vmul.f32 %v209, %v209
      %v220 = vsel %vm61, %v218, 0.0
      %221 = vadd.xlane.f32.xlu0 %v220
      %v222 = vpop.xlane.xlu0 %221
      %v223 = vsel %vm61, %v219, 0.0
      %224 = vadd.xlane.f32.xlu0 %v223
      %v225 = vpop.xlane.xlu0 %224
      %v226 = vmul.f32 %v214, 0.03125
      %v227 = vmul.f32 %v217, 0.03125
      %v228 = vmul.f32 %v222, 0.03125
      %v229 = vmul.f32 %v225, 0.03125
      %v230 = vmul.f32 %v226, %v226
      %v231 = vmul.f32 %v227, %v227
      %v232 = vsub.f32 %v228, %v230
      %v233 = vsub.f32 %v229, %v231
      %v234 = vadd.f32 %v232, 1e-05
      %v235 = vadd.f32 %v233, 1e-05
      %v236 = vrsqrt.pop %v234
      %v237 = vrsqrt.pop %v235
      %v238 = vsub.f32 %v208, %v226
      %v239 = vsub.f32 %v209, %v227
      %v240 = vmul.f32 %v238, %v236
      %v241 = vmul.f32 %v239, %v237
      %v243 = vlaneseq
      %v244 = vshrl.u32 %v243, 7
      %v245 = vsub.s32 0, %v244
      %v246 = vrot.slane %v210, %v245
      %v248 = vmul.f32 %v240, %v246
      %v249 = vmul.f32 %v241, %v246
      %v251 = vlaneseq
      %v252 = vshrl.u32 %v251, 7
      %v253 = vsub.s32 0, %v252
      %v254 = vrot.slane %v211, %v253
      %v256 = vadd.f32 %v248, %v254
      %v257 = vadd.f32 %v249, %v254
      %258 = vst.msk [vmem:[#allocation3] sm:$0xff] %vm61, %v256
      %259 = vst.msk [vmem:[#allocation3 + $0x8] sm:$0xff] %vm61, %v257
    $region37: #{_lambda_.57} parent=1 // pred_fallthru
      _
    // Predicated region
    $region38: #{_lambda_.57} parent=1 // pred_check
      _
    $region39: #{_lambda_.57} parent=1 // pred_check_branch
      %261 = sbr.rel (0) target = $region41
    $region40: #{_lambda_.57} parent=1 // pred_region
      %s263 = ssub.s32 256, 256
      %264 = vsyncadd [#allocation4], %s263
      %s265 = sshll.u32 [#allocation3], 4
      %s266 = int_to_ptr.vmem [resolvable:$true] %s265
      %271 = dma.vmem_to_hbm [thread:$0]  %s266, 256, %s7, [#allocation4], 128, 128, 8
    $region41: #{_lambda_.57} parent=1 // pred_fallthru
      _
    // Predicated region
    $region42: #{_lambda_.57} parent=1 // pred_check
      _
    $region43: #{_lambda_.57} parent=1 // pred_check_branch
      %273 = sbr.rel (0) target = $region45
    $region44: #{_lambda_.57} parent=1 // pred_region
      %274 = dma.done [#allocation4], 256
    $region45: #{_lambda_.57} parent=1 // pred_fallthru
      _
    %275 = vsyncpa [#allocation4], 1

</llo_original>
